<compile_context>
chip_gen: v5e
topology: v5e:2x2
jax: 0.10.0
libtpu: 0.0.40
codegen_flags: <defaults>
</compile_context>

<pallas_src>
import functools

import jax
import jax.numpy as jnp
from jax.experimental import pallas as pl
from jax.experimental.pallas import tpu as pltpu


def _round_up(x, m):
    return ((x + m - 1) // m) * m


# ----------------------------------------------------------------------------
# Generic tiled linear:  y = x @ W + b   (K-reduction grid axis + accumulator)
# ----------------------------------------------------------------------------
def _linear_kernel(x_ref, w_ref, b_ref, o_ref, acc_ref):
    k = pl.program_id(2)

    @pl.when(k == 0)
    def _init():
        acc_ref[...] = jnp.zeros_like(acc_ref)

    acc_ref[...] += jnp.dot(x_ref[...], w_ref[...],
                            preferred_element_type=jnp.float32)

    @pl.when(k == pl.num_programs(2) - 1)
    def _finalize():
        o_ref[...] = (acc_ref[...] + b_ref[...]).astype(o_ref.dtype)


def linear(x2d, w, b, *, bm=256, bn=256, bk=512):
    """x2d: [M, K] @ w: [K, N] + b: [N] -> [M, N]."""
    M, K = x2d.shape
    N = w.shape[1]
    bm = min(bm, _round_up(M, 8))
    bn = N if N <= bn else bn
    bk = K if K <= bk else bk
    Mp, Kp, Np = _round_up(M, bm), _round_up(K, bk), _round_up(N, bn)
    if (Mp, Kp) != (M, K):
        x2d = jnp.pad(x2d, ((0, Mp - M), (0, Kp - K)))
    if (Kp, Np) != (K, N):
        w = jnp.pad(w, ((0, Kp - K), (0, Np - N)))
    if Np != N:
        b = jnp.pad(b, (0, Np - N))
    out = pl.pallas_call(
        _linear_kernel,
        out_shape=jax.ShapeDtypeStruct((Mp, Np), x2d.dtype),
        grid_spec=pltpu.PrefetchScalarGridSpec(
            num_scalar_prefetch=0,
            grid=(Mp // bm, Np // bn, Kp // bk),
            in_specs=[
                pl.BlockSpec((bm, bk), lambda i, j, k: (i, k)),
                pl.BlockSpec((bk, bn), lambda i, j, k: (k, j)),
                pl.BlockSpec((1, bn), lambda i, j, k: (0, j)),
            ],
            out_specs=pl.BlockSpec((bm, bn), lambda i, j, k: (i, j)),
            scratch_shapes=[pltpu.VMEM((bm, bn), jnp.float32)],
        ),
        compiler_params=pltpu.CompilerParams(
            dimension_semantics=("parallel", "parallel", "arbitrary"),
            vmem_limit_bytes=48 * 1024 * 1024,  # fits the 64 MiB v7x budget
        ),
    )(x2d, w, b.reshape(1, Np))
    if (Mp, Np) != (M, N):
        out = out[:M, :N]
    return out


def linear3d(x, w, b, **kw):
    B, S, K = x.shape
    N = w.shape[1]
    return linear(x.reshape(B * S, K), w, b, **kw).reshape(B, S, N)


# ----------------------------------------------------------------------------
# Fused  (x @ W_down + b_down) @ W_up + b_up  followed by interleaved RoPE.
# The pair-swap of RoPE is folded into a pre-permuted copy of W_up (w_up_s),
# so the kernel is three matmuls + a VPU epilogue, no lane shuffles.
# ----------------------------------------------------------------------------
def _rope_proj_kernel(x_ref, wd_ref, bd_ref, wu_ref, bu_ref, wus_ref, bus_ref,
                      cos_ref, sin_ref, o_ref):
    h = jnp.dot(x_ref[...], wd_ref[...], preferred_element_type=jnp.float32)
    h = h + bd_ref[...]
    y = jnp.dot(h, wu_ref[...], preferred_element_type=jnp.float32) + bu_ref[...]
    ys = jnp.dot(h, wus_ref[...], preferred_element_type=jnp.float32) + bus_ref[...]
    # out[2j]   = y[2j]*cos_j - y[2j+1]*sin_j ;  out[2j+1] = y[2j+1]*cos_j + y[2j]*sin_j
    o_ref[...] = (y * cos_ref[...] + ys * sin_ref[...]).astype(o_ref.dtype)


def _pair_swap_cols(w):
    # w'[:, 2j] = w[:, 2j+1], w'[:, 2j+1] = w[:, 2j]  (host-side, weights only)
    K, N = w.shape
    return w.reshape(K, N // 2, 2)[:, :, ::-1].reshape(K, N)


def rope_proj(x, w_down, b_down, w_up, b_up, cos_full, sin_signed):
    """x: [B, S, E_in] -> RoPE((x @ w_down + b_down) @ w_up + b_up): [B, S, E]."""
    B, S, Ein = x.shape
    C = w_down.shape[1]
    E = w_up.shape[1]
    ts = 256 if S % 256 == 0 else S
    w_up_s = _pair_swap_cols(w_up)
    b_up_s = _pair_swap_cols(b_up.reshape(1, E))
    return pl.pallas_call(
        _rope_proj_kernel,
        out_shape=jax.ShapeDtypeStruct((B, S, E), x.dtype),
        grid_spec=pl.GridSpec(
            grid=(B, S // ts),
            in_specs=[
                pl.BlockSpec((None, ts, Ein), lambda b, s: (b, s, 0)),
                pl.BlockSpec((Ein, C), lambda b, s: (0, 0)),
                pl.BlockSpec((1, C), lambda b, s: (0, 0)),
                pl.BlockSpec((C, E), lambda b, s: (0, 0)),
                pl.BlockSpec((1, E), lambda b, s: (0, 0)),
                pl.BlockSpec((C, E), lambda b, s: (0, 0)),
                pl.BlockSpec((1, E), lambda b, s: (0, 0)),
                pl.BlockSpec((ts, E), lambda b, s: (s, 0)),
                pl.BlockSpec((ts, E), lambda b, s: (s, 0)),
            ],
            out_specs=pl.BlockSpec((None, ts, E), lambda b, s: (b, s, 0)),
        ),
        compiler_params=pltpu.CompilerParams(
            dimension_semantics=("parallel", "parallel")),
    )(x, w_down, b_down.reshape(1, C), w_up, b_up.reshape(1, E),
      w_up_s, b_up_s, cos_full, sin_signed)


# ----------------------------------------------------------------------------
# Concat-free cache_k:  x1 @ w1 + x2 @ w2 + b  ( == concat([x1,x2],-1) @ [w1;w2] + b )
# ----------------------------------------------------------------------------
def _dual_linear_kernel(x1_ref, x2_ref, w1_ref, w2_ref, b_ref, o_ref):
    acc = jnp.dot(x1_ref[...], w1_ref[...], preferred_element_type=jnp.float32)
    acc = acc + jnp.dot(x2_ref[...], w2_ref[...], preferred_element_type=jnp.float32)
    o_ref[...] = (acc + b_ref[...]).astype(o_ref.dtype)


def dual_linear(x1, x2, w1, w2, b):
    B, S, K1 = x1.shape
    K2 = x2.shape[-1]
    N = w1.shape[1]
    ts = 256 if S % 256 == 0 else S
    return pl.pallas_call(
        _dual_linear_kernel,
        out_shape=jax.ShapeDtypeStruct((B, S, N), x1.dtype),
        grid_spec=pl.GridSpec(
            grid=(B, S // ts),
            in_specs=[
                pl.BlockSpec((None, ts, K1), lambda b, s: (b, s, 0)),
                pl.BlockSpec((None, ts, K2), lambda b, s: (b, s, 0)),
                pl.BlockSpec((K1, N), lambda b, s: (0, 0)),
                pl.BlockSpec((K2, N), lambda b, s: (0, 0)),
                pl.BlockSpec((1, N), lambda b, s: (0, 0)),
            ],
            out_specs=pl.BlockSpec((None, ts, N), lambda b, s: (b, s, 0)),
        ),
        compiler_params=pltpu.CompilerParams(
            dimension_semantics=("parallel", "parallel")),
    )(x1, x2, w1, w2, b.reshape(1, N))


# ----------------------------------------------------------------------------
# Attention over the (content | rope) head split.  Grid (batch, q-tiles), all
# heads per step; Q tiling bounds VMEM in the query length.
# TODO(synk): for very long sequences, add KV tiling (flash-style online softmax);
# it is omitted here because the module must return the full [B,H,S,S] weights.
# ----------------------------------------------------------------------------
def _attn_kernel(qc_ref, qr_ref, kc_ref, kr_ref, vc_ref, vr_ref, o_ref, w_ref,
                 *, scale, hc):
    def head_block(q, k, vh):
        # q: [tq, Hc, Dq], k: [S, Hc, Dq], vh: [S, Hc, Dh]
        s = jnp.einsum("qhd,khd->hqk", q, k,
                       preferred_element_type=jnp.float32) * scale
        s = s - jnp.max(s, axis=-1, keepdims=True)
        p = jnp.exp(s)
        p = p * pl.reciprocal(jnp.sum(p, axis=-1, keepdims=True), approx=True)
        o = jnp.einsum("hqk,khd->hqd", p, vh,
                       preferred_element_type=jnp.float32)
        return p, o

    p_c, o_c = head_block(qc_ref[...], kc_ref[...], vc_ref[...])
    p_r, o_r = head_block(qr_ref[...], kr_ref[...], vr_ref[...])
    w_ref[:hc] = p_c.astype(w_ref.dtype)
    w_ref[hc:] = p_r.astype(w_ref.dtype)
    o_ref[:hc] = o_c.astype(o_ref.dtype)
    o_ref[hc:] = o_r.astype(o_ref.dtype)


def attention(q, rq, k, rk, v, *, num_heads, head_dim):
    """q/rq/k/rk/v: [B, S, E] -> (out4 [B,H,S,Dh], weights [B,H,S,S]).

    Matches torch: cat([q, rq], -1).view(B,S,H,2Dh) head-split, i.e. the first
    H/2 heads use content features and the last H/2 heads use RoPE features.
    """
    B, S, E = q.shape
    H, Dh = num_heads, head_dim
    hc = H // 2
    dq = 2 * Dh
    tq = 256 if S % 256 == 0 else S
    q4, rq4 = q.reshape(B, S, hc, dq), rq.reshape(B, S, hc, dq)
    k4, rk4 = k.reshape(B, S, hc, dq), rk.reshape(B, S, hc, dq)
    v5 = v.reshape(B, S, 2, hc, Dh)  # [.., half, head-in-half, Dh]
    kernel = functools.partial(_attn_kernel, scale=1.0 / (Dh ** 0.5), hc=hc)
    out4, weights = pl.pallas_call(
        kernel,
        out_shape=(
            jax.ShapeDtypeStruct((B, H, S, Dh), q.dtype),
            jax.ShapeDtypeStruct((B, H, S, S), q.dtype),
        ),
        grid_spec=pl.GridSpec(
            grid=(B, S // tq),
            in_specs=[
                pl.BlockSpec((None, tq, hc, dq), lambda b, i: (b, i, 0, 0)),
                pl.BlockSpec((None, tq, hc, dq), lambda b, i: (b, i, 0, 0)),
                pl.BlockSpec((None, S, hc, dq), lambda b, i: (b, 0, 0, 0)),
                pl.BlockSpec((None, S, hc, dq), lambda b, i: (b, 0, 0, 0)),
                pl.BlockSpec((None, S, None, hc, Dh), lambda b, i: (b, 0, 0, 0, 0)),
                pl.BlockSpec((None, S, None, hc, Dh), lambda b, i: (b, 0, 1, 0, 0)),
            ],
            out_specs=(
                pl.BlockSpec((None, H, tq, Dh), lambda b, i: (b, 0, i, 0)),
                pl.BlockSpec((None, H, tq, S), lambda b, i: (b, 0, i, 0)),
            ),
        ),
        compiler_params=pltpu.CompilerParams(
            dimension_semantics=("parallel", "parallel"),
            vmem_limit_bytes=48 * 1024 * 1024,
        ),
    )(q4, rq4, k4, rk4, v5, v5)
    return out4, weights


# ----------------------------------------------------------------------------
# Fused head-merge + W_O projection: head axis is the K-reduction grid axis, so
# no [B,H,S,Dh] -> [B,S,E] transpose is ever materialized in HBM.
# ----------------------------------------------------------------------------
def _out_proj_kernel(x_ref, w_ref, b_ref, o_ref, acc_ref):
    h = pl.program_id(2)

    @pl.when(h == 0)
    def _init():
        acc_ref[...] = jnp.zeros_like(acc_ref)

    acc_ref[...] += jnp.dot(x_ref[...], w_ref[...],
                            preferred_element_type=jnp.float32)

    @pl.when(h == pl.num_programs(2) - 1)
    def _finalize():
        o_ref[...] = (acc_ref[...] + b_ref[...]).astype(o_ref.dtype)


def out_proj(out4, w, b):
    """out4: [B, H, S, Dh], w: [H*Dh, E_out] -> [B, S, E_out]."""
    B, H, S, Dh = out4.shape
    E_out = w.shape[1]
    w_h = w.reshape(H, Dh, E_out)
    ts = 256 if S % 256 == 0 else S
    return pl.pallas_call(
        _out_proj_kernel,
        out_shape=jax.ShapeDtypeStruct((B, S, E_out), out4.dtype),
        grid_spec=pltpu.PrefetchScalarGridSpec(
            num_scalar_prefetch=0,
            grid=(B, S // ts, H),
            in_specs=[
                pl.BlockSpec((None, None, ts, Dh), lambda b, s, h: (b, h, s, 0)),
                pl.BlockSpec((None, Dh, E_out), lambda b, s, h: (h, 0, 0)),
                pl.BlockSpec((1, E_out), lambda b, s, h: (0, 0)),
            ],
            out_specs=pl.BlockSpec((None, ts, E_out), lambda b, s, h: (b, s, 0)),
            scratch_shapes=[pltpu.VMEM((ts, E_out), jnp.float32)],
        ),
        compiler_params=pltpu.CompilerParams(
            dimension_semantics=("parallel", "parallel", "arbitrary")),
    )(out4, w_h, b.reshape(1, E_out))


# ----------------------------------------------------------------------------
# Model glue: rotation tables, parameter init, forward orchestration
# ----------------------------------------------------------------------------
def rope_tables(seq_len, embedd_dim, consist, dtype=jnp.float32):
    """Interleaved-RoPE tables matching PyTorch RotatedMatrix():
         f_j = consist ** -(2j); cos_full[s,2j]=cos_full[s,2j+1]=cos(s*f_j);
         sin_signed[s,2j] = -sin(s*f_j), sin_signed[s,2j+1] = +sin(s*f_j)."""
    half = embedd_dim // 2
    exps = jnp.arange(0, embedd_dim, 2)[:half].astype(jnp.float32)
    freq = 1.0 / (consist ** exps)
    angles = jnp.outer(jnp.arange(seq_len, dtype=jnp.float32), freq)  # [S, E/2]
    cos_full = jnp.repeat(jnp.cos(angles), 2, axis=1)
    sin_rep = jnp.repeat(jnp.sin(angles), 2, axis=1)
    sign = jnp.tile(jnp.array([-1.0, 1.0], jnp.float32), half)
    return cos_full.astype(dtype), (sin_rep * sign).astype(dtype)


def init_params(key, cfg):
    E = cfg["embedd_dim"]
    C = cfg["compress_dim"]
    L = cfg["latent_dim"]
    Dh = cfg["head_dim"]
    specs = {
        "W_Q": (E, E), "W_K": (E, E), "W_V": (E, E), "W_O": (E, E),
        "W_DQ": (E, C), "W_UQ": (C, Dh), "W_UK": (L, E), "W_UV": (L, E),
        "W_DKV": (E, L), "W_DK": (2 * E, L), "W_QR": (C, E), "W_KR": (L, E),
    }
    params = {}
    keys = jax.random.split(key, len(specs))
    for kk, (name, (din, dout)) in zip(keys, specs.items()):
        kw, kb = jax.random.split(kk)
        bound = 1.0 / (din ** 0.5)
        w = jax.random.uniform(kw, (din, dout), jnp.float32, -bound, bound)
        b = jax.random.uniform(kb, (dout,), jnp.float32, -bound, bound)
        params[name] = (w, b)
    return params


def mla_forward(params, query, key_in, value, consist, cfg):
    S = cfg["sequence_len"]
    E = cfg["embedd_dim"]
    H = cfg["num_heads"]
    Dh = cfg["head_dim"]
    assert E == H * Dh and H % 2 == 0

    # TODO(synk): kv_cache branch of the PyTorch forward (torch.cat(pre_key, key, dim=1))
    # is malformed / unexercised; only the kv_cache=None path is implemented
    # (hence W_UQ / W_UK / W_UV stay unused, matching the reference).

    def lin(x, name):
        w, b = params[name]
        return linear3d(x, w, b)

    q = lin(query, "W_Q")      # [B, S, E]
    k = lin(key_in, "W_K")     # [B, S, E]
    v = lin(value, "W_V")      # [B, S, E]

    # one rotation table (new_sequence_len == sequence_len on the no-cache path)
    cos_full, sin_signed = rope_tables(S, E, consist, q.dtype)

    # fused down-proj -> up-proj -> RoPE
    rotated_query = rope_proj(q, params["W_DQ"][0], params["W_DQ"][1],
                              params["W_QR"][0], params["W_QR"][1],
                              cos_full, sin_signed)                 # [B, S, E]
    rotated_key = rope_proj(k, params["W_DKV"][0], params["W_DKV"][1],
                            params["W_KR"][0], params["W_KR"][1],
                            cos_full, sin_signed)                   # [B, S, E]

    # latent kv-cache (concat-free: W_DK split into its two E-row halves)
    w_dk, b_dk = params["W_DK"]
    cache_k = dual_linear(k, rotated_key, w_dk[:E], w_dk[E:], b_dk)  # [B, S, L]
    cache_v = lin(v, "W_DKV")                                        # [B, S, L]

    # attention over the (content | rope) head split
    out4, weight = attention(q, rotated_query, k, rotated_key, v,
                             num_heads=H, head_dim=Dh)

    # fused head-merge + W_O
    w_o, b_o = params["W_O"]
    out = out_proj(out4, w_o, b_o)                                   # [B, S, E]
    return out, weight, (cache_k, cache_v)


# ----------------------------------------------------------------------------
if __name__ == "__main__":
    cfg = dict(
        batch=2,
        embedd_dim=32,
        sequence_len=8,
        num_heads=4,
        head_dim=8,       # num_heads * head_dim == embedd_dim
        compress_dim=16,
        latent_dim=16,
    )
    consist = 10000.0

    root = jax.random.PRNGKey(0)
    pkey, qk, kk, vk = jax.random.split(root, 4)
    params = init_params(pkey, cfg)

    B, S, E = cfg["batch"], cfg["sequence_len"], cfg["embedd_dim"]
    query = jax.random.normal(qk, (B, S, E), jnp.float32)
    key_in = jax.random.normal(kk, (B, S, E), jnp.float32)
    value = jax.random.normal(vk, (B, S, E), jnp.float32)

    @jax.jit
    def run(params, query, key_in, value):
        return mla_forward(params, query, key_in, value, consist, cfg)

    out, weight, kv_cache = run(params, query, key_in, value)
    jax.block_until_ready((out, weight, kv_cache))

    assert out.shape == (B, S, E)
    assert weight.shape == (B, cfg["num_heads"], S, S)
    assert kv_cache[0].shape == (B, S, cfg["latent_dim"])
    assert kv_cache[1].shape == (B, S, cfg["latent_dim"])
    assert bool(jnp.all(jnp.isfinite(out)))
    assert bool(jnp.all(jnp.isfinite(weight)))
    print("KERNEL_OK")
</pallas_src>

<mosaic_0001>
module attributes {stable_mosaic.version = 11 : i64} {
  func.func @_linear_kernel(%arg0: i32, %arg1: i32, %arg2: i32, %arg3: memref<16x32xf32, #tpu.memory_space<vmem>>, %arg4: memref<32x32xf32, #tpu.memory_space<vmem>>, %arg5: memref<1x32xf32, #tpu.memory_space<vmem>>, %arg6: memref<16x32xf32, #tpu.memory_space<vmem>>, %arg7: memref<16x32xf32, #tpu.memory_space<vmem>>) attributes {dimension_semantics = [#tpu.dimension_semantics<parallel>, #tpu.dimension_semantics<parallel>, #tpu.dimension_semantics<arbitrary>], iteration_bounds = array<i64: 1, 1, 1>, scalar_prefetch = 0 : i64, scratch_operands = 1 : i64, tpu.core_type = #tpu.core_type<tc>, window_params = [{transform_indices = @transform_0, window_bounds = array<i64: 16, 32>}, {transform_indices = @transform_1, window_bounds = array<i64: 32, 32>}, {transform_indices = @transform_2, window_bounds = array<i64: 1, 32>}, {transform_indices = @transform_3, window_bounds = array<i64: 16, 32>}]} {
    %c0_i32 = arith.constant 0 : i32
    %0 = arith.cmpi eq, %arg2, %c0_i32 : i32
    %1 = arith.extui %0 : i1 to i32
    %c0_i32_0 = arith.constant 0 : i32
    %2 = arith.cmpi ne, %1, %c0_i32_0 : i32
    scf.if %2 {
      %cst_10 = arith.constant 0.000000e+00 : f32
      %12 = vector.broadcast %cst_10 : f32 to vector<16x32xf32>
      %c0_11 = arith.constant 0 : index
      %c0_12 = arith.constant 0 : index
      %13 = vector.load %arg7[%c0_11, %c0_12] : memref<16x32xf32, #tpu.memory_space<vmem>>, vector<16x32xf32>
      tpu.vector_store %arg7[%c0_11, %c0_12], %12 {strides = array<i32>} : memref<16x32xf32, #tpu.memory_space<vmem>>, vector<16x32xf32>,
    } else {
    }
    %c0 = arith.constant 0 : index
    %c0_1 = arith.constant 0 : index
    %3 = vector.load %arg7[%c0, %c0_1] : memref<16x32xf32, #tpu.memory_space<vmem>>, vector<16x32xf32>
    %c0_2 = arith.constant 0 : index
    %c0_3 = arith.constant 0 : index
    %4 = vector.load %arg3[%c0_2, %c0_3] : memref<16x32xf32, #tpu.memory_space<vmem>>, vector<16x32xf32>
    %c0_4 = arith.constant 0 : index
    %c0_5 = arith.constant 0 : index
    %5 = vector.load %arg4[%c0_4, %c0_5] : memref<32x32xf32, #tpu.memory_space<vmem>>, vector<32x32xf32>
    %cst = arith.constant dense<0.000000e+00> : vector<16x32xf32>
    %6 = tpu.matmul %4, %5, %cst {dimension_numbers = #tpu.dot_dimension_numbers<[1], [0], [0], [1], [0, 0, 1, 1], [], []>} : vector<16x32xf32>, vector<32x32xf32>, vector<16x32xf32> -> vector<16x32xf32>
    %7 = arith.addf %3, %6 : vector<16x32xf32>
    %c0_6 = arith.constant 0 : index
    %c0_7 = arith.constant 0 : index
    %8 = vector.load %arg7[%c0_6, %c0_7] : memref<16x32xf32, #tpu.memory_space<vmem>>, vector<16x32xf32>
    tpu.vector_store %arg7[%c0_6, %c0_7], %7 {strides = array<i32>} : memref<16x32xf32, #tpu.memory_space<vmem>>, vector<16x32xf32>,
    %c0_i32_8 = arith.constant 0 : i32
    %9 = arith.cmpi eq, %arg2, %c0_i32_8 : i32
    %10 = arith.extui %9 : i1 to i32
    %c0_i32_9 = arith.constant 0 : i32
    %11 = arith.cmpi ne, %10, %c0_i32_9 : i32
    scf.if %11 {
      %c0_10 = arith.constant 0 : index
      %c0_11 = arith.constant 0 : index
      %12 = vector.load %arg7[%c0_10, %c0_11] : memref<16x32xf32, #tpu.memory_space<vmem>>, vector<16x32xf32>
      %c0_12 = arith.constant 0 : index
      %c0_13 = arith.constant 0 : index
      %13 = vector.load %arg5[%c0_12, %c0_13] : memref<1x32xf32, #tpu.memory_space<vmem>>, vector<1x32xf32>
      %14 = vector.broadcast %13 : vector<1x32xf32> to vector<16x32xf32>
      %15 = arith.addf %12, %14 : vector<16x32xf32>
      %c0_14 = arith.constant 0 : index
      %c0_15 = arith.constant 0 : index
      %16 = vector.load %arg6[%c0_14, %c0_15] : memref<16x32xf32, #tpu.memory_space<vmem>>, vector<16x32xf32>
      tpu.vector_store %arg6[%c0_14, %c0_15], %15 {strides = array<i32>} : memref<16x32xf32, #tpu.memory_space<vmem>>, vector<16x32xf32>,
    } else {
    }
    return
  }
  func.func @transform_0(%arg0: i32, %arg1: i32, %arg2: i32) -> (i32, i32) {
    %c0_i32 = arith.constant 0 : i32
    return %arg0, %arg2 : i32, i32
  }
  func.func @transform_1(%arg0: i32, %arg1: i32, %arg2: i32) -> (i32, i32) {
    %c0_i32 = arith.constant 0 : i32
    return %arg2, %arg1 : i32, i32
  }
  func.func @transform_2(%arg0: i32, %arg1: i32, %arg2: i32) -> (i32, i32) {
    %c0_i32 = arith.constant 0 : i32
    %c0_i32_0 = arith.constant 0 : i32
    return %c0_i32, %arg1 : i32, i32
  }
  func.func @transform_3(%arg0: i32, %arg1: i32, %arg2: i32) -> (i32, i32) {
    %c0_i32 = arith.constant 0 : i32
    return %arg0, %arg1 : i32, i32
  }
}

module attributes {stable_mosaic.version = 11 : i64} {
  func.func @_linear_kernel(%arg0: i32, %arg1: i32, %arg2: i32, %arg3: memref<16x32xf32, #tpu.memory_space<vmem>>, %arg4: memref<32x32xf32, #tpu.memory_space<vmem>>, %arg5: memref<1x32xf32, #tpu.memory_space<vmem>>, %arg6: memref<16x32xf32, #tpu.memory_space<vmem>>, %arg7: memref<16x32xf32, #tpu.memory_space<vmem>>) attributes {dimension_semantics = [#tpu.dimension_semantics<parallel>, #tpu.dimension_semantics<parallel>, #tpu.dimension_semantics<arbitrary>], iteration_bounds = array<i64: 1, 1, 1>, scalar_prefetch = 0 : i64, scratch_operands = 1 : i64, tpu.core_type = #tpu.core_type<tc>, window_params = [{transform_indices = @transform_0, window_bounds = array<i64: 16, 32>}, {transform_indices = @transform_1, window_bounds = array<i64: 32, 32>}, {transform_indices = @transform_2, window_bounds = array<i64: 1, 32>}, {transform_indices = @transform_3, window_bounds = array<i64: 16, 32>}]} {
    %c0_i32 = arith.constant 0 : i32
    %0 = arith.cmpi eq, %arg2, %c0_i32 : i32
    %1 = arith.extui %0 : i1 to i32
    %c0_i32_0 = arith.constant 0 : i32
    %2 = arith.cmpi ne, %1, %c0_i32_0 : i32
    scf.if %2 {
      %cst_10 = arith.constant 0.000000e+00 : f32
      %12 = vector.broadcast %cst_10 : f32 to vector<16x32xf32>
      %c0_11 = arith.constant 0 : index
      %c0_12 = arith.constant 0 : index
      %13 = vector.load %arg7[%c0_11, %c0_12] : memref<16x32xf32, #tpu.memory_space<vmem>>, vector<16x32xf32>
      tpu.vector_store %arg7[%c0_11, %c0_12], %12 {strides = array<i32>} : memref<16x32xf32, #tpu.memory_space<vmem>>, vector<16x32xf32>,
    } else {
    }
    %c0 = arith.constant 0 : index
    %c0_1 = arith.constant 0 : index
    %3 = vector.load %arg7[%c0, %c0_1] : memref<16x32xf32, #tpu.memory_space<vmem>>, vector<16x32xf32>
    %c0_2 = arith.constant 0 : index
    %c0_3 = arith.constant 0 : index
    %4 = vector.load %arg3[%c0_2, %c0_3] : memref<16x32xf32, #tpu.memory_space<vmem>>, vector<16x32xf32>
    %c0_4 = arith.constant 0 : index
    %c0_5 = arith.constant 0 : index
    %5 = vector.load %arg4[%c0_4, %c0_5] : memref<32x32xf32, #tpu.memory_space<vmem>>, vector<32x32xf32>
    %cst = arith.constant dense<0.000000e+00> : vector<16x32xf32>
    %6 = tpu.matmul %4, %5, %cst {dimension_numbers = #tpu.dot_dimension_numbers<[1], [0], [0], [1], [0, 0, 1, 1], [], []>} : vector<16x32xf32>, vector<32x32xf32>, vector<16x32xf32> -> vector<16x32xf32>
    %7 = arith.addf %3, %6 : vector<16x32xf32>
    %c0_6 = arith.constant 0 : index
    %c0_7 = arith.constant 0 : index
    %8 = vector.load %arg7[%c0_6, %c0_7] : memref<16x32xf32, #tpu.memory_space<vmem>>, vector<16x32xf32>
    tpu.vector_store %arg7[%c0_6, %c0_7], %7 {strides = array<i32>} : memref<16x32xf32, #tpu.memory_space<vmem>>, vector<16x32xf32>,
    %c0_i32_8 = arith.constant 0 : i32
    %9 = arith.cmpi eq, %arg2, %c0_i32_8 : i32
    %10 = arith.extui %9 : i1 to i32
    %c0_i32_9 = arith.constant 0 : i32
    %11 = arith.cmpi ne, %10, %c0_i32_9 : i32
    scf.if %11 {
      %c0_10 = arith.constant 0 : index
      %c0_11 = arith.constant 0 : index
      %12 = vector.load %arg7[%c0_10, %c0_11] : memref<16x32xf32, #tpu.memory_space<vmem>>, vector<16x32xf32>
      %c0_12 = arith.constant 0 : index
      %c0_13 = arith.constant 0 : index
      %13 = vector.load %arg5[%c0_12, %c0_13] : memref<1x32xf32, #tpu.memory_space<vmem>>, vector<1x32xf32>
      %14 = vector.broadcast %13 : vector<1x32xf32> to vector<16x32xf32>
      %15 = arith.addf %12, %14 : vector<16x32xf32>
      %c0_14 = arith.constant 0 : index
      %c0_15 = arith.constant 0 : index
      %16 = vector.load %arg6[%c0_14, %c0_15] : memref<16x32xf32, #tpu.memory_space<vmem>>, vector<16x32xf32>
      tpu.vector_store %arg6[%c0_14, %c0_15], %15 {strides = array<i32>} : memref<16x32xf32, #tpu.memory_space<vmem>>, vector<16x32xf32>,
    } else {
    }
    return
  }
  func.func @transform_0(%arg0: i32, %arg1: i32, %arg2: i32) -> (i32, i32) {
    %c0_i32 = arith.constant 0 : i32
    return %arg0, %arg2 : i32, i32
  }
  func.func @transform_1(%arg0: i32, %arg1: i32, %arg2: i32) -> (i32, i32) {
    %c0_i32 = arith.constant 0 : i32
    return %arg2, %arg1 : i32, i32
  }
  func.func @transform_2(%arg0: i32, %arg1: i32, %arg2: i32) -> (i32, i32) {
    %c0_i32 = arith.constant 0 : i32
    %c0_i32_0 = arith.constant 0 : i32
    return %c0_i32, %arg1 : i32, i32
  }
  func.func @transform_3(%arg0: i32, %arg1: i32, %arg2: i32) -> (i32, i32) {
    %c0_i32 = arith.constant 0 : i32
    return %arg0, %arg1 : i32, i32
  }
}

module attributes {stable_mosaic.version = 11 : i64} {
  func.func @_linear_kernel(%arg0: i32, %arg1: i32, %arg2: i32, %arg3: memref<16x32xf32, #tpu.memory_space<vmem>>, %arg4: memref<32x16xf32, #tpu.memory_space<vmem>>, %arg5: memref<1x16xf32, #tpu.memory_space<vmem>>, %arg6: memref<16x16xf32, #tpu.memory_space<vmem>>, %arg7: memref<16x16xf32, #tpu.memory_space<vmem>>) attributes {dimension_semantics = [#tpu.dimension_semantics<parallel>, #tpu.dimension_semantics<parallel>, #tpu.dimension_semantics<arbitrary>], iteration_bounds = array<i64: 1, 1, 1>, scalar_prefetch = 0 : i64, scratch_operands = 1 : i64, tpu.core_type = #tpu.core_type<tc>, window_params = [{transform_indices = @transform_0, window_bounds = array<i64: 16, 32>}, {transform_indices = @transform_1, window_bounds = array<i64: 32, 16>}, {transform_indices = @transform_2, window_bounds = array<i64: 1, 16>}, {transform_indices = @transform_3, window_bounds = array<i64: 16, 16>}]} {
    %c0_i32 = arith.constant 0 : i32
    %0 = arith.cmpi eq, %arg2, %c0_i32 : i32
    %1 = arith.extui %0 : i1 to i32
    %c0_i32_0 = arith.constant 0 : i32
    %2 = arith.cmpi ne, %1, %c0_i32_0 : i32
    scf.if %2 {
      %cst_10 = arith.constant 0.000000e+00 : f32
      %12 = vector.broadcast %cst_10 : f32 to vector<16x16xf32>
      %c0_11 = arith.constant 0 : index
      %c0_12 = arith.constant 0 : index
      %13 = vector.load %arg7[%c0_11, %c0_12] : memref<16x16xf32, #tpu.memory_space<vmem>>, vector<16x16xf32>
      tpu.vector_store %arg7[%c0_11, %c0_12], %12 {strides = array<i32>} : memref<16x16xf32, #tpu.memory_space<vmem>>, vector<16x16xf32>,
    } else {
    }
    %c0 = arith.constant 0 : index
    %c0_1 = arith.constant 0 : index
    %3 = vector.load %arg7[%c0, %c0_1] : memref<16x16xf32, #tpu.memory_space<vmem>>, vector<16x16xf32>
    %c0_2 = arith.constant 0 : index
    %c0_3 = arith.constant 0 : index
    %4 = vector.load %arg3[%c0_2, %c0_3] : memref<16x32xf32, #tpu.memory_space<vmem>>, vector<16x32xf32>
    %c0_4 = arith.constant 0 : index
    %c0_5 = arith.constant 0 : index
    %5 = vector.load %arg4[%c0_4, %c0_5] : memref<32x16xf32, #tpu.memory_space<vmem>>, vector<32x16xf32>
    %cst = arith.constant dense<0.000000e+00> : vector<16x16xf32>
    %6 = tpu.matmul %4, %5, %cst {dimension_numbers = #tpu.dot_dimension_numbers<[1], [0], [0], [1], [0, 0, 1, 1], [], []>} : vector<16x32xf32>, vector<32x16xf32>, vector<16x16xf32> -> vector<16x16xf32>
    %7 = arith.addf %3, %6 : vector<16x16xf32>
    %c0_6 = arith.constant 0 : index
    %c0_7 = arith.constant 0 : index
    %8 = vector.load %arg7[%c0_6, %c0_7] : memref<16x16xf32, #tpu.memory_space<vmem>>, vector<16x16xf32>
    tpu.vector_store %arg7[%c0_6, %c0_7], %7 {strides = array<i32>} : memref<16x16xf32, #tpu.memory_space<vmem>>, vector<16x16xf32>,
    %c0_i32_8 = arith.constant 0 : i32
    %9 = arith.cmpi eq, %arg2, %c0_i32_8 : i32
    %10 = arith.extui %9 : i1 to i32
    %c0_i32_9 = arith.constant 0 : i32
    %11 = arith.cmpi ne, %10, %c0_i32_9 : i32
    scf.if %11 {
      %c0_10 = arith.constant 0 : index
      %c0_11 = arith.constant 0 : index
      %12 = vector.load %arg7[%c0_10, %c0_11] : memref<16x16xf32, #tpu.memory_space<vmem>>, vector<16x16xf32>
      %c0_12 = arith.constant 0 : index
      %c0_13 = arith.constant 0 : index
      %13 = vector.load %arg5[%c0_12, %c0_13] : memref<1x16xf32, #tpu.memory_space<vmem>>, vector<1x16xf32>
      %14 = vector.broadcast %13 : vector<1x16xf32> to vector<16x16xf32>
      %15 = arith.addf %12, %14 : vector<16x16xf32>
      %c0_14 = arith.constant 0 : index
      %c0_15 = arith.constant 0 : index
      %16 = vector.load %arg6[%c0_14, %c0_15] : memref<16x16xf32, #tpu.memory_space<vmem>>, vector<16x16xf32>
      tpu.vector_store %arg6[%c0_14, %c0_15], %15 {strides = array<i32>} : memref<16x16xf32, #tpu.memory_space<vmem>>, vector<16x16xf32>,
    } else {
    }
    return
  }
  func.func @transform_0(%arg0: i32, %arg1: i32, %arg2: i32) -> (i32, i32) {
    %c0_i32 = arith.constant 0 : i32
    return %arg0, %arg2 : i32, i32
  }
  func.func @transform_1(%arg0: i32, %arg1: i32, %arg2: i32) -> (i32, i32) {
    %c0_i32 = arith.constant 0 : i32
    return %arg2, %arg1 : i32, i32
  }
  func.func @transform_2(%arg0: i32, %arg1: i32, %arg2: i32) -> (i32, i32) {
    %c0_i32 = arith.constant 0 : i32
    %c0_i32_0 = arith.constant 0 : i32
    return %c0_i32, %arg1 : i32, i32
  }
  func.func @transform_3(%arg0: i32, %arg1: i32, %arg2: i32) -> (i32, i32) {
    %c0_i32 = arith.constant 0 : i32
    return %arg0, %arg1 : i32, i32
  }
}

module attributes {stable_mosaic.version = 11 : i64} {
  func.func @_rope_proj_kernel(%arg0: i32, %arg1: i32, %arg2: memref<1x8x32xf32, #tpu.memory_space<vmem>>, %arg3: memref<32x16xf32, #tpu.memory_space<vmem>>, %arg4: memref<1x16xf32, #tpu.memory_space<vmem>>, %arg5: memref<16x32xf32, #tpu.memory_space<vmem>>, %arg6: memref<1x32xf32, #tpu.memory_space<vmem>>, %arg7: memref<16x32xf32, #tpu.memory_space<vmem>>, %arg8: memref<1x32xf32, #tpu.memory_space<vmem>>, %arg9: memref<8x32xf32, #tpu.memory_space<vmem>>, %arg10: memref<8x32xf32, #tpu.memory_space<vmem>>, %arg11: memref<1x8x32xf32, #tpu.memory_space<vmem>>) attributes {dimension_semantics = [#tpu.dimension_semantics<parallel>, #tpu.dimension_semantics<parallel>], iteration_bounds = array<i64: 2, 1>, scalar_prefetch = 0 : i64, scratch_operands = 0 : i64, tpu.core_type = #tpu.core_type<tc>, window_params = [{transform_indices = @transform_0, window_bounds = array<i64: 1, 8, 32>}, {pipeline_mode = #tpu.pipeline_mode<synchronous>, transform_indices = @transform_1, window_bounds = array<i64: 32, 16>}, {pipeline_mode = #tpu.pipeline_mode<synchronous>, transform_indices = @transform_2, window_bounds = array<i64: 1, 16>}, {pipeline_mode = #tpu.pipeline_mode<synchronous>, transform_indices = @transform_3, window_bounds = array<i64: 16, 32>}, {pipeline_mode = #tpu.pipeline_mode<synchronous>, transform_indices = @transform_4, window_bounds = array<i64: 1, 32>}, {pipeline_mode = #tpu.pipeline_mode<synchronous>, transform_indices = @transform_5, window_bounds = array<i64: 16, 32>}, {pipeline_mode = #tpu.pipeline_mode<synchronous>, transform_indices = @transform_6, window_bounds = array<i64: 1, 32>}, {transform_indices = @transform_7, window_bounds = array<i64: 8, 32>}, {transform_indices = @transform_8, window_bounds = array<i64: 8, 32>}, {transform_indices = @transform_9, window_bounds = array<i64: 1, 8, 32>}]} {
    %c0 = arith.constant 0 : index
    %c0_0 = arith.constant 0 : index
    %c0_1 = arith.constant 0 : index
    %0 = vector.load %arg2[%c0, %c0_0, %c0_1] : memref<1x8x32xf32, #tpu.memory_space<vmem>>, vector<1x8x32xf32>
    %1 = vector.shape_cast %0 : vector<1x8x32xf32> to vector<8x32xf32>
    %c0_2 = arith.constant 0 : index
    %c0_3 = arith.constant 0 : index
    %2 = vector.load %arg3[%c0_2, %c0_3] : memref<32x16xf32, #tpu.memory_space<vmem>>, vector<32x16xf32>
    %cst = arith.constant dense<0.000000e+00> : vector<8x16xf32>
    %3 = tpu.matmul %1, %2, %cst {dimension_numbers = #tpu.dot_dimension_numbers<[1], [0], [0], [1], [0, 0, 1, 1], [], []>} : vector<8x32xf32>, vector<32x16xf32>, vector<8x16xf32> -> vector<8x16xf32>
    %c0_4 = arith.constant 0 : index
    %c0_5 = arith.constant 0 : index
    %4 = vector.load %arg4[%c0_4, %c0_5] : memref<1x16xf32, #tpu.memory_space<vmem>>, vector<1x16xf32>
    %5 = vector.broadcast %4 : vector<1x16xf32> to vector<8x16xf32>
    %6 = arith.addf %3, %5 : vector<8x16xf32>
    %c0_6 = arith.constant 0 : index
    %c0_7 = arith.constant 0 : index
    %7 = vector.load %arg5[%c0_6, %c0_7] : memref<16x32xf32, #tpu.memory_space<vmem>>, vector<16x32xf32>
    %cst_8 = arith.constant dense<0.000000e+00> : vector<8x32xf32>
    %8 = tpu.matmul %6, %7, %cst_8 {dimension_numbers = #tpu.dot_dimension_numbers<[1], [0], [0], [1], [0, 0, 1, 1], [], []>} : vector<8x16xf32>, vector<16x32xf32>, vector<8x32xf32> -> vector<8x32xf32>
    %c0_9 = arith.constant 0 : index
    %c0_10 = arith.constant 0 : index
    %9 = vector.load %arg6[%c0_9, %c0_10] : memref<1x32xf32, #tpu.memory_space<vmem>>, vector<1x32xf32>
    %10 = vector.broadcast %9 : vector<1x32xf32> to vector<8x32xf32>
    %11 = arith.addf %8, %10 : vector<8x32xf32>
    %c0_11 = arith.constant 0 : index
    %c0_12 = arith.constant 0 : index
    %12 = vector.load %arg7[%c0_11, %c0_12] : memref<16x32xf32, #tpu.memory_space<vmem>>, vector<16x32xf32>
    %cst_13 = arith.constant dense<0.000000e+00> : vector<8x32xf32>
    %13 = tpu.matmul %6, %12, %cst_13 {dimension_numbers = #tpu.dot_dimension_numbers<[1], [0], [0], [1], [0, 0, 1, 1], [], []>} : vector<8x16xf32>, vector<16x32xf32>, vector<8x32xf32> -> vector<8x32xf32>
    %c0_14 = arith.constant 0 : index
    %c0_15 = arith.constant 0 : index
    %14 = vector.load %arg8[%c0_14, %c0_15] : memref<1x32xf32, #tpu.memory_space<vmem>>, vector<1x32xf32>
    %15 = vector.broadcast %14 : vector<1x32xf32> to vector<8x32xf32>
    %16 = arith.addf %13, %15 : vector<8x32xf32>
    %c0_16 = arith.constant 0 : index
    %c0_17 = arith.constant 0 : index
    %17 = vector.load %arg9[%c0_16, %c0_17] : memref<8x32xf32, #tpu.memory_space<vmem>>, vector<8x32xf32>
    %18 = arith.mulf %11, %17 : vector<8x32xf32>
    %c0_18 = arith.constant 0 : index
    %c0_19 = arith.constant 0 : index
    %19 = vector.load %arg10[%c0_18, %c0_19] : memref<8x32xf32, #tpu.memory_space<vmem>>, vector<8x32xf32>
    %20 = arith.mulf %16, %19 : vector<8x32xf32>
    %21 = arith.addf %18, %20 : vector<8x32xf32>
    %c0_20 = arith.constant 0 : index
    %c0_21 = arith.constant 0 : index
    %c0_22 = arith.constant 0 : index
    %22 = vector.load %arg11[%c0_20, %c0_21, %c0_22] : memref<1x8x32xf32, #tpu.memory_space<vmem>>, vector<1x8x32xf32>
    %23 = vector.shape_cast %22 : vector<1x8x32xf32> to vector<8x32xf32>
    %24 = vector.shape_cast %21 : vector<8x32xf32> to vector<1x8x32xf32>
    tpu.vector_store %arg11[%c0_20, %c0_21, %c0_22], %24 {strides = array<i32>} : memref<1x8x32xf32, #tpu.memory_space<vmem>>, vector<1x8x32xf32>,
    return
  }
  func.func @transform_0(%arg0: i32, %arg1: i32) -> (i32, i32, i32) {
    %c0_i32 = arith.constant 0 : i32
    %c0_i32_0 = arith.constant 0 : i32
    return %arg0, %arg1, %c0_i32 : i32, i32, i32
  }
  func.func @transform_1(%arg0: i32, %arg1: i32) -> (i32, i32) {
    %c0_i32 = arith.constant 0 : i32
    %c0_i32_0 = arith.constant 0 : i32
    %c0_i32_1 = arith.constant 0 : i32
    return %c0_i32, %c0_i32_0 : i32, i32
  }
  func.func @transform_2(%arg0: i32, %arg1: i32) -> (i32, i32) {
    %c0_i32 = arith.constant 0 : i32
    %c0_i32_0 = arith.constant 0 : i32
    %c0_i32_1 = arith.constant 0 : i32
    return %c0_i32, %c0_i32_0 : i32, i32
  }
  func.func @transform_3(%arg0: i32, %arg1: i32) -> (i32, i32) {
    %c0_i32 = arith.constant 0 : i32
    %c0_i32_0 = arith.constant 0 : i32
    %c0_i32_1 = arith.constant 0 : i32
    return %c0_i32, %c0_i32_0 : i32, i32
  }
  func.func @transform_4(%arg0: i32, %arg1: i32) -> (i32, i32) {
    %c0_i32 = arith.constant 0 : i32
    %c0_i32_0 = arith.constant 0 : i32
    %c0_i32_1 = arith.constant 0 : i32
    return %c0_i32, %c0_i32_0 : i32, i32
  }
  func.func @transform_5(%arg0: i32, %arg1: i32) -> (i32, i32) {
    %c0_i32 = arith.constant 0 : i32
    %c0_i32_0 = arith.constant 0 : i32
    %c0_i32_1 = arith.constant 0 : i32
    return %c0_i32, %c0_i32_0 : i32, i32
  }
  func.func @transform_6(%arg0: i32, %arg1: i32) -> (i32, i32) {
    %c0_i32 = arith.constant 0 : i32
    %c0_i32_0 = arith.constant 0 : i32
    %c0_i32_1 = arith.constant 0 : i32
    return %c0_i32, %c0_i32_0 : i32, i32
  }
  func.func @transform_7(%arg0: i32, %arg1: i32) -> (i32, i32) {
    %c0_i32 = arith.constant 0 : i32
    %c0_i32_0 = arith.constant 0 : i32
    return %arg1, %c0_i32 : i32, i32
  }
  func.func @transform_8(%arg0: i32, %arg1: i32) -> (i32, i32) {
    %c0_i32 = arith.constant 0 : i32
    %c0_i32_0 = arith.constant 0 : i32
    return %arg1, %c0_i32 : i32, i32
  }
  func.func @transform_9(%arg0: i32, %arg1: i32) -> (i32, i32, i32) {
    %c0_i32 = arith.constant 0 : i32
    %c0_i32_0 = arith.constant 0 : i32
    return %arg0, %arg1, %c0_i32 : i32, i32, i32
  }
}

module attributes {stable_mosaic.version = 11 : i64} {
  func.func @_attn_kernel(%arg0: i32, %arg1: i32, %arg2: memref<1x8x2x16xf32, #tpu.memory_space<vmem>>, %arg3: memref<1x8x2x16xf32, #tpu.memory_space<vmem>>, %arg4: memref<1x8x2x16xf32, #tpu.memory_space<vmem>>, %arg5: memref<1x8x2x16xf32, #tpu.memory_space<vmem>>, %arg6: memref<1x8x1x2x8xf32, #tpu.memory_space<vmem>>, %arg7: memref<1x8x1x2x8xf32, #tpu.memory_space<vmem>>, %arg8: memref<1x4x8x8xf32, #tpu.memory_space<vmem>>, %arg9: memref<1x4x8x8xf32, #tpu.memory_space<vmem>>) attributes {dimension_semantics = [#tpu.dimension_semantics<parallel>, #tpu.dimension_semantics<parallel>], iteration_bounds = array<i64: 2, 1>, scalar_prefetch = 0 : i64, scratch_operands = 0 : i64, tpu.core_type = #tpu.core_type<tc>, window_params = [{transform_indices = @transform_0, window_bounds = array<i64: 1, 8, 2, 16>}, {transform_indices = @transform_1, window_bounds = array<i64: 1, 8, 2, 16>}, {transform_indices = @transform_2, window_bounds = array<i64: 1, 8, 2, 16>}, {transform_indices = @transform_3, window_bounds = array<i64: 1, 8, 2, 16>}, {transform_indices = @transform_4, window_bounds = array<i64: 1, 8, 1, 2, 8>}, {transform_indices = @transform_5, window_bounds = array<i64: 1, 8, 1, 2, 8>}, {transform_indices = @transform_6, window_bounds = array<i64: 1, 4, 8, 8>}, {transform_indices = @transform_7, window_bounds = array<i64: 1, 4, 8, 8>}]} {
    %c0 = arith.constant 0 : index
    %c0_0 = arith.constant 0 : index
    %c0_1 = arith.constant 0 : index
    %c0_2 = arith.constant 0 : index
    %0 = vector.load %arg2[%c0, %c0_0, %c0_1, %c0_2] : memref<1x8x2x16xf32, #tpu.memory_space<vmem>>, vector<1x8x2x16xf32>
    %1 = vector.shape_cast %0 : vector<1x8x2x16xf32> to vector<8x2x16xf32>
    %c0_3 = arith.constant 0 : index
    %c0_4 = arith.constant 0 : index
    %c0_5 = arith.constant 0 : index
    %c0_6 = arith.constant 0 : index
    %2 = vector.load %arg4[%c0_3, %c0_4, %c0_5, %c0_6] : memref<1x8x2x16xf32, #tpu.memory_space<vmem>>, vector<1x8x2x16xf32>
    %3 = vector.shape_cast %2 : vector<1x8x2x16xf32> to vector<8x2x16xf32>
    %c0_7 = arith.constant 0 : index
    %c0_8 = arith.constant 0 : index
    %c0_9 = arith.constant 0 : index
    %c0_10 = arith.constant 0 : index
    %c0_11 = arith.constant 0 : index
    %4 = vector.load %arg6[%c0_7, %c0_8, %c0_9, %c0_10, %c0_11] : memref<1x8x1x2x8xf32, #tpu.memory_space<vmem>>, vector<1x8x1x2x8xf32>
    %5 = vector.shape_cast %4 : vector<1x8x1x2x8xf32> to vector<8x2x8xf32>
    "tpu.trace_start"() <{level = 10 : i32, message = "qhd,khd->hqk"}> : () -> ()
    %cst = arith.constant dense<0.000000e+00> : vector<2x8x8xf32>
    %6 = tpu.matmul %1, %3, %cst {dimension_numbers = #tpu.dot_dimension_numbers<[2], [2], [0], [0], [0, 1, 0, 0, 1, 0], [1], [1]>} : vector<8x2x16xf32>, vector<8x2x16xf32>, vector<2x8x8xf32> -> vector<2x8x8xf32>
    "tpu.trace_stop"() : () -> ()
    %cst_12 = arith.constant 0.353553385 : f32
    %7 = vector.broadcast %cst_12 : f32 to vector<2x8x8xf32>
    %8 = arith.mulf %6, %7 : vector<2x8x8xf32>
    %cst_13 = arith.constant dense<0xFF800000> : vector<2x8xf32>
    %9 = vector.multi_reduction <maximumf>, %8, %cst_13 [2] : vector<2x8x8xf32> to vector<2x8xf32>
    %10 = vector.shape_cast %9 : vector<2x8xf32> to vector<2x8x1xf32>
    %11 = vector.broadcast %10 : vector<2x8x1xf32> to vector<2x8x8xf32>
    %12 = arith.subf %8, %11 : vector<2x8x8xf32>
    %13 = math.exp %12 : vector<2x8x8xf32>
    %cst_14 = arith.constant dense<0.000000e+00> : vector<2x8xf32>
    %14 = vector.multi_reduction <add>, %13, %cst_14 [2] : vector<2x8x8xf32> to vector<2x8xf32>
    %15 = vector.shape_cast %14 : vector<2x8xf32> to vector<2x8x1xf32>
    %16 = tpu.reciprocal %15 {approx = true} : vector<2x8x1xf32> -> vector<2x8x1xf32>
    %17 = vector.broadcast %16 : vector<2x8x1xf32> to vector<2x8x8xf32>
    %18 = arith.mulf %13, %17 : vector<2x8x8xf32>
    "tpu.trace_start"() <{level = 10 : i32, message = "hqk,khd->hqd"}> : () -> ()
    %cst_15 = arith.constant dense<0.000000e+00> : vector<2x8x8xf32>
    %19 = tpu.matmul %18, %5, %cst_15 {dimension_numbers = #tpu.dot_dimension_numbers<[2], [0], [1], [2], [0, 0, 0, 1, 1, 2], [0], [1]>} : vector<2x8x8xf32>, vector<8x2x8xf32>, vector<2x8x8xf32> -> vector<2x8x8xf32>
    "tpu.trace_stop"() : () -> ()
    %c0_16 = arith.constant 0 : index
    %c0_17 = arith.constant 0 : index
    %c0_18 = arith.constant 0 : index
    %c0_19 = arith.constant 0 : index
    %20 = vector.load %arg3[%c0_16, %c0_17, %c0_18, %c0_19] : memref<1x8x2x16xf32, #tpu.memory_space<vmem>>, vector<1x8x2x16xf32>
    %21 = vector.shape_cast %20 : vector<1x8x2x16xf32> to vector<8x2x16xf32>
    %c0_20 = arith.constant 0 : index
    %c0_21 = arith.constant 0 : index
    %c0_22 = arith.constant 0 : index
    %c0_23 = arith.constant 0 : index
    %22 = vector.load %arg5[%c0_20, %c0_21, %c0_22, %c0_23] : memref<1x8x2x16xf32, #tpu.memory_space<vmem>>, vector<1x8x2x16xf32>
    %23 = vector.shape_cast %22 : vector<1x8x2x16xf32> to vector<8x2x16xf32>
    %c0_24 = arith.constant 0 : index
    %c0_25 = arith.constant 0 : index
    %c0_26 = arith.constant 0 : index
    %c0_27 = arith.constant 0 : index
    %c0_28 = arith.constant 0 : index
    %24 = vector.load %arg7[%c0_24, %c0_25, %c0_26, %c0_27, %c0_28] : memref<1x8x1x2x8xf32, #tpu.memory_space<vmem>>, vector<1x8x1x2x8xf32>
    %25 = vector.shape_cast %24 : vector<1x8x1x2x8xf32> to vector<8x2x8xf32>
    "tpu.trace_start"() <{level = 10 : i32, message = "qhd,khd->hqk"}> : () -> ()
    %cst_29 = arith.constant dense<0.000000e+00> : vector<2x8x8xf32>
    %26 = tpu.matmul %21, %23, %cst_29 {dimension_numbers = #tpu.dot_dimension_numbers<[2], [2], [0], [0], [0, 1, 0, 0, 1, 0], [1], [1]>} : vector<8x2x16xf32>, vector<8x2x16xf32>, vector<2x8x8xf32> -> vector<2x8x8xf32>
    "tpu.trace_stop"() : () -> ()
    %cst_30 = arith.constant 0.353553385 : f32
    %27 = vector.broadcast %cst_30 : f32 to vector<2x8x8xf32>
    %28 = arith.mulf %26, %27 : vector<2x8x8xf32>
    %cst_31 = arith.constant dense<0xFF800000> : vector<2x8xf32>
    %29 = vector.multi_reduction <maximumf>, %28, %cst_31 [2] : vector<2x8x8xf32> to vector<2x8xf32>
    %30 = vector.shape_cast %29 : vector<2x8xf32> to vector<2x8x1xf32>
    %31 = vector.broadcast %30 : vector<2x8x1xf32> to vector<2x8x8xf32>
    %32 = arith.subf %28, %31 : vector<2x8x8xf32>
    %33 = math.exp %32 : vector<2x8x8xf32>
    %cst_32 = arith.constant dense<0.000000e+00> : vector<2x8xf32>
    %34 = vector.multi_reduction <add>, %33, %cst_32 [2] : vector<2x8x8xf32> to vector<2x8xf32>
    %35 = vector.shape_cast %34 : vector<2x8xf32> to vector<2x8x1xf32>
    %36 = tpu.reciprocal %35 {approx = true} : vector<2x8x1xf32> -> vector<2x8x1xf32>
    %37 = vector.broadcast %36 : vector<2x8x1xf32> to vector<2x8x8xf32>
    %38 = arith.mulf %33, %37 : vector<2x8x8xf32>
    "tpu.trace_start"() <{level = 10 : i32, message = "hqk,khd->hqd"}> : () -> ()
    %cst_33 = arith.constant dense<0.000000e+00> : vector<2x8x8xf32>
    %39 = tpu.matmul %38, %25, %cst_33 {dimension_numbers = #tpu.dot_dimension_numbers<[2], [0], [1], [2], [0, 0, 0, 1, 1, 2], [0], [1]>} : vector<2x8x8xf32>, vector<8x2x8xf32>, vector<2x8x8xf32> -> vector<2x8x8xf32>
    "tpu.trace_stop"() : () -> ()
    %c0_34 = arith.constant 0 : index
    %c0_35 = arith.constant 0 : index
    %c0_36 = arith.constant 0 : index
    %c0_37 = arith.constant 0 : index
    %40 = vector.load %arg9[%c0_34, %c0_35, %c0_36, %c0_37] : memref<1x4x8x8xf32, #tpu.memory_space<vmem>>, vector<1x2x8x8xf32>
    %41 = vector.shape_cast %40 : vector<1x2x8x8xf32> to vector<2x8x8xf32>
    %42 = vector.shape_cast %18 : vector<2x8x8xf32> to vector<1x2x8x8xf32>
    tpu.vector_store %arg9[%c0_34, %c0_35, %c0_36, %c0_37], %42 {strides = array<i32>} : memref<1x4x8x8xf32, #tpu.memory_space<vmem>>, vector<1x2x8x8xf32>,
    %c0_38 = arith.constant 0 : index
    %c2 = arith.constant 2 : index
    %c0_39 = arith.constant 0 : index
    %c0_40 = arith.constant 0 : index
    %43 = vector.load %arg9[%c0_38, %c2, %c0_39, %c0_40] : memref<1x4x8x8xf32, #tpu.memory_space<vmem>>, vector<1x2x8x8xf32>
    %44 = vector.shape_cast %43 : vector<1x2x8x8xf32> to vector<2x8x8xf32>
    %45 = vector.shape_cast %38 : vector<2x8x8xf32> to vector<1x2x8x8xf32>
    tpu.vector_store %arg9[%c0_38, %c2, %c0_39, %c0_40], %45 {strides = array<i32>} : memref<1x4x8x8xf32, #tpu.memory_space<vmem>>, vector<1x2x8x8xf32>,
    %c0_41 = arith.constant 0 : index
    %c0_42 = arith.constant 0 : index
    %c0_43 = arith.constant 0 : index
    %c0_44 = arith.constant 0 : index
    %46 = vector.load %arg8[%c0_41, %c0_42, %c0_43, %c0_44] : memref<1x4x8x8xf32, #tpu.memory_space<vmem>>, vector<1x2x8x8xf32>
    %47 = vector.shape_cast %46 : vector<1x2x8x8xf32> to vector<2x8x8xf32>
    %48 = vector.shape_cast %19 : vector<2x8x8xf32> to vector<1x2x8x8xf32>
    tpu.vector_store %arg8[%c0_41, %c0_42, %c0_43, %c0_44], %48 {strides = array<i32>} : memref<1x4x8x8xf32, #tpu.memory_space<vmem>>, vector<1x2x8x8xf32>,
    %c0_45 = arith.constant 0 : index
    %c2_46 = arith.constant 2 : index
    %c0_47 = arith.constant 0 : index
    %c0_48 = arith.constant 0 : index
    %49 = vector.load %arg8[%c0_45, %c2_46, %c0_47, %c0_48] : memref<1x4x8x8xf32, #tpu.memory_space<vmem>>, vector<1x2x8x8xf32>
    %50 = vector.shape_cast %49 : vector<1x2x8x8xf32> to vector<2x8x8xf32>
    %51 = vector.shape_cast %39 : vector<2x8x8xf32> to vector<1x2x8x8xf32>
    tpu.vector_store %arg8[%c0_45, %c2_46, %c0_47, %c0_48], %51 {strides = array<i32>} : memref<1x4x8x8xf32, #tpu.memory_space<vmem>>, vector<1x2x8x8xf32>,
    return
  }
  func.func @transform_0(%arg0: i32, %arg1: i32) -> (i32, i32, i32, i32) {
    %c0_i32 = arith.constant 0 : i32
    %c0_i32_0 = arith.constant 0 : i32
    %c0_i32_1 = arith.constant 0 : i32
    return %arg0, %arg1, %c0_i32, %c0_i32_0 : i32, i32, i32, i32
  }
  func.func @transform_1(%arg0: i32, %arg1: i32) -> (i32, i32, i32, i32) {
    %c0_i32 = arith.constant 0 : i32
    %c0_i32_0 = arith.constant 0 : i32
    %c0_i32_1 = arith.constant 0 : i32
    return %arg0, %arg1, %c0_i32, %c0_i32_0 : i32, i32, i32, i32
  }
  func.func @transform_2(%arg0: i32, %arg1: i32) -> (i32, i32, i32, i32) {
    %c0_i32 = arith.constant 0 : i32
    %c0_i32_0 = arith.constant 0 : i32
    %c0_i32_1 = arith.constant 0 : i32
    %c0_i32_2 = arith.constant 0 : i32
    return %arg0, %c0_i32, %c0_i32_0, %c0_i32_1 : i32, i32, i32, i32
  }
  func.func @transform_3(%arg0: i32, %arg1: i32) -> (i32, i32, i32, i32) {
    %c0_i32 = arith.constant 0 : i32
    %c0_i32_0 = arith.constant 0 : i32
    %c0_i32_1 = arith.constant 0 : i32
    %c0_i32_2 = arith.constant 0 : i32
    return %arg0, %c0_i32, %c0_i32_0, %c0_i32_1 : i32, i32, i32, i32
  }
  func.func @transform_4(%arg0: i32, %arg1: i32) -> (i32, i32, i32, i32, i32) {
    %c0_i32 = arith.constant 0 : i32
    %c0_i32_0 = arith.constant 0 : i32
    %c0_i32_1 = arith.constant 0 : i32
    %c0_i32_2 = arith.constant 0 : i32
    %c0_i32_3 = arith.constant 0 : i32
    return %arg0, %c0_i32, %c0_i32_0, %c0_i32_1, %c0_i32_2 : i32, i32, i32, i32, i32
  }
  func.func @transform_5(%arg0: i32, %arg1: i32) -> (i32, i32, i32, i32, i32) {
    %c0_i32 = arith.constant 0 : i32
    %c1_i32 = arith.constant 1 : i32
    %c0_i32_0 = arith.constant 0 : i32
    %c0_i32_1 = arith.constant 0 : i32
    %c0_i32_2 = arith.constant 0 : i32
    return %arg0, %c0_i32, %c1_i32, %c0_i32_0, %c0_i32_1 : i32, i32, i32, i32, i32
  }
  func.func @transform_6(%arg0: i32, %arg1: i32) -> (i32, i32, i32, i32) {
    %c0_i32 = arith.constant 0 : i32
    %c0_i32_0 = arith.constant 0 : i32
    %c0_i32_1 = arith.constant 0 : i32
    return %arg0, %c0_i32, %arg1, %c0_i32_0 : i32, i32, i32, i32
  }
  func.func @transform_7(%arg0: i32, %arg1: i32) -> (i32, i32, i32, i32) {
    %c0_i32 = arith.constant 0 : i32
    %c0_i32_0 = arith.constant 0 : i32
    %c0_i32_1 = arith.constant 0 : i32
    return %arg0, %c0_i32, %arg1, %c0_i32_0 : i32, i32, i32, i32
  }
}

module attributes {stable_mosaic.version = 11 : i64} {
  func.func @_out_proj_kernel(%arg0: i32, %arg1: i32, %arg2: i32, %arg3: memref<1x1x8x8xf32, #tpu.memory_space<vmem>>, %arg4: memref<1x8x32xf32, #tpu.memory_space<vmem>>, %arg5: memref<1x32xf32, #tpu.memory_space<vmem>>, %arg6: memref<1x8x32xf32, #tpu.memory_space<vmem>>, %arg7: memref<8x32xf32, #tpu.memory_space<vmem>>) attributes {dimension_semantics = [#tpu.dimension_semantics<parallel>, #tpu.dimension_semantics<parallel>, #tpu.dimension_semantics<arbitrary>], iteration_bounds = array<i64: 2, 1, 4>, scalar_prefetch = 0 : i64, scratch_operands = 1 : i64, tpu.core_type = #tpu.core_type<tc>, window_params = [{transform_indices = @transform_0, window_bounds = array<i64: 1, 1, 8, 8>}, {transform_indices = @transform_1, window_bounds = array<i64: 1, 8, 32>}, {pipeline_mode = #tpu.pipeline_mode<synchronous>, transform_indices = @transform_2, window_bounds = array<i64: 1, 32>}, {transform_indices = @transform_3, window_bounds = array<i64: 1, 8, 32>}]} {
    %c0_i32 = arith.constant 0 : i32
    %0 = arith.cmpi eq, %arg2, %c0_i32 : i32
    %1 = arith.extui %0 : i1 to i32
    %c0_i32_0 = arith.constant 0 : i32
    %2 = arith.cmpi ne, %1, %c0_i32_0 : i32
    scf.if %2 {
      %cst_12 = arith.constant 0.000000e+00 : f32
      %14 = vector.broadcast %cst_12 : f32 to vector<8x32xf32>
      %c0_13 = arith.constant 0 : index
      %c0_14 = arith.constant 0 : index
      %15 = vector.load %arg7[%c0_13, %c0_14] : memref<8x32xf32, #tpu.memory_space<vmem>>, vector<8x32xf32>
      tpu.vector_store %arg7[%c0_13, %c0_14], %14 {strides = array<i32>} : memref<8x32xf32, #tpu.memory_space<vmem>>, vector<8x32xf32>,
    } else {
    }
    %c0 = arith.constant 0 : index
    %c0_1 = arith.constant 0 : index
    %3 = vector.load %arg7[%c0, %c0_1] : memref<8x32xf32, #tpu.memory_space<vmem>>, vector<8x32xf32>
    %c0_2 = arith.constant 0 : index
    %c0_3 = arith.constant 0 : index
    %c0_4 = arith.constant 0 : index
    %c0_5 = arith.constant 0 : index
    %4 = vector.load %arg3[%c0_2, %c0_3, %c0_4, %c0_5] : memref<1x1x8x8xf32, #tpu.memory_space<vmem>>, vector<1x1x8x8xf32>
    %5 = vector.shape_cast %4 : vector<1x1x8x8xf32> to vector<8x8xf32>
    %c0_6 = arith.constant 0 : index
    %c0_7 = arith.constant 0 : index
    %c0_8 = arith.constant 0 : index
    %6 = vector.load %arg4[%c0_6, %c0_7, %c0_8] : memref<1x8x32xf32, #tpu.memory_space<vmem>>, vector<1x8x32xf32>
    %7 = vector.shape_cast %6 : vector<1x8x32xf32> to vector<8x32xf32>
    %cst = arith.constant dense<0.000000e+00> : vector<8x32xf32>
    %8 = tpu.matmul %5, %7, %cst {dimension_numbers = #tpu.dot_dimension_numbers<[1], [0], [0], [1], [0, 0, 1, 1], [], []>} : vector<8x8xf32>, vector<8x32xf32>, vector<8x32xf32> -> vector<8x32xf32>
    %9 = arith.addf %3, %8 : vector<8x32xf32>
    %c0_9 = arith.constant 0 : index
    %c0_10 = arith.constant 0 : index
    %10 = vector.load %arg7[%c0_9, %c0_10] : memref<8x32xf32, #tpu.memory_space<vmem>>, vector<8x32xf32>
    tpu.vector_store %arg7[%c0_9, %c0_10], %9 {strides = array<i32>} : memref<8x32xf32, #tpu.memory_space<vmem>>, vector<8x32xf32>,
    %c3_i32 = arith.constant 3 : i32
    %11 = arith.cmpi eq, %arg2, %c3_i32 : i32
    %12 = arith.extui %11 : i1 to i32
    %c0_i32_11 = arith.constant 0 : i32
    %13 = arith.cmpi ne, %12, %c0_i32_11 : i32
    scf.if %13 {
      %c0_12 = arith.constant 0 : index
      %c0_13 = arith.constant 0 : index
      %14 = vector.load %arg7[%c0_12, %c0_13] : memref<8x32xf32, #tpu.memory_space<vmem>>, vector<8x32xf32>
      %c0_14 = arith.constant 0 : index
      %c0_15 = arith.constant 0 : index
      %15 = vector.load %arg5[%c0_14, %c0_15] : memref<1x32xf32, #tpu.memory_space<vmem>>, vector<1x32xf32>
      %16 = vector.broadcast %15 : vector<1x32xf32> to vector<8x32xf32>
      %17 = arith.addf %14, %16 : vector<8x32xf32>
      %c0_16 = arith.constant 0 : index
      %c0_17 = arith.constant 0 : index
      %c0_18 = arith.constant 0 : index
      %18 = vector.load %arg6[%c0_16, %c0_17, %c0_18] : memref<1x8x32xf32, #tpu.memory_space<vmem>>, vector<1x8x32xf32>
      %19 = vector.shape_cast %18 : vector<1x8x32xf32> to vector<8x32xf32>
      %20 = vector.shape_cast %17 : vector<8x32xf32> to vector<1x8x32xf32>
      tpu.vector_store %arg6[%c0_16, %c0_17, %c0_18], %20 {strides = array<i32>} : memref<1x8x32xf32, #tpu.memory_space<vmem>>, vector<1x8x32xf32>,
    } else {
    }
    return
  }
  func.func @transform_0(%arg0: i32, %arg1: i32, %arg2: i32) -> (i32, i32, i32, i32) {
    %c0_i32 = arith.constant 0 : i32
    %c0_i32_0 = arith.constant 0 : i32
    return %arg0, %arg2, %arg1, %c0_i32 : i32, i32, i32, i32
  }
  func.func @transform_1(%arg0: i32, %arg1: i32, %arg2: i32) -> (i32, i32, i32) {
    %c0_i32 = arith.constant 0 : i32
    %c0_i32_0 = arith.constant 0 : i32
    %c0_i32_1 = arith.constant 0 : i32
    return %arg2, %c0_i32, %c0_i32_0 : i32, i32, i32
  }
  func.func @transform_2(%arg0: i32, %arg1: i32, %arg2: i32) -> (i32, i32) {
    %c0_i32 = arith.constant 0 : i32
    %c0_i32_0 = arith.constant 0 : i32
    %c0_i32_1 = arith.constant 0 : i32
    return %c0_i32, %c0_i32_0 : i32, i32
  }
  func.func @transform_3(%arg0: i32, %arg1: i32, %arg2: i32) -> (i32, i32, i32) {
    %c0_i32 = arith.constant 0 : i32
    %c0_i32_0 = arith.constant 0 : i32
    return %arg0, %arg1, %c0_i32 : i32, i32, i32
  }
}

module attributes {stable_mosaic.version = 11 : i64} {
  func.func @_dual_linear_kernel(%arg0: i32, %arg1: i32, %arg2: memref<1x8x32xf32, #tpu.memory_space<vmem>>, %arg3: memref<1x8x32xf32, #tpu.memory_space<vmem>>, %arg4: memref<32x16xf32, #tpu.memory_space<vmem>>, %arg5: memref<32x16xf32, #tpu.memory_space<vmem>>, %arg6: memref<1x16xf32, #tpu.memory_space<vmem>>, %arg7: memref<1x8x16xf32, #tpu.memory_space<vmem>>) attributes {dimension_semantics = [#tpu.dimension_semantics<parallel>, #tpu.dimension_semantics<parallel>], iteration_bounds = array<i64: 2, 1>, scalar_prefetch = 0 : i64, scratch_operands = 0 : i64, tpu.core_type = #tpu.core_type<tc>, window_params = [{transform_indices = @transform_0, window_bounds = array<i64: 1, 8, 32>}, {transform_indices = @transform_1, window_bounds = array<i64: 1, 8, 32>}, {pipeline_mode = #tpu.pipeline_mode<synchronous>, transform_indices = @transform_2, window_bounds = array<i64: 32, 16>}, {pipeline_mode = #tpu.pipeline_mode<synchronous>, transform_indices = @transform_3, window_bounds = array<i64: 32, 16>}, {pipeline_mode = #tpu.pipeline_mode<synchronous>, transform_indices = @transform_4, window_bounds = array<i64: 1, 16>}, {transform_indices = @transform_5, window_bounds = array<i64: 1, 8, 16>}]} {
    %c0 = arith.constant 0 : index
    %c0_0 = arith.constant 0 : index
    %c0_1 = arith.constant 0 : index
    %0 = vector.load %arg2[%c0, %c0_0, %c0_1] : memref<1x8x32xf32, #tpu.memory_space<vmem>>, vector<1x8x32xf32>
    %1 = vector.shape_cast %0 : vector<1x8x32xf32> to vector<8x32xf32>
    %c0_2 = arith.constant 0 : index
    %c0_3 = arith.constant 0 : index
    %2 = vector.load %arg4[%c0_2, %c0_3] : memref<32x16xf32, #tpu.memory_space<vmem>>, vector<32x16xf32>
    %cst = arith.constant dense<0.000000e+00> : vector<8x16xf32>
    %3 = tpu.matmul %1, %2, %cst {dimension_numbers = #tpu.dot_dimension_numbers<[1], [0], [0], [1], [0, 0, 1, 1], [], []>} : vector<8x32xf32>, vector<32x16xf32>, vector<8x16xf32> -> vector<8x16xf32>
    %c0_4 = arith.constant 0 : index
    %c0_5 = arith.constant 0 : index
    %c0_6 = arith.constant 0 : index
    %4 = vector.load %arg3[%c0_4, %c0_5, %c0_6] : memref<1x8x32xf32, #tpu.memory_space<vmem>>, vector<1x8x32xf32>
    %5 = vector.shape_cast %4 : vector<1x8x32xf32> to vector<8x32xf32>
    %c0_7 = arith.constant 0 : index
    %c0_8 = arith.constant 0 : index
    %6 = vector.load %arg5[%c0_7, %c0_8] : memref<32x16xf32, #tpu.memory_space<vmem>>, vector<32x16xf32>
    %cst_9 = arith.constant dense<0.000000e+00> : vector<8x16xf32>
    %7 = tpu.matmul %5, %6, %cst_9 {dimension_numbers = #tpu.dot_dimension_numbers<[1], [0], [0], [1], [0, 0, 1, 1], [], []>} : vector<8x32xf32>, vector<32x16xf32>, vector<8x16xf32> -> vector<8x16xf32>
    %8 = arith.addf %3, %7 : vector<8x16xf32>
    %c0_10 = arith.constant 0 : index
    %c0_11 = arith.constant 0 : index
    %9 = vector.load %arg6[%c0_10, %c0_11] : memref<1x16xf32, #tpu.memory_space<vmem>>, vector<1x16xf32>
    %10 = vector.broadcast %9 : vector<1x16xf32> to vector<8x16xf32>
    %11 = arith.addf %8, %10 : vector<8x16xf32>
    %c0_12 = arith.constant 0 : index
    %c0_13 = arith.constant 0 : index
    %c0_14 = arith.constant 0 : index
    %12 = vector.load %arg7[%c0_12, %c0_13, %c0_14] : memref<1x8x16xf32, #tpu.memory_space<vmem>>, vector<1x8x16xf32>
    %13 = vector.shape_cast %12 : vector<1x8x16xf32> to vector<8x16xf32>
    %14 = vector.shape_cast %11 : vector<8x16xf32> to vector<1x8x16xf32>
    tpu.vector_store %arg7[%c0_12, %c0_13, %c0_14], %14 {strides = array<i32>} : memref<1x8x16xf32, #tpu.memory_space<vmem>>, vector<1x8x16xf32>,
    return
  }
  func.func @transform_0(%arg0: i32, %arg1: i32) -> (i32, i32, i32) {
    %c0_i32 = arith.constant 0 : i32
    %c0_i32_0 = arith.constant 0 : i32
    return %arg0, %arg1, %c0_i32 : i32, i32, i32
  }
  func.func @transform_1(%arg0: i32, %arg1: i32) -> (i32, i32, i32) {
    %c0_i32 = arith.constant 0 : i32
    %c0_i32_0 = arith.constant 0 : i32
    return %arg0, %arg1, %c0_i32 : i32, i32, i32
  }
  func.func @transform_2(%arg0: i32, %arg1: i32) -> (i32, i32) {
    %c0_i32 = arith.constant 0 : i32
    %c0_i32_0 = arith.constant 0 : i32
    %c0_i32_1 = arith.constant 0 : i32
    return %c0_i32, %c0_i32_0 : i32, i32
  }
  func.func @transform_3(%arg0: i32, %arg1: i32) -> (i32, i32) {
    %c0_i32 = arith.constant 0 : i32
    %c0_i32_0 = arith.constant 0 : i32
    %c0_i32_1 = arith.constant 0 : i32
    return %c0_i32, %c0_i32_0 : i32, i32
  }
  func.func @transform_4(%arg0: i32, %arg1: i32) -> (i32, i32) {
    %c0_i32 = arith.constant 0 : i32
    %c0_i32_0 = arith.constant 0 : i32
    %c0_i32_1 = arith.constant 0 : i32
    return %c0_i32, %c0_i32_0 : i32, i32
  }
  func.func @transform_5(%arg0: i32, %arg1: i32) -> (i32, i32, i32) {
    %c0_i32 = arith.constant 0 : i32
    %c0_i32_0 = arith.constant 0 : i32
    return %arg0, %arg1, %c0_i32 : i32, i32, i32
  }
}

</mosaic_0001>

<llo_original>
// kernel: tile.6
$region0: #{tile.6}
  #allocation0 [shape = 's32[1]{0}', space=sflag, size = 0x4, scoped, tag = 'scoped memory for tile.6']
  %s0 = inlined_call_operand.vmem [shape: f32[2], index: 0, kind: input, shape index: {}]
  %s1 = inlined_call_operand.vmem [shape: f32[16,2], index: 1, kind: output, shape index: {}]
  // Predicated region
  $region2: #{tile.6} parent=0 // pred_check
    _
  $region3: #{tile.6} parent=0 // pred_check_branch
    %3 = sbr.rel (0) target = $region5
  $region4: #{tile.6} parent=0 // pred_region
    _
  $region5: #{tile.6} parent=0 // pred_fallthru
    _
  %v4 = vld [vmem:[%s0] ss:$0 sm:$0xff]
  %5 = vst [vmem:[%s1] sm:$0xff] %v4
  %s6 = scalar_lea.vmem %s1, 8
  %7 = vst [vmem:[%s6] sm:$0xff] %v4

// kernel: mul.21
$region0: #{mul.21}
  %s0 = inlined_call_operand.vmem [shape: f32[16,2], index: 0, kind: input, shape index: {}]
  %s1 = inlined_call_operand.vmem [shape: f32[32], index: 1, kind: output, shape index: {}]
  $region1: #{mul.21} parent=0
    #allocation0 [shape = 'u8[4096]{0}', space=vmem, size = 0x1000, scoped, tag = 'scoped mem for output reshape']
    %v2 = vld [vmem:[%s0] sm:$0x1]
    %vm3 = vcmask 15360
    %4 = vst.msk [vmem:[#allocation0] sm:$0x1] %vm3, %v2
    %s5 = scalar_lea.vmem %s0, 15
    %v6 = vld [vmem:[%s5] sm:$0x1]
    %7 = vrot.lane.b32.xlu0 %v6, 30
    %v8 = vpop.permute.xlu0 %7
    %vm9 = vcmask 261360
    %10 = vst.msk [vmem:[#allocation0] sm:$0x1] %vm9, %v8
    %s11 = scalar_lea.vmem %s0, 14
    %v12 = vld [vmem:[%s11] sm:$0x1]
    %13 = vrot.lane.b32.xlu0 %v12, 28
    %v14 = vpop.permute.xlu0 %13
    %vm15 = vcmask 244960
    %16 = vst.msk [vmem:[#allocation0] sm:$0x1] %vm15, %v14
    %s17 = scalar_lea.vmem %s0, 13
    %v18 = vld [vmem:[%s17] sm:$0x1]
    %19 = vrot.lane.b32.xlu0 %v18, 26
    %v20 = vpop.permute.xlu0 %19
    %vm21 = vcmask 228560
    %22 = vst.msk [vmem:[#allocation0] sm:$0x1] %vm21, %v20
    %s23 = scalar_lea.vmem %s0, 12
    %v24 = vld [vmem:[%s23] sm:$0x1]
    %25 = vrot.lane.b32.xlu0 %v24, 24
    %v26 = vpop.permute.xlu0 %25
    %vm27 = vcmask 212160
    %28 = vst.msk [vmem:[#allocation0] sm:$0x1] %vm27, %v26
    %s29 = scalar_lea.vmem %s0, 11
    %v30 = vld [vmem:[%s29] sm:$0x1]
    %31 = vrot.lane.b32.xlu0 %v30, 22
    %v32 = vpop.permute.xlu0 %31
    %vm33 = vcmask 195760
    %34 = vst.msk [vmem:[#allocation0] sm:$0x1] %vm33, %v32
    %s35 = scalar_lea.vmem %s0, 10
    %v36 = vld [vmem:[%s35] sm:$0x1]
    %37 = vrot.lane.b32.xlu0 %v36, 20
    %v38 = vpop.permute.xlu0 %37
    %vm39 = vcmask 179360
    %40 = vst.msk [vmem:[#allocation0] sm:$0x1] %vm39, %v38
    %s41 = scalar_lea.vmem %s0, 9
    %v42 = vld [vmem:[%s41] sm:$0x1]
    %43 = vrot.lane.b32.xlu0 %v42, 18
    %v44 = vpop.permute.xlu0 %43
    %vm45 = vcmask 162960
    %46 = vst.msk [vmem:[#allocation0] sm:$0x1] %vm45, %v44
    %s47 = scalar_lea.vmem %s0, 8
    %v48 = vld [vmem:[%s47] sm:$0x1]
    %49 = vrot.lane.b32.xlu0 %v48, 16
    %v50 = vpop.permute.xlu0 %49
    %vm51 = vcmask 146560
    %52 = vst.msk [vmem:[#allocation0] sm:$0x1] %vm51, %v50
    %s53 = scalar_lea.vmem %s0, 7
    %v54 = vld [vmem:[%s53] sm:$0x1]
    %55 = vrot.lane.b32.xlu0 %v54, 14
    %v56 = vpop.permute.xlu0 %55
    %vm57 = vcmask 130160
    %58 = vst.msk [vmem:[#allocation0] sm:$0x1] %vm57, %v56
    %s59 = scalar_lea.vmem %s0, 6
    %v60 = vld [vmem:[%s59] sm:$0x1]
    %61 = vrot.lane.b32.xlu0 %v60, 12
    %v62 = vpop.permute.xlu0 %61
    %vm63 = vcmask 113760
    %64 = vst.msk [vmem:[#allocation0] sm:$0x1] %vm63, %v62
    %s65 = scalar_lea.vmem %s0, 5
    %v66 = vld [vmem:[%s65] sm:$0x1]
    %67 = vrot.lane.b32.xlu0 %v66, 10
    %v68 = vpop.permute.xlu0 %67
    %vm69 = vcmask 97360
    %70 = vst.msk [vmem:[#allocation0] sm:$0x1] %vm69, %v68
    %s71 = scalar_lea.vmem %s0, 4
    %v72 = vld [vmem:[%s71] sm:$0x1]
    %73 = vrot.lane.b32.xlu0 %v72, 8
    %v74 = vpop.permute.xlu0 %73
    %vm75 = vcmask 80960
    %76 = vst.msk [vmem:[#allocation0] sm:$0x1] %vm75, %v74
    %s77 = scalar_lea.vmem %s0, 3
    %v78 = vld [vmem:[%s77] sm:$0x1]
    %79 = vrot.lane.b32.xlu0 %v78, 6
    %v80 = vpop.permute.xlu0 %79
    %vm81 = vcmask 64560
    %82 = vst.msk [vmem:[#allocation0] sm:$0x1] %vm81, %v80
    %s83 = scalar_lea.vmem %s0, 2
    %v84 = vld [vmem:[%s83] sm:$0x1]
    %85 = vrot.lane.b32.xlu0 %v84, 4
    %v86 = vpop.permute.xlu0 %85
    %vm87 = vcmask 48160
    %88 = vst.msk [vmem:[#allocation0] sm:$0x1] %vm87, %v86
    %s89 = scalar_lea.vmem %s0, 1
    %v90 = vld [vmem:[%s89] sm:$0x1]
    %91 = vrot.lane.b32.xlu0 %v90, 2
    %v92 = vpop.permute.xlu0 %91
    %vm93 = vcmask 31760
    %94 = vst.msk [vmem:[#allocation0] sm:$0x1] %vm93, %v92
    %s96 = ssub.s32 2, 1
    %v97 = vld [vmem:[#allocation0] sm:%s96]
    %s99 = ssub.s32 2, 1
    %100 = vst [vmem:[%s1] sm:%s99] %v97

// kernel: run.10
$region0: #{run.10}
  #allocation0 [shape = 'u32[]', space=smem, size = 0x4, offset = 0x4, fixed_abs, tag = 'smem constant byte address 0x4 - core index']
  #allocation1 [shape = 'u32[72,128]{1,0:T(1,128)}', space=vmem, size = 0x9000, scoped, tag = 'internal scratch']
  #allocation2 [shape = 'f32[16,32]{1,0:T(8,128)}', space=vmem, size = 0x2000, scoped, tag = 'scratch operand']
  %s0 = inlined_call_operand.vmem [shape: f32[16,32], index: 0, kind: input, shape index: {}]
  %s1 = inlined_call_operand.hbm [shape: f32[32,32], index: 1, kind: input, shape index: {}]
  %s2 = inlined_call_operand.vmem [shape: f32[1,32], index: 2, kind: input, shape index: {}]
  %s3 = inlined_call_operand.vmem [shape: f32[16,32], index: 3, kind: output, shape index: {}]
  %s4 = sld [smem:[#allocation0]]
  $region34: #{run.10} parent=0
    _
  %s6 = ssub.s32 1, %s4
  %s7 = scalar_select 0, %s6, %s4
  $region1: #{run.10} parent=0
    #allocation3 [shape = 'u8[16384]{0}', space=vmem, size = 0x4000, scoped, tag = 'input window, operand 1, single buffered']
    #allocation4 [shape = 's32[1]{0}', space=sflag, size = 0x4, scoped, tag = 'scoped memory for run.10']
    %8 = vsyncpa [#allocation4], 0
    // Predicated region
    $region2: #{run.10} parent=1 // pred_check
      _
    $region3: #{run.10} parent=1 // pred_check_branch
      %10 = sbr.rel (0) target = $region5
    $region4: #{run.10} parent=1 // pred_region
      _
    $region5: #{run.10} parent=1 // pred_fallthru
      _
    // Predicated region
    $region6: #{run.10} parent=1 // pred_check
      _
    $region7: #{run.10} parent=1 // pred_check_branch
      %12 = sbr.rel (0) target = $region9
    $region8: #{run.10} parent=1 // pred_region
      %14 = vsyncadd [#allocation4], 0
      %s15 = sshll.u32 %s1, 4
      %s16 = int_to_ptr.hbm [resolvable:$true] %s15
      %s17 = sshll.u32 [#allocation3], 4
      %s18 = int_to_ptr.vmem [resolvable:$true] %s17
      %23 = dma.hbm_to_vmem [thread:$0]  %s16, 512, %s18, [#allocation4], 128, 128, 8
    $region9: #{run.10} parent=1 // pred_fallthru
      _
    // Predicated region
    $region10: #{run.10} parent=1 // pred_check
      _
    $region11: #{run.10} parent=1 // pred_check_branch
      %25 = sbr.rel (0) target = $region13
    $region12: #{run.10} parent=1 // pred_region
      _
    $region13: #{run.10} parent=1 // pred_fallthru
      _
    // Predicated region
    $region14: #{run.10} parent=1 // pred_check
      _
    $region15: #{run.10} parent=1 // pred_check_branch
      %27 = sbr.rel (0) target = $region17
    $region16: #{run.10} parent=1 // pred_region
      %29 = dma.done [#allocation4], 512
    $region17: #{run.10} parent=1 // pred_fallthru
      _
    %p30 = scmp.eq.s32.totalorder 0, 0
    // Predicated region
    $region18: #{run.10} parent=1 // pred_check
      %p31 = pneg %p30
    $region19: #{run.10} parent=1 // pred_check_branch
      %33 = sbr.rel (%p31) target = $region21
    $region20: #{run.10} parent=1 // pred_region
      %vm34 = vcmask 261120
      %35 = vst.msk [vmem:[#allocation2] sm:$0xff] %vm34, 0.0
      %36 = vst.msk [vmem:[#allocation2 + $0x8] sm:$0xff] %vm34, 0.0
    $region21: #{run.10} parent=1 // pred_fallthru
      _
    %v37 = vld [vmem:[#allocation2] sm:$0xff]
    %v38 = vld [vmem:[#allocation2 + $0x8] sm:$0xff]
    %v39 = vld [vmem:[%s0] sm:$0xff]
    %v40 = vld [vmem:[%s0 + $0x8] sm:$0xff]
    %v41 = vld [vmem:[#allocation3] sm:$0xff]
    %v42 = vld [vmem:[#allocation3 + $0x8] sm:$0xff]
    %v43 = vld [vmem:[#allocation3 + $0x10] sm:$0xff]
    %v44 = vld [vmem:[#allocation3 + $0x18] sm:$0xff]
    %vm45 = vcmask 261120
    %v47 = vsel %vm45, %v39, 0
    %v50 = vsel %vm45, %v40, 0
    %52 = vmatpush.msra.mxu0 0.0
    %53 = vmatpush.msra.mxu0 0.0
    %54 = vmatpush.msra.mxu0 0.0
    %55 = vmatpush.msra.mxu0 0.0
    %56 = vmatpush.msra.mxu0 0.0
    %57 = vmatpush.msra.mxu0 0.0
    %58 = vmatpush.msra.mxu0 0.0
    %59 = vmatpush.msra.mxu0 0.0
    %60 = vmatpush.msra.mxu0 0.0
    %61 = vmatpush.msra.mxu0 0.0
    %62 = vmatpush.msra.mxu0 0.0
    %63 = vmatpush.msra.mxu0 0.0
    %64 = vmatpush.msra.mxu0 %v44
    %65 = vmatpush.msra.mxu0 %v43
    %66 = vmatpush.msra.mxu0 %v42
    %67 = vmatpush.msra.mxu0 %v41
    %68 = vmatmul.f32.gmra.mxu0 %v47
    %v69 = vpop.f32.mrf.mxu0
    %v70 = vadd.f32 0.0, %v69
    %71 = vmatmul.f32.gmra.mxu0 %v50
    %v72 = vpop.f32.mrf.mxu0
    %v73 = vadd.f32 0.0, %v72
    %74 = vdwg.mxu0
    %v75 = vadd.f32 %v37, %v70
    %v76 = vadd.f32 %v38, %v73
    %77 = vst.msk [vmem:[#allocation2] sm:$0xff] %vm45, %v75
    %78 = vst.msk [vmem:[#allocation2 + $0x8] sm:$0xff] %vm45, %v76
    // Predicated region
    $region22: #{run.10} parent=1 // pred_check
      %p79 = pneg %p30
    $region23: #{run.10} parent=1 // pred_check_branch
      %81 = sbr.rel (%p79) target = $region25
    $region24: #{run.10} parent=1 // pred_region
      %v82 = vld [vmem:[#allocation2] sm:$0xff]
      %v83 = vld [vmem:[#allocation2 + $0x8] sm:$0xff]
      %v84 = vld [vmem:[%s2] sm:$0x1]
      %v86 = vperm.slane %v84, 0
      %v88 = vadd.f32 %v82, %v86
      %v89 = vadd.f32 %v83, %v86
      %90 = vst.msk [vmem:[%s3] sm:$0xff] %vm45, %v88
      %91 = vst.msk [vmem:[%s3 + $0x8] sm:$0xff] %vm45, %v89
    $region25: #{run.10} parent=1 // pred_fallthru
      _
    // Predicated region
    $region26: #{run.10} parent=1 // pred_check
      _
    $region27: #{run.10} parent=1 // pred_check_branch
      %93 = sbr.rel (0) target = $region29
    $region28: #{run.10} parent=1 // pred_region
      _
    $region29: #{run.10} parent=1 // pred_fallthru
      _
    // Predicated region
    $region30: #{run.10} parent=1 // pred_check
      _
    $region31: #{run.10} parent=1 // pred_check_branch
      %95 = sbr.rel (0) target = $region33
    $region32: #{run.10} parent=1 // pred_region
      _
    $region33: #{run.10} parent=1 // pred_fallthru
      _
    %96 = vsyncpa [#allocation4], 1

// kernel: run.9
$region0: #{run.9}
  #allocation0 [shape = 'u32[]', space=smem, size = 0x4, offset = 0x4, fixed_abs, tag = 'smem constant byte address 0x4 - core index']
  #allocation1 [shape = 'u32[72,128]{1,0:T(1,128)}', space=vmem, size = 0x9000, scoped, tag = 'internal scratch']
  #allocation2 [shape = 'f32[16,32]{1,0:T(8,128)}', space=vmem, size = 0x2000, scoped, tag = 'scratch operand']
  %s0 = inlined_call_operand.hbm [shape: f32[16,32], index: 0, kind: input, shape index: {}]
  %s1 = inlined_call_operand.hbm [shape: f32[32,32], index: 1, kind: input, shape index: {}]
  %s2 = inlined_call_operand.vmem [shape: f32[1,32], index: 2, kind: input, shape index: {}]
  %s3 = inlined_call_operand.vmem [shape: f32[16,32], index: 3, kind: output, shape index: {}]
  %s4 = sld [smem:[#allocation0]]
  $region38: #{run.9} parent=0
    _
  %s6 = ssub.s32 1, %s4
  %s7 = scalar_select 0, %s6, %s4
  $region1: #{run.9} parent=0
    #allocation3 [shape = 'u8[8192]{0}', space=vmem, size = 0x2000, scoped, tag = 'input window, operand 0, single buffered']
    #allocation4 [shape = 's32[1]{0}', space=sflag, size = 0x4, scoped, tag = 'scoped memory for run.9']
    #allocation5 [shape = 'u8[16384]{0}', space=vmem, size = 0x4000, scoped, tag = 'input window, operand 1, single buffered']
    #allocation6 [shape = 's32[1]{0}', space=sflag, size = 0x4, scoped, tag = 'scoped memory for run.9']
    %8 = vsyncpa [#allocation4], 0
    %9 = vsyncpa [#allocation6], 0
    // Predicated region
    $region2: #{run.9} parent=1 // pred_check
      _
    $region3: #{run.9} parent=1 // pred_check_branch
      %11 = sbr.rel (0) target = $region5
    $region4: #{run.9} parent=1 // pred_region
      %13 = vsyncadd [#allocation4], 0
      %s14 = sshll.u32 %s0, 4
      %s15 = int_to_ptr.hbm [resolvable:$true] %s14
      %s16 = sshll.u32 [#allocation3], 4
      %s17 = int_to_ptr.vmem [resolvable:$true] %s16
      %22 = dma.hbm_to_vmem [thread:$0]  %s15, 256, %s17, [#allocation4], 128, 128, 8
    $region5: #{run.9} parent=1 // pred_fallthru
      _
    // Predicated region
    $region6: #{run.9} parent=1 // pred_check
      _
    $region7: #{run.9} parent=1 // pred_check_branch
      %24 = sbr.rel (0) target = $region9
    $region8: #{run.9} parent=1 // pred_region
      %26 = vsyncadd [#allocation6], 0
      %s27 = sshll.u32 %s1, 4
      %s28 = int_to_ptr.hbm [resolvable:$true] %s27
      %s29 = sshll.u32 [#allocation5], 4
      %s30 = int_to_ptr.vmem [resolvable:$true] %s29
      %35 = dma.hbm_to_vmem [thread:$0]  %s28, 512, %s30, [#allocation6], 128, 128, 8
    $region9: #{run.9} parent=1 // pred_fallthru
      _
    // Predicated region
    $region10: #{run.9} parent=1 // pred_check
      _
    $region11: #{run.9} parent=1 // pred_check_branch
      %37 = sbr.rel (0) target = $region13
    $region12: #{run.9} parent=1 // pred_region
      _
    $region13: #{run.9} parent=1 // pred_fallthru
      _
    // Predicated region
    $region14: #{run.9} parent=1 // pred_check
      _
    $region15: #{run.9} parent=1 // pred_check_branch
      %39 = sbr.rel (0) target = $region17
    $region16: #{run.9} parent=1 // pred_region
      %41 = dma.done [#allocation4], 256
    $region17: #{run.9} parent=1 // pred_fallthru
      _
    // Predicated region
    $region18: #{run.9} parent=1 // pred_check
      _
    $region19: #{run.9} parent=1 // pred_check_branch
      %43 = sbr.rel (0) target = $region21
    $region20: #{run.9} parent=1 // pred_region
      %45 = dma.done [#allocation6], 512
    $region21: #{run.9} parent=1 // pred_fallthru
      _
    %p46 = scmp.eq.s32.totalorder 0, 0
    // Predicated region
    $region22: #{run.9} parent=1 // pred_check
      %p47 = pneg %p46
    $region23: #{run.9} parent=1 // pred_check_branch
      %49 = sbr.rel (%p47) target = $region25
    $region24: #{run.9} parent=1 // pred_region
      %vm50 = vcmask 261120
      %51 = vst.msk [vmem:[#allocation2] sm:$0xff] %vm50, 0.0
      %52 = vst.msk [vmem:[#allocation2 + $0x8] sm:$0xff] %vm50, 0.0
    $region25: #{run.9} parent=1 // pred_fallthru
      _
    %v53 = vld [vmem:[#allocation2] sm:$0xff]
    %v54 = vld [vmem:[#allocation2 + $0x8] sm:$0xff]
    %v55 = vld [vmem:[#allocation3] sm:$0xff]
    %v56 = vld [vmem:[#allocation3 + $0x8] sm:$0xff]
    %v57 = vld [vmem:[#allocation5] sm:$0xff]
    %v58 = vld [vmem:[#allocation5 + $0x8] sm:$0xff]
    %v59 = vld [vmem:[#allocation5 + $0x10] sm:$0xff]
    %v60 = vld [vmem:[#allocation5 + $0x18] sm:$0xff]
    %vm61 = vcmask 261120
    %v63 = vsel %vm61, %v55, 0
    %v66 = vsel %vm61, %v56, 0
    %68 = vmatpush.msra.mxu0 0.0
    %69 = vmatpush.msra.mxu0 0.0
    %70 = vmatpush.msra.mxu0 0.0
    %71 = vmatpush.msra.mxu0 0.0
    %72 = vmatpush.msra.mxu0 0.0
    %73 = vmatpush.msra.mxu0 0.0
    %74 = vmatpush.msra.mxu0 0.0
    %75 = vmatpush.msra.mxu0 0.0
    %76 = vmatpush.msra.mxu0 0.0
    %77 = vmatpush.msra.mxu0 0.0
    %78 = vmatpush.msra.mxu0 0.0
    %79 = vmatpush.msra.mxu0 0.0
    %80 = vmatpush.msra.mxu0 %v60
    %81 = vmatpush.msra.mxu0 %v59
    %82 = vmatpush.msra.mxu0 %v58
    %83 = vmatpush.msra.mxu0 %v57
    %84 = vmatmul.f32.gmra.mxu0 %v63
    %v85 = vpop.f32.mrf.mxu0
    %v86 = vadd.f32 0.0, %v85
    %87 = vmatmul.f32.gmra.mxu0 %v66
    %v88 = vpop.f32.mrf.mxu0
    %v89 = vadd.f32 0.0, %v88
    %90 = vdwg.mxu0
    %v91 = vadd.f32 %v53, %v86
    %v92 = vadd.f32 %v54, %v89
    %93 = vst.msk [vmem:[#allocation2] sm:$0xff] %vm61, %v91
    %94 = vst.msk [vmem:[#allocation2 + $0x8] sm:$0xff] %vm61, %v92
    // Predicated region
    $region26: #{run.9} parent=1 // pred_check
      %p95 = pneg %p46
    $region27: #{run.9} parent=1 // pred_check_branch
      %97 = sbr.rel (%p95) target = $region29
    $region28: #{run.9} parent=1 // pred_region
      %v98 = vld [vmem:[#allocation2] sm:$0xff]
      %v99 = vld [vmem:[#allocation2 + $0x8] sm:$0xff]
      %v100 = vld [vmem:[%s2] sm:$0x1]
      %v102 = vperm.slane %v100, 0
      %v104 = vadd.f32 %v98, %v102
      %v105 = vadd.f32 %v99, %v102
      %106 = vst.msk [vmem:[%s3] sm:$0xff] %vm61, %v104
      %107 = vst.msk [vmem:[%s3 + $0x8] sm:$0xff] %vm61, %v105
    $region29: #{run.9} parent=1 // pred_fallthru
      _
    // Predicated region
    $region30: #{run.9} parent=1 // pred_check
      _
    $region31: #{run.9} parent=1 // pred_check_branch
      %109 = sbr.rel (0) target = $region33
    $region32: #{run.9} parent=1 // pred_region
      _
    $region33: #{run.9} parent=1 // pred_fallthru
      _
    // Predicated region
    $region34: #{run.9} parent=1 // pred_check
      _
    $region35: #{run.9} parent=1 // pred_check_branch
      %111 = sbr.rel (0) target = $region37
    $region36: #{run.9} parent=1 // pred_region
      _
    $region37: #{run.9} parent=1 // pred_fallthru
      _
    %112 = vsyncpa [#allocation4], 1
    %113 = vsyncpa [#allocation6], 1

// kernel: run.15
$region0: #{run.15}
  #allocation0 [shape = 'u32[]', space=smem, size = 0x4, offset = 0x4, fixed_abs, tag = 'smem constant byte address 0x4 - core index']
  #allocation1 [shape = 'u32[72,128]{1,0:T(1,128)}', space=vmem, size = 0x9000, scoped, tag = 'internal scratch']
  #allocation2 [shape = 'f32[16,16]{1,0:T(8,128)}', space=vmem, size = 0x2000, scoped, tag = 'scratch operand']
  %s0 = inlined_call_operand.vmem [shape: f32[16,32], index: 0, kind: input, shape index: {}]
  %s1 = inlined_call_operand.vmem [shape: f32[32,16], index: 1, kind: input, shape index: {}]
  %s2 = inlined_call_operand.vmem [shape: f32[1,16], index: 2, kind: input, shape index: {}]
  %s3 = inlined_call_operand.hbm [shape: f32[16,16], index: 3, kind: output, shape index: {}]
  %s4 = sld [smem:[#allocation0]]
  $region30: #{run.15} parent=0
    _
  %s6 = ssub.s32 1, %s4
  %s7 = scalar_select 0, %s6, %s4
  $region1: #{run.15} parent=0
    #allocation3 [shape = 'u8[8192]{0}', space=vmem, size = 0x2000, scoped, tag = 'output window, operand 0, single buffered']
    #allocation4 [shape = 's32[1]{0}', space=sflag, size = 0x4, scoped, tag = 'scoped memory for run.15']
    %8 = vsyncpa [#allocation4], 0
    // Predicated region
    $region2: #{run.15} parent=1 // pred_check
      _
    $region3: #{run.15} parent=1 // pred_check_branch
      %10 = sbr.rel (0) target = $region5
    $region4: #{run.15} parent=1 // pred_region
      _
    $region5: #{run.15} parent=1 // pred_fallthru
      _
    // Predicated region
    $region6: #{run.15} parent=1 // pred_check
      _
    $region7: #{run.15} parent=1 // pred_check_branch
      %12 = sbr.rel (0) target = $region9
    $region8: #{run.15} parent=1 // pred_region
      _
    $region9: #{run.15} parent=1 // pred_fallthru
      _
    // Predicated region
    $region10: #{run.15} parent=1 // pred_check
      _
    $region11: #{run.15} parent=1 // pred_check_branch
      %14 = sbr.rel (0) target = $region13
    $region12: #{run.15} parent=1 // pred_region
      _
    $region13: #{run.15} parent=1 // pred_fallthru
      _
    %p15 = scmp.eq.s32.totalorder 0, 0
    // Predicated region
    $region14: #{run.15} parent=1 // pred_check
      %p16 = pneg %p15
    $region15: #{run.15} parent=1 // pred_check_branch
      %18 = sbr.rel (%p16) target = $region17
    $region16: #{run.15} parent=1 // pred_region
      %vm19 = vcmask 130048
      %20 = vst.msk [vmem:[#allocation2] sm:$0xff] %vm19, 0.0
      %21 = vst.msk [vmem:[#allocation2 + $0x8] sm:$0xff] %vm19, 0.0
    $region17: #{run.15} parent=1 // pred_fallthru
      _
    %v22 = vld [vmem:[#allocation2] sm:$0xff]
    %v23 = vld [vmem:[#allocation2 + $0x8] sm:$0xff]
    %v24 = vld [vmem:[%s0] sm:$0xff]
    %v25 = vld [vmem:[%s0 + $0x8] sm:$0xff]
    %v26 = vld [vmem:[%s1] sm:$0xff]
    %v27 = vld [vmem:[%s1 + $0x8] sm:$0xff]
    %v28 = vld [vmem:[%s1 + $0x10] sm:$0xff]
    %v29 = vld [vmem:[%s1 + $0x18] sm:$0xff]
    %vm30 = vcmask 261120
    %v32 = vsel %vm30, %v24, 0
    %v35 = vsel %vm30, %v25, 0
    %37 = vmatpush.msra.mxu0 0.0
    %38 = vmatpush.msra.mxu0 0.0
    %39 = vmatpush.msra.mxu0 0.0
    %40 = vmatpush.msra.mxu0 0.0
    %41 = vmatpush.msra.mxu0 0.0
    %42 = vmatpush.msra.mxu0 0.0
    %43 = vmatpush.msra.mxu0 0.0
    %44 = vmatpush.msra.mxu0 0.0
    %45 = vmatpush.msra.mxu0 0.0
    %46 = vmatpush.msra.mxu0 0.0
    %47 = vmatpush.msra.mxu0 0.0
    %48 = vmatpush.msra.mxu0 0.0
    %49 = vmatpush.msra.mxu0 %v29
    %50 = vmatpush.msra.mxu0 %v28
    %51 = vmatpush.msra.mxu0 %v27
    %52 = vmatpush.msra.mxu0 %v26
    %53 = vmatmul.f32.gmra.mxu0 %v32
    %v54 = vpop.f32.mrf.mxu0
    %v55 = vadd.f32 0.0, %v54
    %56 = vmatmul.f32.gmra.mxu0 %v35
    %v57 = vpop.f32.mrf.mxu0
    %v58 = vadd.f32 0.0, %v57
    %59 = vdwg.mxu0
    %v60 = vadd.f32 %v22, %v55
    %v61 = vadd.f32 %v23, %v58
    %vm62 = vcmask 130048
    %63 = vst.msk [vmem:[#allocation2] sm:$0xff] %vm62, %v60
    %64 = vst.msk [vmem:[#allocation2 + $0x8] sm:$0xff] %vm62, %v61
    // Predicated region
    $region18: #{run.15} parent=1 // pred_check
      %p65 = pneg %p15
    $region19: #{run.15} parent=1 // pred_check_branch
      %67 = sbr.rel (%p65) target = $region21
    $region20: #{run.15} parent=1 // pred_region
      %v68 = vld [vmem:[#allocation2] sm:$0xff]
      %v69 = vld [vmem:[#allocation2 + $0x8] sm:$0xff]
      %v70 = vld [vmem:[%s2] sm:$0x1]
      %v72 = vperm.slane %v70, 0
      %v74 = vadd.f32 %v68, %v72
      %v75 = vadd.f32 %v69, %v72
      %76 = vst.msk [vmem:[#allocation3] sm:$0xff] %vm62, %v74
      %77 = vst.msk [vmem:[#allocation3 + $0x8] sm:$0xff] %vm62, %v75
    $region21: #{run.15} parent=1 // pred_fallthru
      _
    // Predicated region
    $region22: #{run.15} parent=1 // pred_check
      _
    $region23: #{run.15} parent=1 // pred_check_branch
      %79 = sbr.rel (0) target = $region25
    $region24: #{run.15} parent=1 // pred_region
      %81 = vsyncadd [#allocation4], 0
      %s82 = sshll.u32 [#allocation3], 4
      %s83 = int_to_ptr.vmem [resolvable:$true] %s82
      %s84 = sshll.u32 %s3, 4
      %s85 = int_to_ptr.hbm [resolvable:$true] %s84
      %90 = dma.vmem_to_hbm [thread:$0]  %s83, 256, %s85, [#allocation4], 128, 128, 8
    $region25: #{run.15} parent=1 // pred_fallthru
      _
    // Predicated region
    $region26: #{run.15} parent=1 // pred_check
      _
    $region27: #{run.15} parent=1 // pred_check_branch
      %92 = sbr.rel (0) target = $region29
    $region28: #{run.15} parent=1 // pred_region
      %94 = dma.done [#allocation4], 256
    $region29: #{run.15} parent=1 // pred_fallthru
      _
    %95 = vsyncpa [#allocation4], 1

// kernel: run.13
$region0: #{run.13}
  #allocation0 [shape = 'u32[]', space=smem, size = 0x4, offset = 0x4, fixed_abs, tag = 'smem constant byte address 0x4 - core index']
  #allocation1 [shape = 'u32[72,128]{1,0:T(1,128)}', space=vmem, size = 0x9000, scoped, tag = 'internal scratch']
  %s0 = inlined_call_operand.vmem [shape: f32[2,8,32], index: 0, kind: input, shape index: {}]
  %s1 = inlined_call_operand.vmem [shape: f32[32,16], index: 1, kind: input, shape index: {}]
  %s2 = inlined_call_operand.vmem [shape: f32[1,16], index: 2, kind: input, shape index: {}]
  %s3 = inlined_call_operand.vmem [shape: f32[16,32], index: 3, kind: input, shape index: {}]
  %s4 = inlined_call_operand.vmem [shape: f32[1,32], index: 4, kind: input, shape index: {}]
  %s5 = inlined_call_operand.vmem [shape: f32[16,32], index: 5, kind: input, shape index: {}]
  %s6 = inlined_call_operand.vmem [shape: f32[1,32], index: 6, kind: input, shape index: {}]
  %s7 = inlined_call_operand.vmem [shape: f32[8,32], index: 7, kind: input, shape index: {}]
  %s8 = inlined_call_operand.vmem [shape: f32[8,32], index: 8, kind: input, shape index: {}]
  %s9 = inlined_call_operand.vmem [shape: f32[2,8,32], index: 9, kind: output, shape index: {}]
  %s10 = sld [smem:[#allocation0]]
  $region69: #{run.13} parent=0
    _
  %s12 = ssub.s32 1, %s10
  %s13 = scalar_select 0, %s12, %s10
  loop: start=0, step=1, limit=4
  $region2: #{run.13} parent=0 // loop_pre_header
    _
  $region3: #{run.13} parent=0 // loop_header
    %s15 = sphi 0, %s19
    %p16 = scmp.ge.s32.totalorder %s15, 4
    %s22 = sphi 0, %s34
    %s23 = sphi 0, %s30
    %s24 = sphi 0, %s22
    %s25 = sphi 0, %s23
    %s26 = sphi 0, %s24
    %s27 = sphi 0, %s25
    %s39 = sphi 0, %s41
    %s42 = sphi 0, %s39
    %s43 = sphi 0, %s42
    %s59 = sphi 0, %s43
    %s63 = sphi 0, %s63
    %s65 = sphi 0, %s63
    %s66 = sphi 0, %s65
    %s80 = sphi 0, %s66
    %s84 = sphi 0, %s84
    %s86 = sphi 0, %s84
    %s87 = sphi 0, %s86
    %s101 = sphi 0, %s87
    %s105 = sphi 0, %s105
    %s107 = sphi 0, %s105
    %s108 = sphi 0, %s107
    %s122 = sphi 0, %s108
    %s126 = sphi 0, %s126
    %s128 = sphi 0, %s126
    %s129 = sphi 0, %s128
    %s143 = sphi 0, %s129
    %s147 = sphi 0, %s147
    %s149 = sphi 0, %s147
    %s150 = sphi 0, %s149
    %s164 = sphi 0, %s150
    %s168 = sphi 0, %s168
    %s170 = sphi 0, %s168
    %s171 = sphi 0, %s170
    %s185 = sphi 0, %s171
    %s191 = sphi 0, %s193
    %s194 = sphi 0, %s191
    %s195 = sphi 0, %s194
    %s211 = sphi 0, %s195
    %s217 = sphi 0, %s219
    %s220 = sphi 0, %s217
    %s221 = sphi 0, %s220
    %s237 = sphi 0, %s221
    %s245 = sphi 0, %s247
    %s248 = sphi 0, %s245
    %s249 = sphi 0, %s248
    %s265 = sphi 0, %s249
  $region4: #{run.13} parent=0 // loop_header_branch
    %18 = sbr.rel (%p16) target = $region8
  $region5: #{run.13} parent=0 // loop_body
    %s20 = ssub.s32 %s15, 1
    %s21 = ssub.s32 %s15, 2
    %s28 = sadd.s32 1, %s23
    %p29 = scmp.ge.s32.totalorder %s28, 1
    %s30 = scalar_select %p29, 0, %s28
    %s31 = sadd.s32 1, %s22
    %s32 = scalar_select %p29, %s31, %s22
    %p33 = scmp.ge.s32.totalorder %s32, 2
    %s34 = scalar_select %p33, 0, %s32
    %s35 = ssub.s32 %s22, %s34
    %s36 = ssub.s32 %s23, %s30
    %s37 = sor.u32 %s35, %s36
    %p38 = scmp.eq.s32.totalorder %s37, 0
    %s40 = sadd.s32 %s39, 1
    %s41 = scalar_select %p38, %s39, %s40
    %p44 = pneg %p38
    %p45 = scmp.eq.s32.totalorder %s15, 1
    %p46 = por %p44, %p45
    %p47 = scmp.ne.s32.totalorder %s39, %s42
    %p48 = scmp.eq.s32.totalorder %s15, 0
    %p49 = por %p47, %p48
    %p50 = scmp.ne.s32.totalorder %s39, %s42
    %p51 = scmp.eq.s32.totalorder %s20, 1
    %p52 = por %p50, %p51
    %p53 = scmp.ne.s32.totalorder %s42, %s43
    %p54 = scmp.eq.s32.totalorder %s20, 0
    %p55 = por %p53, %p54
    %p56 = scmp.ne.s32.totalorder %s42, %s43
    %p57 = scmp.eq.s32.totalorder %s21, 1
    %p58 = por %p56, %p57
    %p60 = scmp.ne.s32.totalorder %s43, %s59
    %p61 = scmp.eq.s32.totalorder %s21, 0
    %p62 = por %p60, %p61
    %s64 = sadd.s32 %s63, 1
    %p67 = scmp.eq.s32.totalorder %s15, 1
    %p68 = scmp.ne.s32.totalorder %s63, %s65
    %p69 = scmp.eq.s32.totalorder %s15, 0
    %p70 = por %p68, %p69
    %p71 = scmp.ne.s32.totalorder %s63, %s65
    %p72 = scmp.eq.s32.totalorder %s20, 1
    %p73 = por %p71, %p72
    %p74 = scmp.ne.s32.totalorder %s65, %s66
    %p75 = scmp.eq.s32.totalorder %s20, 0
    %p76 = por %p74, %p75
    %p77 = scmp.ne.s32.totalorder %s65, %s66
    %p78 = scmp.eq.s32.totalorder %s21, 1
    %p79 = por %p77, %p78
    %p81 = scmp.ne.s32.totalorder %s66, %s80
    %p82 = scmp.eq.s32.totalorder %s21, 0
    %p83 = por %p81, %p82
    %s85 = sadd.s32 %s84, 1
    %p88 = scmp.eq.s32.totalorder %s15, 1
    %p89 = scmp.ne.s32.totalorder %s84, %s86
    %p90 = scmp.eq.s32.totalorder %s15, 0
    %p91 = por %p89, %p90
    %p92 = scmp.ne.s32.totalorder %s84, %s86
    %p93 = scmp.eq.s32.totalorder %s20, 1
    %p94 = por %p92, %p93
    %p95 = scmp.ne.s32.totalorder %s86, %s87
    %p96 = scmp.eq.s32.totalorder %s20, 0
    %p97 = por %p95, %p96
    %p98 = scmp.ne.s32.totalorder %s86, %s87
    %p99 = scmp.eq.s32.totalorder %s21, 1
    %p100 = por %p98, %p99
    %p102 = scmp.ne.s32.totalorder %s87, %s101
    %p103 = scmp.eq.s32.totalorder %s21, 0
    %p104 = por %p102, %p103
    %s106 = sadd.s32 %s105, 1
    %p109 = scmp.eq.s32.totalorder %s15, 1
    %p110 = scmp.ne.s32.totalorder %s105, %s107
    %p111 = scmp.eq.s32.totalorder %s15, 0
    %p112 = por %p110, %p111
    %p113 = scmp.ne.s32.totalorder %s105, %s107
    %p114 = scmp.eq.s32.totalorder %s20, 1
    %p115 = por %p113, %p114
    %p116 = scmp.ne.s32.totalorder %s107, %s108
    %p117 = scmp.eq.s32.totalorder %s20, 0
    %p118 = por %p116, %p117
    %p119 = scmp.ne.s32.totalorder %s107, %s108
    %p120 = scmp.eq.s32.totalorder %s21, 1
    %p121 = por %p119, %p120
    %p123 = scmp.ne.s32.totalorder %s108, %s122
    %p124 = scmp.eq.s32.totalorder %s21, 0
    %p125 = por %p123, %p124
    %s127 = sadd.s32 %s126, 1
    %p130 = scmp.eq.s32.totalorder %s15, 1
    %p131 = scmp.ne.s32.totalorder %s126, %s128
    %p132 = scmp.eq.s32.totalorder %s15, 0
    %p133 = por %p131, %p132
    %p134 = scmp.ne.s32.totalorder %s126, %s128
    %p135 = scmp.eq.s32.totalorder %s20, 1
    %p136 = por %p134, %p135
    %p137 = scmp.ne.s32.totalorder %s128, %s129
    %p138 = scmp.eq.s32.totalorder %s20, 0
    %p139 = por %p137, %p138
    %p140 = scmp.ne.s32.totalorder %s128, %s129
    %p141 = scmp.eq.s32.totalorder %s21, 1
    %p142 = por %p140, %p141
    %p144 = scmp.ne.s32.totalorder %s129, %s143
    %p145 = scmp.eq.s32.totalorder %s21, 0
    %p146 = por %p144, %p145
    %s148 = sadd.s32 %s147, 1
    %p151 = scmp.eq.s32.totalorder %s15, 1
    %p152 = scmp.ne.s32.totalorder %s147, %s149
    %p153 = scmp.eq.s32.totalorder %s15, 0
    %p154 = por %p152, %p153
    %p155 = scmp.ne.s32.totalorder %s147, %s149
    %p156 = scmp.eq.s32.totalorder %s20, 1
    %p157 = por %p155, %p156
    %p158 = scmp.ne.s32.totalorder %s149, %s150
    %p159 = scmp.eq.s32.totalorder %s20, 0
    %p160 = por %p158, %p159
    %p161 = scmp.ne.s32.totalorder %s149, %s150
    %p162 = scmp.eq.s32.totalorder %s21, 1
    %p163 = por %p161, %p162
    %p165 = scmp.ne.s32.totalorder %s150, %s164
    %p166 = scmp.eq.s32.totalorder %s21, 0
    %p167 = por %p165, %p166
    %s169 = sadd.s32 %s168, 1
    %p172 = scmp.eq.s32.totalorder %s15, 1
    %p173 = scmp.ne.s32.totalorder %s168, %s170
    %p174 = scmp.eq.s32.totalorder %s15, 0
    %p175 = por %p173, %p174
    %p176 = scmp.ne.s32.totalorder %s168, %s170
    %p177 = scmp.eq.s32.totalorder %s20, 1
    %p178 = por %p176, %p177
    %p179 = scmp.ne.s32.totalorder %s170, %s171
    %p180 = scmp.eq.s32.totalorder %s20, 0
    %p181 = por %p179, %p180
    %p182 = scmp.ne.s32.totalorder %s170, %s171
    %p183 = scmp.eq.s32.totalorder %s21, 1
    %p184 = por %p182, %p183
    %p186 = scmp.ne.s32.totalorder %s171, %s185
    %p187 = scmp.eq.s32.totalorder %s21, 0
    %p188 = por %p186, %p187
    %s189 = ssub.s32 %s23, %s30
    %p190 = scmp.eq.s32.totalorder %s189, 0
    %s192 = sadd.s32 %s191, 1
    %s193 = scalar_select %p190, %s191, %s192
    %p196 = pneg %p190
    %p197 = scmp.eq.s32.totalorder %s15, 1
    %p198 = por %p196, %p197
    %p199 = scmp.ne.s32.totalorder %s191, %s194
    %p200 = scmp.eq.s32.totalorder %s15, 0
    %p201 = por %p199, %p200
    %p202 = scmp.ne.s32.totalorder %s191, %s194
    %p203 = scmp.eq.s32.totalorder %s20, 1
    %p204 = por %p202, %p203
    %p205 = scmp.ne.s32.totalorder %s194, %s195
    %p206 = scmp.eq.s32.totalorder %s20, 0
    %p207 = por %p205, %p206
    %p208 = scmp.ne.s32.totalorder %s194, %s195
    %p209 = scmp.eq.s32.totalorder %s21, 1
    %p210 = por %p208, %p209
    %p212 = scmp.ne.s32.totalorder %s195, %s211
    %p213 = scmp.eq.s32.totalorder %s21, 0
    %p214 = por %p212, %p213
    %s215 = ssub.s32 %s23, %s30
    %p216 = scmp.eq.s32.totalorder %s215, 0
    %s218 = sadd.s32 %s217, 1
    %s219 = scalar_select %p216, %s217, %s218
    %p222 = pneg %p216
    %p223 = scmp.eq.s32.totalorder %s15, 1
    %p224 = por %p222, %p223
    %p225 = scmp.ne.s32.totalorder %s217, %s220
    %p226 = scmp.eq.s32.totalorder %s15, 0
    %p227 = por %p225, %p226
    %p228 = scmp.ne.s32.totalorder %s217, %s220
    %p229 = scmp.eq.s32.totalorder %s20, 1
    %p230 = por %p228, %p229
    %p231 = scmp.ne.s32.totalorder %s220, %s221
    %p232 = scmp.eq.s32.totalorder %s20, 0
    %p233 = por %p231, %p232
    %p234 = scmp.ne.s32.totalorder %s220, %s221
    %p235 = scmp.eq.s32.totalorder %s21, 1
    %p236 = por %p234, %p235
    %p238 = scmp.ne.s32.totalorder %s221, %s237
    %p239 = scmp.eq.s32.totalorder %s21, 0
    %p240 = por %p238, %p239
    %s241 = ssub.s32 %s22, %s34
    %s242 = ssub.s32 %s23, %s30
    %s243 = sor.u32 %s241, %s242
    %p244 = scmp.eq.s32.totalorder %s243, 0
    %s246 = sadd.s32 %s245, 1
    %s247 = scalar_select %p244, %s245, %s246
    %p250 = pneg %p244
    %p251 = scmp.eq.s32.totalorder %s15, 1
    %p252 = por %p250, %p251
    %p253 = scmp.ne.s32.totalorder %s245, %s248
    %p254 = scmp.eq.s32.totalorder %s15, 0
    %p255 = por %p253, %p254
    %p256 = scmp.ne.s32.totalorder %s245, %s248
    %p257 = scmp.eq.s32.totalorder %s20, 1
    %p258 = por %p256, %p257
    %p259 = scmp.ne.s32.totalorder %s248, %s249
    %p260 = scmp.eq.s32.totalorder %s20, 0
    %p261 = por %p259, %p260
    %p262 = scmp.ne.s32.totalorder %s248, %s249
    %p263 = scmp.eq.s32.totalorder %s21, 1
    %p264 = por %p262, %p263
    %p266 = scmp.ne.s32.totalorder %s249, %s265
    %p267 = scmp.eq.s32.totalorder %s21, 0
    %p268 = por %p266, %p267
    %p269 = scmp.le.s32.totalorder 1, %s15
    %p270 = scmp.lt.s32.totalorder %s15, 3
    %p271 = pnand %p269, %p270
    %p272 = pneg %p271
    // Predicated region
    $region9: #{run.13} parent=5 // pred_check
      _
    $region10: #{run.13} parent=5 // pred_check_branch
      %274 = sbr.rel (%p271) target = $region12
    $region11: #{run.13} parent=5 // pred_region
      %s275 = ssub.s32 %s15, 1
      // Predicated region
      $region13: #{run.13} parent=11 // pred_check
        %p276 = pneg %p76
      $region14: #{run.13} parent=11 // pred_check_branch
        %278 = sbr.rel (%p276) target = $region16
      $region15: #{run.13} parent=11 // pred_region
        _
      $region16: #{run.13} parent=11 // pred_fallthru
        _
      // Predicated region
      $region17: #{run.13} parent=11 // pred_check
        %p279 = pneg %p97
      $region18: #{run.13} parent=11 // pred_check_branch
        %281 = sbr.rel (%p279) target = $region20
      $region19: #{run.13} parent=11 // pred_region
        _
      $region20: #{run.13} parent=11 // pred_fallthru
        _
      // Predicated region
      $region21: #{run.13} parent=11 // pred_check
        %p282 = pneg %p118
      $region22: #{run.13} parent=11 // pred_check_branch
        %284 = sbr.rel (%p282) target = $region24
      $region23: #{run.13} parent=11 // pred_region
        _
      $region24: #{run.13} parent=11 // pred_fallthru
        _
      // Predicated region
      $region25: #{run.13} parent=11 // pred_check
        %p285 = pneg %p139
      $region26: #{run.13} parent=11 // pred_check_branch
        %287 = sbr.rel (%p285) target = $region28
      $region27: #{run.13} parent=11 // pred_region
        _
      $region28: #{run.13} parent=11 // pred_fallthru
        _
      // Predicated region
      $region29: #{run.13} parent=11 // pred_check
        %p288 = pneg %p160
      $region30: #{run.13} parent=11 // pred_check_branch
        %290 = sbr.rel (%p288) target = $region32
      $region31: #{run.13} parent=11 // pred_region
        _
      $region32: #{run.13} parent=11 // pred_fallthru
        _
      // Predicated region
      $region33: #{run.13} parent=11 // pred_check
        %p291 = pneg %p181
      $region34: #{run.13} parent=11 // pred_check_branch
        %293 = sbr.rel (%p291) target = $region36
      $region35: #{run.13} parent=11 // pred_region
        _
      $region36: #{run.13} parent=11 // pred_fallthru
        _
      // Predicated region
      $region37: #{run.13} parent=11 // pred_check
        %p294 = pneg %p207
      $region38: #{run.13} parent=11 // pred_check_branch
        %296 = sbr.rel (%p294) target = $region40
      $region39: #{run.13} parent=11 // pred_region
        %p297 = scmp.lt.s32.totalorder %s25, 0
        %s298 = scalar_select %p297, %s25, 0
        %s299 = smul.addr %s298, 8
        %s300 = scalar_lea.vmem %s7, %s299
      $region40: #{run.13} parent=11 // pred_fallthru
        _
      // Predicated region
      $region41: #{run.13} parent=11 // pred_check
        %p301 = pneg %p233
      $region42: #{run.13} parent=11 // pred_check_branch
        %303 = sbr.rel (%p301) target = $region44
      $region43: #{run.13} parent=11 // pred_region
        %p304 = scmp.lt.s32.totalorder %s25, 0
        %s305 = scalar_select %p304, %s25, 0
        %s306 = smul.addr %s305, 8
        %s307 = scalar_lea.vmem %s8, %s306
      $region44: #{run.13} parent=11 // pred_fallthru
        _
    $region12: #{run.13} parent=5 // pred_fallthru
      _
    %p308 = scmp.lt.s32.totalorder %s15, 2
    // Predicated region
    $region45: #{run.13} parent=5 // pred_check
      %p309 = pneg %p308
    $region46: #{run.13} parent=5 // pred_check_branch
      %311 = sbr.rel (%p309) target = $region48
    $region47: #{run.13} parent=5 // pred_region
      // Predicated region
      $region49: #{run.13} parent=47 // pred_check
        %p312 = pneg %p49
      $region50: #{run.13} parent=47 // pred_check_branch
        %314 = sbr.rel (%p312) target = $region52
      $region51: #{run.13} parent=47 // pred_region
        %p315 = scmp.lt.s32.totalorder %s22, 1
        %s316 = scalar_select %p315, %s22, 1
        %p317 = scmp.lt.s32.totalorder %s23, 0
        %s318 = scalar_select %p317, %s23, 0
        %s319 = sadd.s32 %s318, %s316
        %s320 = smul.addr %s319, 8
        %s321 = scalar_lea.vmem %s0, %s320
      $region52: #{run.13} parent=47 // pred_fallthru
        _
    $region48: #{run.13} parent=5 // pred_fallthru
      _
    %p322 = scmp.le.s32.totalorder 1, %s15
    %p323 = scmp.lt.s32.totalorder %s15, 3
    %p324 = pnand %p322, %p323
    %p325 = pneg %p324
    // Predicated region
    $region53: #{run.13} parent=5 // pred_check
      _
    $region54: #{run.13} parent=5 // pred_check_branch
      %327 = sbr.rel (%p324) target = $region56
    $region55: #{run.13} parent=5 // pred_region
      %s328 = ssub.s32 %s15, 1
      %p329 = scmp.lt.s32.totalorder %s24, 1
      %s330 = scalar_select %p329, %s24, 1
      %p331 = scmp.lt.s32.totalorder %s25, 0
      %s332 = scalar_select %p331, %s25, 0
      %s333 = sadd.s32 %s332, %s330
      %s334 = smul.addr %s333, 8
      %s335 = scalar_lea.vmem %s0, %s334
      %p336 = pneg %p55
      %p337 = pneg %p52
      %p338 = pneg %p76
      %p339 = pneg %p73
      %p340 = pneg %p97
      %p341 = pneg %p94
      %p342 = pneg %p118
      %p343 = pneg %p115
      %p344 = pneg %p139
      %p345 = pneg %p136
      %p346 = pneg %p160
      %p347 = pneg %p157
      %p348 = pneg %p181
      %p349 = pneg %p178
      %p350 = scmp.lt.s32.totalorder %s25, 0
      %s351 = scalar_select %p350, %s25, 0
      %s352 = smul.addr %s351, 8
      %s353 = scalar_lea.vmem %s7, %s352
      %p354 = pneg %p207
      %p355 = pneg %p204
      %p356 = scmp.lt.s32.totalorder %s25, 0
      %s357 = scalar_select %p356, %s25, 0
      %s358 = smul.addr %s357, 8
      %s359 = scalar_lea.vmem %s8, %s358
      %p360 = pneg %p233
      %p361 = pneg %p230
      %p362 = pneg %p261
      %p363 = pneg %p258
      %p364 = scmp.lt.s32.totalorder %s24, 1
      %s365 = scalar_select %p364, %s24, 1
      %p366 = scmp.lt.s32.totalorder %s25, 0
      %s367 = scalar_select %p366, %s25, 0
      %s368 = sadd.s32 %s367, %s365
      %s369 = smul.addr %s368, 8
      %s370 = scalar_lea.vmem %s9, %s369
      %p371 = scmp.lt.s32.totalorder %s24, 1
      %s372 = scalar_select %p371, %s24, 1
      %p373 = scmp.lt.s32.totalorder %s25, 0
      %s374 = scalar_select %p373, %s25, 0
      %s375 = sadd.s32 %s374, %s372
      %s376 = smul.addr %s375, 8
      %s377 = scalar_lea.vmem %s0, %s376
      %p378 = scmp.lt.s32.totalorder %s25, 0
      %s379 = scalar_select %p378, %s25, 0
      %s380 = smul.addr %s379, 8
      %s381 = scalar_lea.vmem %s7, %s380
      %p382 = scmp.lt.s32.totalorder %s25, 0
      %s383 = scalar_select %p382, %s25, 0
      %s384 = smul.addr %s383, 8
      %s385 = scalar_lea.vmem %s8, %s384
      %p386 = scmp.lt.s32.totalorder %s24, 1
      %s387 = scalar_select %p386, %s24, 1
      %p388 = scmp.lt.s32.totalorder %s25, 0
      %s389 = scalar_select %p388, %s25, 0
      %s390 = sadd.s32 %s389, %s387
      %s391 = smul.addr %s390, 8
      %s392 = scalar_lea.vmem %s9, %s391
      %v393 = vld [vmem:[%s377] sm:$0xff]
      %v394 = vld [vmem:[%s1] sm:$0xff]
      %v395 = vld [vmem:[%s1 + $0x8] sm:$0xff]
      %v396 = vld [vmem:[%s1 + $0x10] sm:$0xff]
      %v397 = vld [vmem:[%s1 + $0x18] sm:$0xff]
      %v398 = vld [vmem:[%s2] sm:$0x1]
      %v400 = vperm.slane %v398, 0
      %vm402 = vcmask 261120
      %v404 = vsel %vm402, %v393, 0
      %406 = vmatpush.msra.mxu0 0.0
      %407 = vmatpush.msra.mxu0 0.0
      %408 = vmatpush.msra.mxu0 0.0
      %409 = vmatpush.msra.mxu0 0.0
      %410 = vmatpush.msra.mxu0 0.0
      %411 = vmatpush.msra.mxu0 0.0
      %412 = vmatpush.msra.mxu0 0.0
      %413 = vmatpush.msra.mxu0 0.0
      %414 = vmatpush.msra.mxu0 0.0
      %415 = vmatpush.msra.mxu0 0.0
      %416 = vmatpush.msra.mxu0 0.0
      %417 = vmatpush.msra.mxu0 0.0
      %418 = vmatpush.msra.mxu0 %v397
      %419 = vmatpush.msra.mxu0 %v396
      %420 = vmatpush.msra.mxu0 %v395
      %421 = vmatpush.msra.mxu0 %v394
      %422 = vmatmul.f32.gmra.mxu0 %v404
      %v423 = vpop.f32.mrf.mxu0
      %v424 = vadd.f32 %v400, %v423
      %425 = vdwg.mxu0
      %v426 = vld [vmem:[%s3] sm:$0xff]
      %v427 = vld [vmem:[%s3 + $0x8] sm:$0xff]
      %v428 = vld [vmem:[%s4] sm:$0x1]
      %v430 = vperm.slane %v428, 0
      %vm432 = vcmask 130048
      %v434 = vsel %vm432, %v424, 0
      %436 = vmatpush.msra.mxu0 0.0
      %437 = vmatpush.msra.mxu0 0.0
      %438 = vmatpush.msra.mxu0 0.0
      %439 = vmatpush.msra.mxu0 0.0
      %440 = vmatpush.msra.mxu0 0.0
      %441 = vmatpush.msra.mxu0 0.0
      %442 = vmatpush.msra.mxu0 0.0
      %443 = vmatpush.msra.mxu0 0.0
      %444 = vmatpush.msra.mxu0 0.0
      %445 = vmatpush.msra.mxu0 0.0
      %446 = vmatpush.msra.mxu0 0.0
      %447 = vmatpush.msra.mxu0 0.0
      %448 = vmatpush.msra.mxu0 0.0
      %449 = vmatpush.msra.mxu0 0.0
      %450 = vmatpush.msra.mxu0 %v427
      %451 = vmatpush.msra.mxu0 %v426
      %452 = vmatmul.f32.gmra.mxu0 %v434
      %v453 = vpop.f32.mrf.mxu0
      %v454 = vadd.f32 %v430, %v453
      %455 = vdwg.mxu0
      %v456 = vld [vmem:[%s5] sm:$0xff]
      %v457 = vld [vmem:[%s5 + $0x8] sm:$0xff]
      %v458 = vld [vmem:[%s6] sm:$0x1]
      %v460 = vperm.slane %v458, 0
      %462 = vmatpush.msra.mxu0 0.0
      %463 = vmatpush.msra.mxu0 0.0
      %464 = vmatpush.msra.mxu0 0.0
      %465 = vmatpush.msra.mxu0 0.0
      %466 = vmatpush.msra.mxu0 0.0
      %467 = vmatpush.msra.mxu0 0.0
      %468 = vmatpush.msra.mxu0 0.0
      %469 = vmatpush.msra.mxu0 0.0
      %470 = vmatpush.msra.mxu0 0.0
      %471 = vmatpush.msra.mxu0 0.0
      %472 = vmatpush.msra.mxu0 0.0
      %473 = vmatpush.msra.mxu0 0.0
      %474 = vmatpush.msra.mxu0 0.0
      %475 = vmatpush.msra.mxu0 0.0
      %476 = vmatpush.msra.mxu0 %v457
      %477 = vmatpush.msra.mxu0 %v456
      %478 = vmatmul.f32.gmra.mxu0 %v434
      %v479 = vpop.f32.mrf.mxu0
      %v480 = vadd.f32 %v460, %v479
      %481 = vdwg.mxu0
      %v482 = vld [vmem:[%s381] sm:$0xff]
      %v483 = vmul.f32 %v454, %v482
      %v484 = vld [vmem:[%s385] sm:$0xff]
      %v485 = vmul.f32 %v480, %v484
      %v486 = vadd.f32 %v483, %v485
      %487 = vst.msk [vmem:[%s392] sm:$0xff] %vm402, %v486
      %p488 = scmp.lt.s32.totalorder %s24, 1
      %s489 = scalar_select %p488, %s24, 1
      %p490 = scmp.lt.s32.totalorder %s25, 0
      %s491 = scalar_select %p490, %s25, 0
      %s492 = sadd.s32 %s491, %s489
      %s493 = smul.addr %s492, 8
      %s494 = scalar_lea.vmem %s9, %s493
      // Predicated region
      $region57: #{run.13} parent=55 // pred_check
        %p495 = pneg %p258
      $region58: #{run.13} parent=55 // pred_check_branch
        %497 = sbr.rel (%p495) target = $region60
      $region59: #{run.13} parent=55 // pred_region
        _
      $region60: #{run.13} parent=55 // pred_fallthru
        _
    $region56: #{run.13} parent=5 // pred_fallthru
      _
    %p498 = scmp.le.s32.totalorder 2, %s15
    // Predicated region
    $region61: #{run.13} parent=5 // pred_check
      %p499 = pneg %p498
    $region62: #{run.13} parent=5 // pred_check_branch
      %501 = sbr.rel (%p499) target = $region64
    $region63: #{run.13} parent=5 // pred_region
      %s502 = ssub.s32 %s15, 2
      // Predicated region
      $region65: #{run.13} parent=63 // pred_check
        %p503 = pneg %p264
      $region66: #{run.13} parent=63 // pred_check_branch
        %505 = sbr.rel (%p503) target = $region68
      $region67: #{run.13} parent=63 // pred_region
        %p506 = scmp.lt.s32.totalorder %s26, 1
        %s507 = scalar_select %p506, %s26, 1
        %p508 = scmp.lt.s32.totalorder %s27, 0
        %s509 = scalar_select %p508, %s27, 0
        %s510 = sadd.s32 %s509, %s507
        %s511 = smul.addr %s510, 8
        %s512 = scalar_lea.vmem %s9, %s511
      $region68: #{run.13} parent=63 // pred_fallthru
        _
    $region64: #{run.13} parent=5 // pred_fallthru
      _
  $region6: #{run.13} parent=0 // loop_footer
    %s19 = sadd.s32 1, %s15
  $region7: #{run.13} parent=0 // loop_footer_branch
    %14 = sbr.rel target = $region3
  $region8: #{run.13} parent=0 // loop_exit
    _

// kernel: run.17
$region0: #{run.17}
  #allocation0 [shape = 'u32[]', space=smem, size = 0x4, offset = 0x4, fixed_abs, tag = 'smem constant byte address 0x4 - core index']
  #allocation1 [shape = 'u32[72,128]{1,0:T(1,128)}', space=vmem, size = 0x9000, scoped, tag = 'internal scratch']
  #allocation2 [shape = 'f32[8,32]{1,0:T(8,128)}', space=vmem, size = 0x1000, scoped, tag = 'scratch operand']
  %s0 = inlined_call_operand.vmem [shape: f32[2,4,8,8], index: 0, kind: input, shape index: {}]
  %s1 = inlined_call_operand.vmem [shape: f32[4,8,32], index: 1, kind: input, shape index: {}]
  %s2 = inlined_call_operand.vmem [shape: f32[1,32], index: 2, kind: input, shape index: {}]
  %s3 = inlined_call_operand.hbm [shape: f32[2,8,32], index: 3, kind: output, shape index: {}]
  %s4 = sld [smem:[#allocation0]]
  $region53: #{run.17} parent=0
    _
  %s6 = ssub.s32 1, %s4
  %s7 = scalar_select 0, %s6, %s4
  $region1: #{run.17} parent=0
    #allocation3 [shape = 'u8[8192]{0}', space=vmem, size = 0x2000, scoped, tag = 'output window, operand 0']
    #allocation4 [shape = 's32[2]{0}', space=sflag, size = 0x8, scoped, tag = 'scoped memory for run.17']
    %8 = vsyncpa [#allocation4], 0
    %s9 = scalar_lea.sflag [#allocation4], 1
    %10 = vsyncpa %s9, 0
    loop: start=0, step=1, limit=10
    $region2: #{run.17} parent=1 // loop_pre_header
      _
    $region3: #{run.17} parent=1 // loop_header
      %s12 = sphi 0, %s16
      %p13 = scmp.ge.s32.totalorder %s12, 10
      %s19 = sphi 0, %s38
      %s20 = sphi 0, %s34
      %s21 = sphi 0, %s30
      %s22 = sphi 0, %s19
      %s23 = sphi 0, %s20
      %s24 = sphi 0, %s21
      %s25 = sphi 0, %s22
      %s26 = sphi 0, %s23
      %s27 = sphi 0, %s24
      %s45 = sphi 0, %s47
      %s48 = sphi 0, %s45
      %s49 = sphi 0, %s48
      %s65 = sphi 0, %s49
      %s71 = sphi 0, %s73
      %s74 = sphi 0, %s71
      %s75 = sphi 0, %s74
      %s91 = sphi 0, %s75
      %s95 = sphi 0, %s95
      %s97 = sphi 0, %s95
      %s98 = sphi 0, %s97
      %s112 = sphi 0, %s98
      %s120 = sphi 0, %s122
      %s123 = sphi 0, %s120
      %s124 = sphi 0, %s123
      %s140 = sphi 0, %s124
    $region4: #{run.17} parent=1 // loop_header_branch
      %15 = sbr.rel (%p13) target = $region8
    $region5: #{run.17} parent=1 // loop_body
      %s17 = ssub.s32 %s12, 1
      %s18 = ssub.s32 %s12, 2
      %s28 = sadd.s32 1, %s21
      %p29 = scmp.ge.s32.totalorder %s28, 4
      %s30 = scalar_select %p29, 0, %s28
      %s31 = sadd.s32 1, %s20
      %s32 = scalar_select %p29, %s31, %s20
      %p33 = scmp.ge.s32.totalorder %s32, 1
      %s34 = scalar_select %p33, 0, %s32
      %s35 = sadd.s32 1, %s19
      %s36 = scalar_select %p33, %s35, %s19
      %p37 = scmp.ge.s32.totalorder %s36, 2
      %s38 = scalar_select %p37, 0, %s36
      %s39 = ssub.s32 %s19, %s38
      %s40 = ssub.s32 %s21, %s30
      %s41 = sor.u32 %s39, %s40
      %s42 = ssub.s32 %s20, %s34
      %s43 = sor.u32 %s41, %s42
      %p44 = scmp.eq.s32.totalorder %s43, 0
      %s46 = sadd.s32 %s45, 1
      %s47 = scalar_select %p44, %s45, %s46
      %p50 = pneg %p44
      %p51 = scmp.eq.s32.totalorder %s12, 7
      %p52 = por %p50, %p51
      %p53 = scmp.ne.s32.totalorder %s45, %s48
      %p54 = scmp.eq.s32.totalorder %s12, 0
      %p55 = por %p53, %p54
      %p56 = scmp.ne.s32.totalorder %s45, %s48
      %p57 = scmp.eq.s32.totalorder %s17, 7
      %p58 = por %p56, %p57
      %p59 = scmp.ne.s32.totalorder %s48, %s49
      %p60 = scmp.eq.s32.totalorder %s17, 0
      %p61 = por %p59, %p60
      %p62 = scmp.ne.s32.totalorder %s48, %s49
      %p63 = scmp.eq.s32.totalorder %s18, 7
      %p64 = por %p62, %p63
      %p66 = scmp.ne.s32.totalorder %s49, %s65
      %p67 = scmp.eq.s32.totalorder %s18, 0
      %p68 = por %p66, %p67
      %s69 = ssub.s32 %s21, %s30
      %p70 = scmp.eq.s32.totalorder %s69, 0
      %s72 = sadd.s32 %s71, 1
      %s73 = scalar_select %p70, %s71, %s72
      %p76 = pneg %p70
      %p77 = scmp.eq.s32.totalorder %s12, 7
      %p78 = por %p76, %p77
      %p79 = scmp.ne.s32.totalorder %s71, %s74
      %p80 = scmp.eq.s32.totalorder %s12, 0
      %p81 = por %p79, %p80
      %p82 = scmp.ne.s32.totalorder %s71, %s74
      %p83 = scmp.eq.s32.totalorder %s17, 7
      %p84 = por %p82, %p83
      %p85 = scmp.ne.s32.totalorder %s74, %s75
      %p86 = scmp.eq.s32.totalorder %s17, 0
      %p87 = por %p85, %p86
      %p88 = scmp.ne.s32.totalorder %s74, %s75
      %p89 = scmp.eq.s32.totalorder %s18, 7
      %p90 = por %p88, %p89
      %p92 = scmp.ne.s32.totalorder %s75, %s91
      %p93 = scmp.eq.s32.totalorder %s18, 0
      %p94 = por %p92, %p93
      %s96 = sadd.s32 %s95, 1
      %p99 = scmp.eq.s32.totalorder %s12, 7
      %p100 = scmp.ne.s32.totalorder %s95, %s97
      %p101 = scmp.eq.s32.totalorder %s12, 0
      %p102 = por %p100, %p101
      %p103 = scmp.ne.s32.totalorder %s95, %s97
      %p104 = scmp.eq.s32.totalorder %s17, 7
      %p105 = por %p103, %p104
      %p106 = scmp.ne.s32.totalorder %s97, %s98
      %p107 = scmp.eq.s32.totalorder %s17, 0
      %p108 = por %p106, %p107
      %p109 = scmp.ne.s32.totalorder %s97, %s98
      %p110 = scmp.eq.s32.totalorder %s18, 7
      %p111 = por %p109, %p110
      %p113 = scmp.ne.s32.totalorder %s98, %s112
      %p114 = scmp.eq.s32.totalorder %s18, 0
      %p115 = por %p113, %p114
      %s116 = ssub.s32 %s19, %s38
      %s117 = ssub.s32 %s20, %s34
      %s118 = sor.u32 %s116, %s117
      %p119 = scmp.eq.s32.totalorder %s118, 0
      %s121 = sadd.s32 %s120, 1
      %s122 = scalar_select %p119, %s120, %s121
      %p125 = pneg %p119
      %p126 = scmp.eq.s32.totalorder %s12, 7
      %p127 = por %p125, %p126
      %p128 = scmp.ne.s32.totalorder %s120, %s123
      %p129 = scmp.eq.s32.totalorder %s12, 0
      %p130 = por %p128, %p129
      %p131 = scmp.ne.s32.totalorder %s120, %s123
      %p132 = scmp.eq.s32.totalorder %s17, 7
      %p133 = por %p131, %p132
      %p134 = scmp.ne.s32.totalorder %s123, %s124
      %p135 = scmp.eq.s32.totalorder %s17, 0
      %p136 = por %p134, %p135
      %p137 = scmp.ne.s32.totalorder %s123, %s124
      %p138 = scmp.eq.s32.totalorder %s18, 7
      %p139 = por %p137, %p138
      %p141 = scmp.ne.s32.totalorder %s124, %s140
      %p142 = scmp.eq.s32.totalorder %s18, 0
      %p143 = por %p141, %p142
      %p144 = scmp.le.s32.totalorder 1, %s12
      %p145 = scmp.lt.s32.totalorder %s12, 9
      %p146 = pnand %p144, %p145
      %p147 = pneg %p146
      // Predicated region
      $region9: #{run.17} parent=5 // pred_check
        _
      $region10: #{run.17} parent=5 // pred_check_branch
        %149 = sbr.rel (%p146) target = $region12
      $region11: #{run.17} parent=5 // pred_region
        %s150 = ssub.s32 %s12, 1
        // Predicated region
        $region13: #{run.17} parent=11 // pred_check
          %p151 = pneg %p108
        $region14: #{run.17} parent=11 // pred_check_branch
          %153 = sbr.rel (%p151) target = $region16
        $region15: #{run.17} parent=11 // pred_region
          _
        $region16: #{run.17} parent=11 // pred_fallthru
          _
      $region12: #{run.17} parent=5 // pred_fallthru
        _
      %p154 = scmp.lt.s32.totalorder %s12, 8
      // Predicated region
      $region17: #{run.17} parent=5 // pred_check
        %p155 = pneg %p154
      $region18: #{run.17} parent=5 // pred_check_branch
        %157 = sbr.rel (%p155) target = $region20
      $region19: #{run.17} parent=5 // pred_region
        // Predicated region
        $region21: #{run.17} parent=19 // pred_check
          %p158 = pneg %p55
        $region22: #{run.17} parent=19 // pred_check_branch
          %160 = sbr.rel (%p158) target = $region24
        $region23: #{run.17} parent=19 // pred_region
          %p161 = scmp.lt.s32.totalorder %s19, 1
          %s162 = scalar_select %p161, %s19, 1
          %p163 = scmp.lt.s32.totalorder %s21, 3
          %s164 = scalar_select %p163, %s21, 3
          %p165 = scmp.lt.s32.totalorder %s20, 0
          %s166 = scalar_select %p165, %s20, 0
          %s167 = sadd.s32 %s166, %s164
          %s168 = smul.addr %s162, 4
          %s169 = sadd.s32 %s167, %s168
          %s170 = smul.addr %s169, 8
          %s171 = scalar_lea.vmem %s0, %s170
        $region24: #{run.17} parent=19 // pred_fallthru
          _
        // Predicated region
        $region25: #{run.17} parent=19 // pred_check
          %p172 = pneg %p81
        $region26: #{run.17} parent=19 // pred_check_branch
          %174 = sbr.rel (%p172) target = $region28
        $region27: #{run.17} parent=19 // pred_region
          %p175 = scmp.lt.s32.totalorder %s21, 3
          %s176 = scalar_select %p175, %s21, 3
          %s177 = smul.addr %s176, 8
          %s178 = scalar_lea.vmem %s1, %s177
        $region28: #{run.17} parent=19 // pred_fallthru
          _
      $region20: #{run.17} parent=5 // pred_fallthru
        _
      %p179 = scmp.le.s32.totalorder 1, %s12
      %p180 = scmp.lt.s32.totalorder %s12, 9
      %p181 = pnand %p179, %p180
      %p182 = pneg %p181
      // Predicated region
      $region29: #{run.17} parent=5 // pred_check
        _
      $region30: #{run.17} parent=5 // pred_check_branch
        %184 = sbr.rel (%p181) target = $region32
      $region31: #{run.17} parent=5 // pred_region
        %s185 = ssub.s32 %s12, 1
        %p186 = scmp.lt.s32.totalorder %s22, 1
        %s187 = scalar_select %p186, %s22, 1
        %p188 = scmp.lt.s32.totalorder %s24, 3
        %s189 = scalar_select %p188, %s24, 3
        %p190 = scmp.lt.s32.totalorder %s23, 0
        %s191 = scalar_select %p190, %s23, 0
        %s192 = sadd.s32 %s191, %s189
        %s193 = smul.addr %s187, 4
        %s194 = sadd.s32 %s192, %s193
        %s195 = smul.addr %s194, 8
        %s196 = scalar_lea.vmem %s0, %s195
        %p197 = pneg %p61
        %p198 = pneg %p58
        %p199 = scmp.lt.s32.totalorder %s24, 3
        %s200 = scalar_select %p199, %s24, 3
        %s201 = smul.addr %s200, 8
        %s202 = scalar_lea.vmem %s1, %s201
        %p203 = pneg %p87
        %p204 = pneg %p84
        %p205 = pneg %p108
        %p206 = pneg %p105
        %p207 = pneg %p136
        %p208 = pneg %p133
        %s209 = sand.u32 %s123, 1
        %s210 = scalar_lea.sflag [#allocation4], %s209
        %s211 = sand.u32 %s123, 1
        %s212 = smul.addr %s211, 8
        %s213 = scalar_lea.vmem [#allocation3], %s212
        %p214 = scmp.lt.s32.totalorder %s22, 1
        %s215 = scalar_select %p214, %s22, 1
        %p216 = scmp.lt.s32.totalorder %s24, 3
        %s217 = scalar_select %p216, %s24, 3
        %p218 = scmp.lt.s32.totalorder %s23, 0
        %s219 = scalar_select %p218, %s23, 0
        %s220 = sadd.s32 %s219, %s217
        %s221 = smul.addr %s215, 4
        %s222 = sadd.s32 %s220, %s221
        %s223 = smul.addr %s222, 8
        %s224 = scalar_lea.vmem %s0, %s223
        %p225 = scmp.lt.s32.totalorder %s24, 3
        %s226 = scalar_select %p225, %s24, 3
        %s227 = smul.addr %s226, 8
        %s228 = scalar_lea.vmem %s1, %s227
        %p229 = scmp.eq.s32.totalorder %s24, 0
        // Predicated region
        $region33: #{run.17} parent=31 // pred_check
          %p230 = pneg %p229
        $region34: #{run.17} parent=31 // pred_check_branch
          %232 = sbr.rel (%p230) target = $region36
        $region35: #{run.17} parent=31 // pred_region
          %vm233 = vcmask 261120
          %234 = vst.msk [vmem:[#allocation2] sm:$0xff] %vm233, 0.0
        $region36: #{run.17} parent=31 // pred_fallthru
          _
        %v235 = vld [vmem:[#allocation2] sm:$0xff]
        %v236 = vld [vmem:[%s224] sm:$0xff]
        %v237 = vld [vmem:[%s228] sm:$0xff]
        %vm238 = vcmask 64512
        %v240 = vsel %vm238, %v236, 0
        %242 = vmatpush.msra.mxu0 0.0
        %243 = vmatpush.msra.mxu0 0.0
        %244 = vmatpush.msra.mxu0 0.0
        %245 = vmatpush.msra.mxu0 0.0
        %246 = vmatpush.msra.mxu0 0.0
        %247 = vmatpush.msra.mxu0 0.0
        %248 = vmatpush.msra.mxu0 0.0
        %249 = vmatpush.msra.mxu0 0.0
        %250 = vmatpush.msra.mxu0 0.0
        %251 = vmatpush.msra.mxu0 0.0
        %252 = vmatpush.msra.mxu0 0.0
        %253 = vmatpush.msra.mxu0 0.0
        %254 = vmatpush.msra.mxu0 0.0
        %255 = vmatpush.msra.mxu0 0.0
        %256 = vmatpush.msra.mxu0 0.0
        %257 = vmatpush.msra.mxu0 %v237
        %258 = vmatmul.f32.gmra.mxu0 %v240
        %v259 = vpop.f32.mrf.mxu0
        %v260 = vadd.f32 0.0, %v259
        %261 = vdwg.mxu0
        %v262 = vadd.f32 %v235, %v260
        %vm263 = vcmask 261120
        %264 = vst.msk [vmem:[#allocation2] sm:$0xff] %vm263, %v262
        %p265 = scmp.eq.s32.totalorder %s24, 3
        // Predicated region
        $region37: #{run.17} parent=31 // pred_check
          %p266 = pneg %p265
        $region38: #{run.17} parent=31 // pred_check_branch
          %268 = sbr.rel (%p266) target = $region40
        $region39: #{run.17} parent=31 // pred_region
          %v269 = vld [vmem:[#allocation2] sm:$0xff]
          %v270 = vld [vmem:[%s2] sm:$0x1]
          %v272 = vperm.slane %v270, 0
          %v274 = vadd.f32 %v269, %v272
          %275 = vst.msk [vmem:[%s213] sm:$0xff] %vm263, %v274
        $region40: #{run.17} parent=31 // pred_fallthru
          _
        %s276 = sand.u32 %s123, 1
        %s277 = scalar_lea.sflag [#allocation4], %s276
        %s278 = sand.u32 %s123, 1
        %s279 = smul.addr %s278, 8
        %s280 = scalar_lea.vmem [#allocation3], %s279
        // Predicated region
        $region41: #{run.17} parent=31 // pred_check
          %p281 = pneg %p133
        $region42: #{run.17} parent=31 // pred_check_branch
          %283 = sbr.rel (%p281) target = $region44
        $region43: #{run.17} parent=31 // pred_region
          %285 = vsyncadd %s277, 0
          %s286 = sadd.s32 %s23, %s22
          %s287 = smul.addr %s286, 8
          %s288 = scalar_lea.hbm %s3, %s287
          %s290 = sshll.u32 %s280, 4
          %s291 = int_to_ptr.vmem [resolvable:$true] %s290
          %s292 = sshll.u32 %s288, 4
          %s293 = int_to_ptr.hbm [resolvable:$true] %s292
          %295 = dma.vmem_to_hbm [thread:$0]  %s291, 128, %s293, %s277
        $region44: #{run.17} parent=31 // pred_fallthru
          _
      $region32: #{run.17} parent=5 // pred_fallthru
        _
      %p296 = scmp.le.s32.totalorder 2, %s12
      // Predicated region
      $region45: #{run.17} parent=5 // pred_check
        %p297 = pneg %p296
      $region46: #{run.17} parent=5 // pred_check_branch
        %299 = sbr.rel (%p297) target = $region48
      $region47: #{run.17} parent=5 // pred_region
        %s300 = ssub.s32 %s12, 2
        // Predicated region
        $region49: #{run.17} parent=47 // pred_check
          %p301 = pneg %p139
        $region50: #{run.17} parent=47 // pred_check_branch
          %303 = sbr.rel (%p301) target = $region52
        $region51: #{run.17} parent=47 // pred_region
          %s304 = sand.u32 %s124, 1
          %s305 = scalar_lea.sflag [#allocation4], %s304
          %s306 = sand.u32 %s124, 1
          %s307 = smul.addr %s306, 8
          %s308 = scalar_lea.vmem [#allocation3], %s307
          %310 = dma.done %s305, 128
        $region52: #{run.17} parent=47 // pred_fallthru
          _
      $region48: #{run.17} parent=5 // pred_fallthru
        _
    $region6: #{run.17} parent=1 // loop_footer
      %s16 = sadd.s32 1, %s12
    $region7: #{run.17} parent=1 // loop_footer_branch
      %11 = sbr.rel target = $region3
    $region8: #{run.17} parent=1 // loop_exit
      _
    %311 = vsyncpa [#allocation4], 1
    %s312 = scalar_lea.sflag [#allocation4], 1
    %313 = vsyncpa %s312, 1

// kernel: run.14
$region0: #{run.14}
  #allocation0 [shape = 'u32[]', space=smem, size = 0x4, offset = 0x4, fixed_abs, tag = 'smem constant byte address 0x4 - core index']
  #allocation1 [shape = 'u32[72,128]{1,0:T(1,128)}', space=vmem, size = 0x9000, scoped, tag = 'internal scratch']
  %s0 = inlined_call_operand.vmem [shape: f32[2,8,32], index: 0, kind: input, shape index: {}]
  %s1 = inlined_call_operand.vmem [shape: f32[2,8,32], index: 1, kind: input, shape index: {}]
  %s2 = inlined_call_operand.vmem [shape: f32[32,16], index: 2, kind: input, shape index: {}]
  %s3 = inlined_call_operand.vmem [shape: f32[32,16], index: 3, kind: input, shape index: {}]
  %s4 = inlined_call_operand.vmem [shape: f32[1,16], index: 4, kind: input, shape index: {}]
  %s5 = inlined_call_operand.hbm [shape: f32[2,8,16], index: 5, kind: output, shape index: {}]
  %s6 = sld [smem:[#allocation0]]
  $region53: #{run.14} parent=0
    _
  %s8 = ssub.s32 1, %s6
  %s9 = scalar_select 0, %s8, %s6
  $region1: #{run.14} parent=0
    #allocation2 [shape = 'u8[8192]{0}', space=vmem, size = 0x2000, scoped, tag = 'output window, operand 0']
    #allocation3 [shape = 's32[2]{0}', space=sflag, size = 0x8, scoped, tag = 'scoped memory for run.14']
    %10 = vsyncpa [#allocation3], 0
    %s11 = scalar_lea.sflag [#allocation3], 1
    %12 = vsyncpa %s11, 0
    loop: start=0, step=1, limit=4
    $region2: #{run.14} parent=1 // loop_pre_header
      _
    $region3: #{run.14} parent=1 // loop_header
      %s14 = sphi 0, %s18
      %p15 = scmp.ge.s32.totalorder %s14, 4
      %s21 = sphi 0, %s33
      %s22 = sphi 0, %s29
      %s23 = sphi 0, %s21
      %s24 = sphi 0, %s22
      %s25 = sphi 0, %s23
      %s26 = sphi 0, %s24
      %s38 = sphi 0, %s40
      %s41 = sphi 0, %s38
      %s42 = sphi 0, %s41
      %s58 = sphi 0, %s42
      %s66 = sphi 0, %s68
      %s69 = sphi 0, %s66
      %s70 = sphi 0, %s69
      %s86 = sphi 0, %s70
      %s90 = sphi 0, %s90
      %s92 = sphi 0, %s90
      %s93 = sphi 0, %s92
      %s107 = sphi 0, %s93
      %s111 = sphi 0, %s111
      %s113 = sphi 0, %s111
      %s114 = sphi 0, %s113
      %s128 = sphi 0, %s114
      %s132 = sphi 0, %s132
      %s134 = sphi 0, %s132
      %s135 = sphi 0, %s134
      %s149 = sphi 0, %s135
      %s157 = sphi 0, %s159
      %s160 = sphi 0, %s157
      %s161 = sphi 0, %s160
      %s177 = sphi 0, %s161
    $region4: #{run.14} parent=1 // loop_header_branch
      %17 = sbr.rel (%p15) target = $region8
    $region5: #{run.14} parent=1 // loop_body
      %s19 = ssub.s32 %s14, 1
      %s20 = ssub.s32 %s14, 2
      %s27 = sadd.s32 1, %s22
      %p28 = scmp.ge.s32.totalorder %s27, 1
      %s29 = scalar_select %p28, 0, %s27
      %s30 = sadd.s32 1, %s21
      %s31 = scalar_select %p28, %s30, %s21
      %p32 = scmp.ge.s32.totalorder %s31, 2
      %s33 = scalar_select %p32, 0, %s31
      %s34 = ssub.s32 %s21, %s33
      %s35 = ssub.s32 %s22, %s29
      %s36 = sor.u32 %s34, %s35
      %p37 = scmp.eq.s32.totalorder %s36, 0
      %s39 = sadd.s32 %s38, 1
      %s40 = scalar_select %p37, %s38, %s39
      %p43 = pneg %p37
      %p44 = scmp.eq.s32.totalorder %s14, 1
      %p45 = por %p43, %p44
      %p46 = scmp.ne.s32.totalorder %s38, %s41
      %p47 = scmp.eq.s32.totalorder %s14, 0
      %p48 = por %p46, %p47
      %p49 = scmp.ne.s32.totalorder %s38, %s41
      %p50 = scmp.eq.s32.totalorder %s19, 1
      %p51 = por %p49, %p50
      %p52 = scmp.ne.s32.totalorder %s41, %s42
      %p53 = scmp.eq.s32.totalorder %s19, 0
      %p54 = por %p52, %p53
      %p55 = scmp.ne.s32.totalorder %s41, %s42
      %p56 = scmp.eq.s32.totalorder %s20, 1
      %p57 = por %p55, %p56
      %p59 = scmp.ne.s32.totalorder %s42, %s58
      %p60 = scmp.eq.s32.totalorder %s20, 0
      %p61 = por %p59, %p60
      %s62 = ssub.s32 %s21, %s33
      %s63 = ssub.s32 %s22, %s29
      %s64 = sor.u32 %s62, %s63
      %p65 = scmp.eq.s32.totalorder %s64, 0
      %s67 = sadd.s32 %s66, 1
      %s68 = scalar_select %p65, %s66, %s67
      %p71 = pneg %p65
      %p72 = scmp.eq.s32.totalorder %s14, 1
      %p73 = por %p71, %p72
      %p74 = scmp.ne.s32.totalorder %s66, %s69
      %p75 = scmp.eq.s32.totalorder %s14, 0
      %p76 = por %p74, %p75
      %p77 = scmp.ne.s32.totalorder %s66, %s69
      %p78 = scmp.eq.s32.totalorder %s19, 1
      %p79 = por %p77, %p78
      %p80 = scmp.ne.s32.totalorder %s69, %s70
      %p81 = scmp.eq.s32.totalorder %s19, 0
      %p82 = por %p80, %p81
      %p83 = scmp.ne.s32.totalorder %s69, %s70
      %p84 = scmp.eq.s32.totalorder %s20, 1
      %p85 = por %p83, %p84
      %p87 = scmp.ne.s32.totalorder %s70, %s86
      %p88 = scmp.eq.s32.totalorder %s20, 0
      %p89 = por %p87, %p88
      %s91 = sadd.s32 %s90, 1
      %p94 = scmp.eq.s32.totalorder %s14, 1
      %p95 = scmp.ne.s32.totalorder %s90, %s92
      %p96 = scmp.eq.s32.totalorder %s14, 0
      %p97 = por %p95, %p96
      %p98 = scmp.ne.s32.totalorder %s90, %s92
      %p99 = scmp.eq.s32.totalorder %s19, 1
      %p100 = por %p98, %p99
      %p101 = scmp.ne.s32.totalorder %s92, %s93
      %p102 = scmp.eq.s32.totalorder %s19, 0
      %p103 = por %p101, %p102
      %p104 = scmp.ne.s32.totalorder %s92, %s93
      %p105 = scmp.eq.s32.totalorder %s20, 1
      %p106 = por %p104, %p105
      %p108 = scmp.ne.s32.totalorder %s93, %s107
      %p109 = scmp.eq.s32.totalorder %s20, 0
      %p110 = por %p108, %p109
      %s112 = sadd.s32 %s111, 1
      %p115 = scmp.eq.s32.totalorder %s14, 1
      %p116 = scmp.ne.s32.totalorder %s111, %s113
      %p117 = scmp.eq.s32.totalorder %s14, 0
      %p118 = por %p116, %p117
      %p119 = scmp.ne.s32.totalorder %s111, %s113
      %p120 = scmp.eq.s32.totalorder %s19, 1
      %p121 = por %p119, %p120
      %p122 = scmp.ne.s32.totalorder %s113, %s114
      %p123 = scmp.eq.s32.totalorder %s19, 0
      %p124 = por %p122, %p123
      %p125 = scmp.ne.s32.totalorder %s113, %s114
      %p126 = scmp.eq.s32.totalorder %s20, 1
      %p127 = por %p125, %p126
      %p129 = scmp.ne.s32.totalorder %s114, %s128
      %p130 = scmp.eq.s32.totalorder %s20, 0
      %p131 = por %p129, %p130
      %s133 = sadd.s32 %s132, 1
      %p136 = scmp.eq.s32.totalorder %s14, 1
      %p137 = scmp.ne.s32.totalorder %s132, %s134
      %p138 = scmp.eq.s32.totalorder %s14, 0
      %p139 = por %p137, %p138
      %p140 = scmp.ne.s32.totalorder %s132, %s134
      %p141 = scmp.eq.s32.totalorder %s19, 1
      %p142 = por %p140, %p141
      %p143 = scmp.ne.s32.totalorder %s134, %s135
      %p144 = scmp.eq.s32.totalorder %s19, 0
      %p145 = por %p143, %p144
      %p146 = scmp.ne.s32.totalorder %s134, %s135
      %p147 = scmp.eq.s32.totalorder %s20, 1
      %p148 = por %p146, %p147
      %p150 = scmp.ne.s32.totalorder %s135, %s149
      %p151 = scmp.eq.s32.totalorder %s20, 0
      %p152 = por %p150, %p151
      %s153 = ssub.s32 %s21, %s33
      %s154 = ssub.s32 %s22, %s29
      %s155 = sor.u32 %s153, %s154
      %p156 = scmp.eq.s32.totalorder %s155, 0
      %s158 = sadd.s32 %s157, 1
      %s159 = scalar_select %p156, %s157, %s158
      %p162 = pneg %p156
      %p163 = scmp.eq.s32.totalorder %s14, 1
      %p164 = por %p162, %p163
      %p165 = scmp.ne.s32.totalorder %s157, %s160
      %p166 = scmp.eq.s32.totalorder %s14, 0
      %p167 = por %p165, %p166
      %p168 = scmp.ne.s32.totalorder %s157, %s160
      %p169 = scmp.eq.s32.totalorder %s19, 1
      %p170 = por %p168, %p169
      %p171 = scmp.ne.s32.totalorder %s160, %s161
      %p172 = scmp.eq.s32.totalorder %s19, 0
      %p173 = por %p171, %p172
      %p174 = scmp.ne.s32.totalorder %s160, %s161
      %p175 = scmp.eq.s32.totalorder %s20, 1
      %p176 = por %p174, %p175
      %p178 = scmp.ne.s32.totalorder %s161, %s177
      %p179 = scmp.eq.s32.totalorder %s20, 0
      %p180 = por %p178, %p179
      %p181 = scmp.le.s32.totalorder 1, %s14
      %p182 = scmp.lt.s32.totalorder %s14, 3
      %p183 = pnand %p181, %p182
      %p184 = pneg %p183
      // Predicated region
      $region9: #{run.14} parent=5 // pred_check
        _
      $region10: #{run.14} parent=5 // pred_check_branch
        %186 = sbr.rel (%p183) target = $region12
      $region11: #{run.14} parent=5 // pred_region
        %s187 = ssub.s32 %s14, 1
        // Predicated region
        $region13: #{run.14} parent=11 // pred_check
          %p188 = pneg %p103
        $region14: #{run.14} parent=11 // pred_check_branch
          %190 = sbr.rel (%p188) target = $region16
        $region15: #{run.14} parent=11 // pred_region
          _
        $region16: #{run.14} parent=11 // pred_fallthru
          _
        // Predicated region
        $region17: #{run.14} parent=11 // pred_check
          %p191 = pneg %p124
        $region18: #{run.14} parent=11 // pred_check_branch
          %193 = sbr.rel (%p191) target = $region20
        $region19: #{run.14} parent=11 // pred_region
          _
        $region20: #{run.14} parent=11 // pred_fallthru
          _
        // Predicated region
        $region21: #{run.14} parent=11 // pred_check
          %p194 = pneg %p145
        $region22: #{run.14} parent=11 // pred_check_branch
          %196 = sbr.rel (%p194) target = $region24
        $region23: #{run.14} parent=11 // pred_region
          _
        $region24: #{run.14} parent=11 // pred_fallthru
          _
      $region12: #{run.14} parent=5 // pred_fallthru
        _
      %p197 = scmp.lt.s32.totalorder %s14, 2
      // Predicated region
      $region25: #{run.14} parent=5 // pred_check
        %p198 = pneg %p197
      $region26: #{run.14} parent=5 // pred_check_branch
        %200 = sbr.rel (%p198) target = $region28
      $region27: #{run.14} parent=5 // pred_region
        // Predicated region
        $region29: #{run.14} parent=27 // pred_check
          %p201 = pneg %p48
        $region30: #{run.14} parent=27 // pred_check_branch
          %203 = sbr.rel (%p201) target = $region32
        $region31: #{run.14} parent=27 // pred_region
          %p204 = scmp.lt.s32.totalorder %s21, 1
          %s205 = scalar_select %p204, %s21, 1
          %p206 = scmp.lt.s32.totalorder %s22, 0
          %s207 = scalar_select %p206, %s22, 0
          %s208 = sadd.s32 %s207, %s205
          %s209 = smul.addr %s208, 8
          %s210 = scalar_lea.vmem %s0, %s209
        $region32: #{run.14} parent=27 // pred_fallthru
          _
        // Predicated region
        $region33: #{run.14} parent=27 // pred_check
          %p211 = pneg %p76
        $region34: #{run.14} parent=27 // pred_check_branch
          %213 = sbr.rel (%p211) target = $region36
        $region35: #{run.14} parent=27 // pred_region
          %p214 = scmp.lt.s32.totalorder %s21, 1
          %s215 = scalar_select %p214, %s21, 1
          %p216 = scmp.lt.s32.totalorder %s22, 0
          %s217 = scalar_select %p216, %s22, 0
          %s218 = sadd.s32 %s217, %s215
          %s219 = smul.addr %s218, 8
          %s220 = scalar_lea.vmem %s1, %s219
        $region36: #{run.14} parent=27 // pred_fallthru
          _
      $region28: #{run.14} parent=5 // pred_fallthru
        _
      %p221 = scmp.le.s32.totalorder 1, %s14
      %p222 = scmp.lt.s32.totalorder %s14, 3
      %p223 = pnand %p221, %p222
      %p224 = pneg %p223
      // Predicated region
      $region37: #{run.14} parent=5 // pred_check
        _
      $region38: #{run.14} parent=5 // pred_check_branch
        %226 = sbr.rel (%p223) target = $region40
      $region39: #{run.14} parent=5 // pred_region
        %s227 = ssub.s32 %s14, 1
        %p228 = scmp.lt.s32.totalorder %s23, 1
        %s229 = scalar_select %p228, %s23, 1
        %p230 = scmp.lt.s32.totalorder %s24, 0
        %s231 = scalar_select %p230, %s24, 0
        %s232 = sadd.s32 %s231, %s229
        %s233 = smul.addr %s232, 8
        %s234 = scalar_lea.vmem %s0, %s233
        %p235 = pneg %p54
        %p236 = pneg %p51
        %p237 = scmp.lt.s32.totalorder %s23, 1
        %s238 = scalar_select %p237, %s23, 1
        %p239 = scmp.lt.s32.totalorder %s24, 0
        %s240 = scalar_select %p239, %s24, 0
        %s241 = sadd.s32 %s240, %s238
        %s242 = smul.addr %s241, 8
        %s243 = scalar_lea.vmem %s1, %s242
        %p244 = pneg %p82
        %p245 = pneg %p79
        %p246 = pneg %p103
        %p247 = pneg %p100
        %p248 = pneg %p124
        %p249 = pneg %p121
        %p250 = pneg %p145
        %p251 = pneg %p142
        %p252 = pneg %p173
        %p253 = pneg %p170
        %s254 = sand.u32 %s160, 1
        %s255 = scalar_lea.sflag [#allocation3], %s254
        %s256 = sand.u32 %s160, 1
        %s257 = smul.addr %s256, 8
        %s258 = scalar_lea.vmem [#allocation2], %s257
        %p259 = scmp.lt.s32.totalorder %s23, 1
        %s260 = scalar_select %p259, %s23, 1
        %p261 = scmp.lt.s32.totalorder %s24, 0
        %s262 = scalar_select %p261, %s24, 0
        %s263 = sadd.s32 %s262, %s260
        %s264 = smul.addr %s263, 8
        %s265 = scalar_lea.vmem %s0, %s264
        %p266 = scmp.lt.s32.totalorder %s23, 1
        %s267 = scalar_select %p266, %s23, 1
        %p268 = scmp.lt.s32.totalorder %s24, 0
        %s269 = scalar_select %p268, %s24, 0
        %s270 = sadd.s32 %s269, %s267
        %s271 = smul.addr %s270, 8
        %s272 = scalar_lea.vmem %s1, %s271
        %v273 = vld [vmem:[%s265] sm:$0xff]
        %v274 = vld [vmem:[%s2] sm:$0xff]
        %v275 = vld [vmem:[%s2 + $0x8] sm:$0xff]
        %v276 = vld [vmem:[%s2 + $0x10] sm:$0xff]
        %v277 = vld [vmem:[%s2 + $0x18] sm:$0xff]
        %v278 = vld [vmem:[%s272] sm:$0xff]
        %v279 = vld [vmem:[%s3] sm:$0xff]
        %v280 = vld [vmem:[%s3 + $0x8] sm:$0xff]
        %v281 = vld [vmem:[%s3 + $0x10] sm:$0xff]
        %v282 = vld [vmem:[%s3 + $0x18] sm:$0xff]
        %vm283 = vcmask 261120
        %v285 = vsel %vm283, %v278, 0
        %287 = vmatpush.msra.mxu0 0.0
        %288 = vmatpush.msra.mxu0 0.0
        %289 = vmatpush.msra.mxu0 0.0
        %290 = vmatpush.msra.mxu0 0.0
        %291 = vmatpush.msra.mxu0 0.0
        %292 = vmatpush.msra.mxu0 0.0
        %293 = vmatpush.msra.mxu0 0.0
        %294 = vmatpush.msra.mxu0 0.0
        %295 = vmatpush.msra.mxu0 0.0
        %296 = vmatpush.msra.mxu0 0.0
        %297 = vmatpush.msra.mxu0 0.0
        %298 = vmatpush.msra.mxu0 0.0
        %299 = vmatpush.msra.mxu0 %v282
        %300 = vmatpush.msra.mxu0 %v281
        %301 = vmatpush.msra.mxu0 %v280
        %302 = vmatpush.msra.mxu0 %v279
        %303 = vmatmul.f32.gmra.mxu0 %v285
        %v304 = vpop.f32.mrf.mxu0
        %v305 = vadd.f32 0.0, %v304
        %306 = vdwg.mxu0
        %v308 = vsel %vm283, %v273, 0
        %310 = vmatpush.msra.mxu0 0.0
        %311 = vmatpush.msra.mxu0 0.0
        %312 = vmatpush.msra.mxu0 0.0
        %313 = vmatpush.msra.mxu0 0.0
        %314 = vmatpush.msra.mxu0 0.0
        %315 = vmatpush.msra.mxu0 0.0
        %316 = vmatpush.msra.mxu0 0.0
        %317 = vmatpush.msra.mxu0 0.0
        %318 = vmatpush.msra.mxu0 0.0
        %319 = vmatpush.msra.mxu0 0.0
        %320 = vmatpush.msra.mxu0 0.0
        %321 = vmatpush.msra.mxu0 0.0
        %322 = vmatpush.msra.mxu0 %v277
        %323 = vmatpush.msra.mxu0 %v276
        %324 = vmatpush.msra.mxu0 %v275
        %325 = vmatpush.msra.mxu0 %v274
        %326 = vmatmul.f32.gmra.mxu0 %v308
        %v327 = vpop.f32.mrf.mxu0
        %v328 = vadd.f32 %v305, %v327
        %329 = vdwg.mxu0
        %v330 = vld [vmem:[%s4] sm:$0x1]
        %v332 = vperm.slane %v330, 0
        %v334 = vadd.f32 %v328, %v332
        %vm335 = vcmask 130048
        %336 = vst.msk [vmem:[%s258] sm:$0xff] %vm335, %v334
        %s337 = sand.u32 %s160, 1
        %s338 = scalar_lea.sflag [#allocation3], %s337
        %s339 = sand.u32 %s160, 1
        %s340 = smul.addr %s339, 8
        %s341 = scalar_lea.vmem [#allocation2], %s340
        // Predicated region
        $region41: #{run.14} parent=39 // pred_check
          %p342 = pneg %p170
        $region42: #{run.14} parent=39 // pred_check_branch
          %344 = sbr.rel (%p342) target = $region44
        $region43: #{run.14} parent=39 // pred_region
          %346 = vsyncadd %s338, 0
          %s347 = sadd.s32 %s24, %s23
          %s348 = smul.addr %s347, 8
          %s349 = scalar_lea.hbm %s5, %s348
          %s351 = sshll.u32 %s341, 4
          %s352 = int_to_ptr.vmem [resolvable:$true] %s351
          %s353 = sshll.u32 %s349, 4
          %s354 = int_to_ptr.hbm [resolvable:$true] %s353
          %356 = dma.vmem_to_hbm [thread:$0]  %s352, 128, %s354, %s338
        $region44: #{run.14} parent=39 // pred_fallthru
          _
      $region40: #{run.14} parent=5 // pred_fallthru
        _
      %p357 = scmp.le.s32.totalorder 2, %s14
      // Predicated region
      $region45: #{run.14} parent=5 // pred_check
        %p358 = pneg %p357
      $region46: #{run.14} parent=5 // pred_check_branch
        %360 = sbr.rel (%p358) target = $region48
      $region47: #{run.14} parent=5 // pred_region
        %s361 = ssub.s32 %s14, 2
        // Predicated region
        $region49: #{run.14} parent=47 // pred_check
          %p362 = pneg %p176
        $region50: #{run.14} parent=47 // pred_check_branch
          %364 = sbr.rel (%p362) target = $region52
        $region51: #{run.14} parent=47 // pred_region
          %s365 = sand.u32 %s161, 1
          %s366 = scalar_lea.sflag [#allocation3], %s365
          %s367 = sand.u32 %s161, 1
          %s368 = smul.addr %s367, 8
          %s369 = scalar_lea.vmem [#allocation2], %s368
          %371 = dma.done %s366, 128
        $region52: #{run.14} parent=47 // pred_fallthru
          _
      $region48: #{run.14} parent=5 // pred_fallthru
        _
    $region6: #{run.14} parent=1 // loop_footer
      %s18 = sadd.s32 1, %s14
    $region7: #{run.14} parent=1 // loop_footer_branch
      %13 = sbr.rel target = $region3
    $region8: #{run.14} parent=1 // loop_exit
      _
    %372 = vsyncpa [#allocation3], 1
    %s373 = scalar_lea.sflag [#allocation3], 1
    %374 = vsyncpa %s373, 1

// kernel: run.16
$region0: #{run.16}
  #allocation0 [shape = 'u32[]', space=smem, size = 0x4, offset = 0x4, fixed_abs, tag = 'smem constant byte address 0x4 - core index']
  #allocation1 [shape = 'u32[72,128]{1,0:T(1,128)}', space=vmem, size = 0x9000, scoped, tag = 'internal scratch']
  %s0 = inlined_call_operand.vmem [shape: f32[2,8,2,16], index: 0, kind: input, shape index: {}]
  %s1 = inlined_call_operand.vmem [shape: f32[2,8,2,16], index: 1, kind: input, shape index: {}]
  %s2 = inlined_call_operand.vmem [shape: f32[2,8,2,16], index: 2, kind: input, shape index: {}]
  %s3 = inlined_call_operand.vmem [shape: f32[2,8,2,16], index: 3, kind: input, shape index: {}]
  %s4 = inlined_call_operand.vmem [shape: f32[2,8,2,2,8], index: 4, kind: input, shape index: {}, may-alias: {4,5}]
  %s5 = inlined_call_operand.vmem [shape: f32[2,8,2,2,8], index: 5, kind: input, shape index: {}, may-alias: {4,5}]
  %s6 = inlined_call_operand.vmem [shape: f32[2,4,8,8], index: 6, kind: output, shape index: {0}]
  %s7 = inlined_call_operand.hbm [shape: f32[2,4,8,8], index: 7, kind: output, shape index: {1}]
  %8 = xla_tuple %s6, %s7
  %s9 = sld [smem:[#allocation0]]
  $region147: #{run.16} parent=0
    _
  %s11 = ssub.s32 1, %s9
  %s12 = scalar_select 0, %s11, %s9
  $region1: #{run.16} parent=0
    #allocation2 [shape = 'u8[16384]{0}', space=vmem, size = 0x4000, scoped, tag = 'input window, operand 4']
    #allocation3 [shape = 'u8[16384]{0}', space=vmem, size = 0x4000, scoped, tag = 'input window, operand 5']
    #allocation4 [shape = 'u8[32768]{0}', space=vmem, size = 0x8000, scoped, tag = 'output window, operand 1']
    #allocation5 [shape = 's32[2]{0}', space=sflag, size = 0x8, scoped, tag = 'scoped memory for run.16']
    %13 = vsyncpa [#allocation5], 0
    %s14 = scalar_lea.sflag [#allocation5], 1
    %15 = vsyncpa %s14, 0
    loop: start=0, step=1, limit=4
    $region2: #{run.16} parent=1 // loop_pre_header
      _
    $region3: #{run.16} parent=1 // loop_header
      %s17 = sphi 0, %s21
      %p18 = scmp.ge.s32.totalorder %s17, 4
      %s24 = sphi 0, %s36
      %s25 = sphi 0, %s32
      %s26 = sphi 0, %s24
      %s27 = sphi 0, %s25
      %s28 = sphi 0, %s26
      %s29 = sphi 0, %s27
      %s41 = sphi 0, %s43
      %s44 = sphi 0, %s41
      %s45 = sphi 0, %s44
      %s61 = sphi 0, %s45
      %s69 = sphi 0, %s71
      %s72 = sphi 0, %s69
      %s73 = sphi 0, %s72
      %s89 = sphi 0, %s73
      %s95 = sphi 0, %s97
      %s98 = sphi 0, %s95
      %s99 = sphi 0, %s98
      %s115 = sphi 0, %s99
      %s121 = sphi 0, %s123
      %s124 = sphi 0, %s121
      %s125 = sphi 0, %s124
      %s141 = sphi 0, %s125
      %s147 = sphi 0, %s149
      %s150 = sphi 0, %s147
      %s151 = sphi 0, %s150
      %s167 = sphi 0, %s151
      %s173 = sphi 0, %s175
      %s176 = sphi 0, %s173
      %s177 = sphi 0, %s176
      %s193 = sphi 0, %s177
      %s201 = sphi 0, %s203
      %s204 = sphi 0, %s201
      %s205 = sphi 0, %s204
      %s221 = sphi 0, %s205
      %s229 = sphi 0, %s231
      %s232 = sphi 0, %s229
      %s233 = sphi 0, %s232
      %s249 = sphi 0, %s233
    $region4: #{run.16} parent=1 // loop_header_branch
      %20 = sbr.rel (%p18) target = $region8
    $region5: #{run.16} parent=1 // loop_body
      %s22 = ssub.s32 %s17, 1
      %s23 = ssub.s32 %s17, 2
      %s30 = sadd.s32 1, %s25
      %p31 = scmp.ge.s32.totalorder %s30, 1
      %s32 = scalar_select %p31, 0, %s30
      %s33 = sadd.s32 1, %s24
      %s34 = scalar_select %p31, %s33, %s24
      %p35 = scmp.ge.s32.totalorder %s34, 2
      %s36 = scalar_select %p35, 0, %s34
      %s37 = ssub.s32 %s24, %s36
      %s38 = ssub.s32 %s25, %s32
      %s39 = sor.u32 %s37, %s38
      %p40 = scmp.eq.s32.totalorder %s39, 0
      %s42 = sadd.s32 %s41, 1
      %s43 = scalar_select %p40, %s41, %s42
      %p46 = pneg %p40
      %p47 = scmp.eq.s32.totalorder %s17, 1
      %p48 = por %p46, %p47
      %p49 = scmp.ne.s32.totalorder %s41, %s44
      %p50 = scmp.eq.s32.totalorder %s17, 0
      %p51 = por %p49, %p50
      %p52 = scmp.ne.s32.totalorder %s41, %s44
      %p53 = scmp.eq.s32.totalorder %s22, 1
      %p54 = por %p52, %p53
      %p55 = scmp.ne.s32.totalorder %s44, %s45
      %p56 = scmp.eq.s32.totalorder %s22, 0
      %p57 = por %p55, %p56
      %p58 = scmp.ne.s32.totalorder %s44, %s45
      %p59 = scmp.eq.s32.totalorder %s23, 1
      %p60 = por %p58, %p59
      %p62 = scmp.ne.s32.totalorder %s45, %s61
      %p63 = scmp.eq.s32.totalorder %s23, 0
      %p64 = por %p62, %p63
      %s65 = ssub.s32 %s24, %s36
      %s66 = ssub.s32 %s25, %s32
      %s67 = sor.u32 %s65, %s66
      %p68 = scmp.eq.s32.totalorder %s67, 0
      %s70 = sadd.s32 %s69, 1
      %s71 = scalar_select %p68, %s69, %s70
      %p74 = pneg %p68
      %p75 = scmp.eq.s32.totalorder %s17, 1
      %p76 = por %p74, %p75
      %p77 = scmp.ne.s32.totalorder %s69, %s72
      %p78 = scmp.eq.s32.totalorder %s17, 0
      %p79 = por %p77, %p78
      %p80 = scmp.ne.s32.totalorder %s69, %s72
      %p81 = scmp.eq.s32.totalorder %s22, 1
      %p82 = por %p80, %p81
      %p83 = scmp.ne.s32.totalorder %s72, %s73
      %p84 = scmp.eq.s32.totalorder %s22, 0
      %p85 = por %p83, %p84
      %p86 = scmp.ne.s32.totalorder %s72, %s73
      %p87 = scmp.eq.s32.totalorder %s23, 1
      %p88 = por %p86, %p87
      %p90 = scmp.ne.s32.totalorder %s73, %s89
      %p91 = scmp.eq.s32.totalorder %s23, 0
      %p92 = por %p90, %p91
      %s93 = ssub.s32 %s24, %s36
      %p94 = scmp.eq.s32.totalorder %s93, 0
      %s96 = sadd.s32 %s95, 1
      %s97 = scalar_select %p94, %s95, %s96
      %p100 = pneg %p94
      %p101 = scmp.eq.s32.totalorder %s17, 1
      %p102 = por %p100, %p101
      %p103 = scmp.ne.s32.totalorder %s95, %s98
      %p104 = scmp.eq.s32.totalorder %s17, 0
      %p105 = por %p103, %p104
      %p106 = scmp.ne.s32.totalorder %s95, %s98
      %p107 = scmp.eq.s32.totalorder %s22, 1
      %p108 = por %p106, %p107
      %p109 = scmp.ne.s32.totalorder %s98, %s99
      %p110 = scmp.eq.s32.totalorder %s22, 0
      %p111 = por %p109, %p110
      %p112 = scmp.ne.s32.totalorder %s98, %s99
      %p113 = scmp.eq.s32.totalorder %s23, 1
      %p114 = por %p112, %p113
      %p116 = scmp.ne.s32.totalorder %s99, %s115
      %p117 = scmp.eq.s32.totalorder %s23, 0
      %p118 = por %p116, %p117
      %s119 = ssub.s32 %s24, %s36
      %p120 = scmp.eq.s32.totalorder %s119, 0
      %s122 = sadd.s32 %s121, 1
      %s123 = scalar_select %p120, %s121, %s122
      %p126 = pneg %p120
      %p127 = scmp.eq.s32.totalorder %s17, 1
      %p128 = por %p126, %p127
      %p129 = scmp.ne.s32.totalorder %s121, %s124
      %p130 = scmp.eq.s32.totalorder %s17, 0
      %p131 = por %p129, %p130
      %p132 = scmp.ne.s32.totalorder %s121, %s124
      %p133 = scmp.eq.s32.totalorder %s22, 1
      %p134 = por %p132, %p133
      %p135 = scmp.ne.s32.totalorder %s124, %s125
      %p136 = scmp.eq.s32.totalorder %s22, 0
      %p137 = por %p135, %p136
      %p138 = scmp.ne.s32.totalorder %s124, %s125
      %p139 = scmp.eq.s32.totalorder %s23, 1
      %p140 = por %p138, %p139
      %p142 = scmp.ne.s32.totalorder %s125, %s141
      %p143 = scmp.eq.s32.totalorder %s23, 0
      %p144 = por %p142, %p143
      %s145 = ssub.s32 %s24, %s36
      %p146 = scmp.eq.s32.totalorder %s145, 0
      %s148 = sadd.s32 %s147, 1
      %s149 = scalar_select %p146, %s147, %s148
      %p152 = pneg %p146
      %p153 = scmp.eq.s32.totalorder %s17, 1
      %p154 = por %p152, %p153
      %p155 = scmp.ne.s32.totalorder %s147, %s150
      %p156 = scmp.eq.s32.totalorder %s17, 0
      %p157 = por %p155, %p156
      %p158 = scmp.ne.s32.totalorder %s147, %s150
      %p159 = scmp.eq.s32.totalorder %s22, 1
      %p160 = por %p158, %p159
      %p161 = scmp.ne.s32.totalorder %s150, %s151
      %p162 = scmp.eq.s32.totalorder %s22, 0
      %p163 = por %p161, %p162
      %p164 = scmp.ne.s32.totalorder %s150, %s151
      %p165 = scmp.eq.s32.totalorder %s23, 1
      %p166 = por %p164, %p165
      %p168 = scmp.ne.s32.totalorder %s151, %s167
      %p169 = scmp.eq.s32.totalorder %s23, 0
      %p170 = por %p168, %p169
      %s171 = ssub.s32 %s24, %s36
      %p172 = scmp.eq.s32.totalorder %s171, 0
      %s174 = sadd.s32 %s173, 1
      %s175 = scalar_select %p172, %s173, %s174
      %p178 = pneg %p172
      %p179 = scmp.eq.s32.totalorder %s17, 1
      %p180 = por %p178, %p179
      %p181 = scmp.ne.s32.totalorder %s173, %s176
      %p182 = scmp.eq.s32.totalorder %s17, 0
      %p183 = por %p181, %p182
      %p184 = scmp.ne.s32.totalorder %s173, %s176
      %p185 = scmp.eq.s32.totalorder %s22, 1
      %p186 = por %p184, %p185
      %p187 = scmp.ne.s32.totalorder %s176, %s177
      %p188 = scmp.eq.s32.totalorder %s22, 0
      %p189 = por %p187, %p188
      %p190 = scmp.ne.s32.totalorder %s176, %s177
      %p191 = scmp.eq.s32.totalorder %s23, 1
      %p192 = por %p190, %p191
      %p194 = scmp.ne.s32.totalorder %s177, %s193
      %p195 = scmp.eq.s32.totalorder %s23, 0
      %p196 = por %p194, %p195
      %s197 = ssub.s32 %s24, %s36
      %s198 = ssub.s32 %s25, %s32
      %s199 = sor.u32 %s197, %s198
      %p200 = scmp.eq.s32.totalorder %s199, 0
      %s202 = sadd.s32 %s201, 1
      %s203 = scalar_select %p200, %s201, %s202
      %p206 = pneg %p200
      %p207 = scmp.eq.s32.totalorder %s17, 1
      %p208 = por %p206, %p207
      %p209 = scmp.ne.s32.totalorder %s201, %s204
      %p210 = scmp.eq.s32.totalorder %s17, 0
      %p211 = por %p209, %p210
      %p212 = scmp.ne.s32.totalorder %s201, %s204
      %p213 = scmp.eq.s32.totalorder %s22, 1
      %p214 = por %p212, %p213
      %p215 = scmp.ne.s32.totalorder %s204, %s205
      %p216 = scmp.eq.s32.totalorder %s22, 0
      %p217 = por %p215, %p216
      %p218 = scmp.ne.s32.totalorder %s204, %s205
      %p219 = scmp.eq.s32.totalorder %s23, 1
      %p220 = por %p218, %p219
      %p222 = scmp.ne.s32.totalorder %s205, %s221
      %p223 = scmp.eq.s32.totalorder %s23, 0
      %p224 = por %p222, %p223
      %s225 = ssub.s32 %s24, %s36
      %s226 = ssub.s32 %s25, %s32
      %s227 = sor.u32 %s225, %s226
      %p228 = scmp.eq.s32.totalorder %s227, 0
      %s230 = sadd.s32 %s229, 1
      %s231 = scalar_select %p228, %s229, %s230
      %p234 = pneg %p228
      %p235 = scmp.eq.s32.totalorder %s17, 1
      %p236 = por %p234, %p235
      %p237 = scmp.ne.s32.totalorder %s229, %s232
      %p238 = scmp.eq.s32.totalorder %s17, 0
      %p239 = por %p237, %p238
      %p240 = scmp.ne.s32.totalorder %s229, %s232
      %p241 = scmp.eq.s32.totalorder %s22, 1
      %p242 = por %p240, %p241
      %p243 = scmp.ne.s32.totalorder %s232, %s233
      %p244 = scmp.eq.s32.totalorder %s22, 0
      %p245 = por %p243, %p244
      %p246 = scmp.ne.s32.totalorder %s232, %s233
      %p247 = scmp.eq.s32.totalorder %s23, 1
      %p248 = por %p246, %p247
      %p250 = scmp.ne.s32.totalorder %s233, %s249
      %p251 = scmp.eq.s32.totalorder %s23, 0
      %p252 = por %p250, %p251
      %p253 = scmp.le.s32.totalorder 1, %s17
      %p254 = scmp.lt.s32.totalorder %s17, 3
      %p255 = pnand %p253, %p254
      %p256 = pneg %p255
      // Predicated region
      $region9: #{run.16} parent=5 // pred_check
        _
      $region10: #{run.16} parent=5 // pred_check_branch
        %258 = sbr.rel (%p255) target = $region12
      $region11: #{run.16} parent=5 // pred_region
        %s259 = ssub.s32 %s17, 1
      $region12: #{run.16} parent=5 // pred_fallthru
        _
      %p260 = scmp.lt.s32.totalorder %s17, 2
      // Predicated region
      $region13: #{run.16} parent=5 // pred_check
        %p261 = pneg %p260
      $region14: #{run.16} parent=5 // pred_check_branch
        %263 = sbr.rel (%p261) target = $region16
      $region15: #{run.16} parent=5 // pred_region
        // Predicated region
        $region17: #{run.16} parent=15 // pred_check
          %p264 = pneg %p51
        $region18: #{run.16} parent=15 // pred_check_branch
          %266 = sbr.rel (%p264) target = $region20
        $region19: #{run.16} parent=15 // pred_region
          %s267 = smul.u32 8, %s25
          %p268 = scmp.lt.s32.totalorder %s24, 1
          %s269 = scalar_select %p268, %s24, 1
          %p270 = scmp.lt.s32.totalorder %s267, 7
          %s271 = scalar_select %p270, %s267, 7
          %s272 = smul.addr %s269, 8
          %s273 = sadd.s32 %s271, %s272
          %s274 = smul.addr %s273, 2
          %s275 = scalar_lea.vmem %s0, %s274
          %s276 = smul.u32 8, %s25
        $region20: #{run.16} parent=15 // pred_fallthru
          _
        // Predicated region
        $region21: #{run.16} parent=15 // pred_check
          %p277 = pneg %p79
        $region22: #{run.16} parent=15 // pred_check_branch
          %279 = sbr.rel (%p277) target = $region24
        $region23: #{run.16} parent=15 // pred_region
          %s280 = smul.u32 8, %s25
          %p281 = scmp.lt.s32.totalorder %s24, 1
          %s282 = scalar_select %p281, %s24, 1
          %p283 = scmp.lt.s32.totalorder %s280, 7
          %s284 = scalar_select %p283, %s280, 7
          %s285 = smul.addr %s282, 8
          %s286 = sadd.s32 %s284, %s285
          %s287 = smul.addr %s286, 2
          %s288 = scalar_lea.vmem %s1, %s287
          %s289 = smul.u32 8, %s25
        $region24: #{run.16} parent=15 // pred_fallthru
          _
        // Predicated region
        $region25: #{run.16} parent=15 // pred_check
          %p290 = pneg %p105
        $region26: #{run.16} parent=15 // pred_check_branch
          %292 = sbr.rel (%p290) target = $region28
        $region27: #{run.16} parent=15 // pred_region
          %p293 = scmp.lt.s32.totalorder %s24, 1
          %s294 = scalar_select %p293, %s24, 1
          %s295 = smul.addr %s294, 8
          %s296 = smul.addr %s295, 2
          %s297 = scalar_lea.vmem %s2, %s296
        $region28: #{run.16} parent=15 // pred_fallthru
          _
        // Predicated region
        $region29: #{run.16} parent=15 // pred_check
          %p298 = pneg %p131
        $region30: #{run.16} parent=15 // pred_check_branch
          %300 = sbr.rel (%p298) target = $region32
        $region31: #{run.16} parent=15 // pred_region
          %p301 = scmp.lt.s32.totalorder %s24, 1
          %s302 = scalar_select %p301, %s24, 1
          %s303 = smul.addr %s302, 8
          %s304 = smul.addr %s303, 2
          %s305 = scalar_lea.vmem %s3, %s304
        $region32: #{run.16} parent=15 // pred_fallthru
          _
        // Predicated region
        $region33: #{run.16} parent=15 // pred_check
          %p306 = pneg %p157
        $region34: #{run.16} parent=15 // pred_check_branch
          %308 = sbr.rel (%p306) target = $region36
        $region35: #{run.16} parent=15 // pred_region
          %s309 = sand.u32 %s147, 1
          %s310 = sand.u32 %s147, 1
          %s311 = smul.addr %s310, 16
          %s312 = scalar_lea.vmem [#allocation2], %s311
          %s313 = smul.addr %s24, 16
          %s314 = smul.addr %s313, 2
          %s315 = scalar_lea.vmem %s4, %s314
          // Predicated region
          $region37: #{run.16} parent=35 // pred_check
            _
          $region38: #{run.16} parent=35 // pred_check_branch
            %317 = sbr.rel (0) target = $region40
          $region39: #{run.16} parent=35 // pred_region
            // Predicated region
            $region41: #{run.16} parent=39 // pred_check
              _
            $region42: #{run.16} parent=39 // pred_check_branch
              %319 = sbr.rel target = $region44
            $region43: #{run.16} parent=39 // pred_region
              // Predicated region
              $region56: #{run.16} parent=43 // pred_check
                _
              $region57: #{run.16} parent=43 // pred_check_branch
                %349 = sbr.rel (0) target = $region59
              $region58: #{run.16} parent=43 // pred_region
                loop: start=0, step=1, limit=1
                $region60: #{run.16} parent=58 // loop_pre_header
                  _
                $region61: #{run.16} parent=58 // loop_header
                  %s351 = sphi 0, %s355
                  %p352 = scmp.ge.s32.totalorder %s351, 1
                  %s356 = sphi %s315, %s315
                  %s357 = sphi %s312, %s312
                $region62: #{run.16} parent=58 // loop_header_branch
                  %354 = sbr.rel (%p352) target = $region66
                $region63: #{run.16} parent=58 // loop_body
                  _
                $region64: #{run.16} parent=58 // loop_footer
                  %s355 = sadd.s32 1, %s351
                $region65: #{run.16} parent=58 // loop_footer_branch
                  %350 = sbr.rel target = $region61
                $region66: #{run.16} parent=58 // loop_exit
                  _
                %s359 = ssub.s32 4, 1
                loop: start=0, step=1, limit=1
                $region67: #{run.16} parent=58 // loop_pre_header
                  _
                $region68: #{run.16} parent=58 // loop_header
                  %s361 = sphi 0, %s365
                  %p362 = scmp.ge.s32.totalorder %s361, 1
                  %s366 = sphi %s315, %s315
                  %s367 = sphi %s312, %s312
                $region69: #{run.16} parent=58 // loop_header_branch
                  %364 = sbr.rel (%p362) target = $region73
                $region70: #{run.16} parent=58 // loop_body
                  %v368 = vld [vmem:[%s366] sm:%s359]
                  %369 = vst [vmem:[%s367] sm:%s359] %v368
                  %v370 = vld [vmem:[%s366 + $0x4] sm:%s359]
                  %371 = vst [vmem:[%s367 + $0x2] sm:%s359] %v370
                  %v372 = vld [vmem:[%s366 + $0x8] sm:%s359]
                  %373 = vst [vmem:[%s367 + $0x4] sm:%s359] %v372
                  %v374 = vld [vmem:[%s366 + $0xc] sm:%s359]
                  %375 = vst [vmem:[%s367 + $0x6] sm:%s359] %v374
                  %v376 = vld [vmem:[%s366 + $0x10] sm:%s359]
                  %377 = vst [vmem:[%s367 + $0x8] sm:%s359] %v376
                  %v378 = vld [vmem:[%s366 + $0x14] sm:%s359]
                  %379 = vst [vmem:[%s367 + $0xa] sm:%s359] %v378
                  %v380 = vld [vmem:[%s366 + $0x18] sm:%s359]
                  %381 = vst [vmem:[%s367 + $0xc] sm:%s359] %v380
                  %v382 = vld [vmem:[%s366 + $0x1c] sm:%s359]
                  %383 = vst [vmem:[%s367 + $0xe] sm:%s359] %v382
                $region71: #{run.16} parent=58 // loop_footer
                  %s365 = sadd.s32 1, %s361
                $region72: #{run.16} parent=58 // loop_footer_branch
                  %360 = sbr.rel target = $region68
                $region73: #{run.16} parent=58 // loop_exit
                  _
              $region59: #{run.16} parent=43 // pred_fallthru
                _
            $region44: #{run.16} parent=39 // pred_fallthru
              _
            // Predicated region
            $region45: #{run.16} parent=39 // pred_check
              _
            $region46: #{run.16} parent=39 // pred_check_branch
              %321 = sbr.rel (0) target = $region48
            $region47: #{run.16} parent=39 // pred_region
              %s323 = ssub.s32 4, 1
              loop: start=0, step=1, limit=1
              $region49: #{run.16} parent=47 // loop_pre_header
                _
              $region50: #{run.16} parent=47 // loop_header
                %s325 = sphi 0, %s329
                %p326 = scmp.ge.s32.totalorder %s325, 1
                %s330 = sphi %s315, %s315
                %s331 = sphi %s312, %s312
              $region51: #{run.16} parent=47 // loop_header_branch
                %328 = sbr.rel (%p326) target = $region55
              $region52: #{run.16} parent=47 // loop_body
                %v332 = vld [vmem:[%s330] sm:%s323]
                %333 = vst [vmem:[%s331] sm:%s323] %v332
                %v334 = vld [vmem:[%s330 + $0x4] sm:%s323]
                %335 = vst [vmem:[%s331 + $0x2] sm:%s323] %v334
                %v336 = vld [vmem:[%s330 + $0x8] sm:%s323]
                %337 = vst [vmem:[%s331 + $0x4] sm:%s323] %v336
                %v338 = vld [vmem:[%s330 + $0xc] sm:%s323]
                %339 = vst [vmem:[%s331 + $0x6] sm:%s323] %v338
                %v340 = vld [vmem:[%s330 + $0x10] sm:%s323]
                %341 = vst [vmem:[%s331 + $0x8] sm:%s323] %v340
                %v342 = vld [vmem:[%s330 + $0x14] sm:%s323]
                %343 = vst [vmem:[%s331 + $0xa] sm:%s323] %v342
                %v344 = vld [vmem:[%s330 + $0x18] sm:%s323]
                %345 = vst [vmem:[%s331 + $0xc] sm:%s323] %v344
                %v346 = vld [vmem:[%s330 + $0x1c] sm:%s323]
                %347 = vst [vmem:[%s331 + $0xe] sm:%s323] %v346
              $region53: #{run.16} parent=47 // loop_footer
                %s329 = sadd.s32 1, %s325
              $region54: #{run.16} parent=47 // loop_footer_branch
                %324 = sbr.rel target = $region50
              $region55: #{run.16} parent=47 // loop_exit
                _
            $region48: #{run.16} parent=39 // pred_fallthru
              _
          $region40: #{run.16} parent=35 // pred_fallthru
            _
          %384 = vnop
        $region36: #{run.16} parent=15 // pred_fallthru
          _
        // Predicated region
        $region74: #{run.16} parent=15 // pred_check
          %p385 = pneg %p183
        $region75: #{run.16} parent=15 // pred_check_branch
          %387 = sbr.rel (%p385) target = $region77
        $region76: #{run.16} parent=15 // pred_region
          %s388 = sand.u32 %s173, 1
          %s389 = sand.u32 %s173, 1
          %s390 = smul.addr %s389, 16
          %s391 = scalar_lea.vmem [#allocation3], %s390
          %s392 = smul.addr %s24, 16
          %s393 = sadd.s32 1, %s392
          %s394 = smul.addr %s393, 2
          %s395 = scalar_lea.vmem %s5, %s394
          // Predicated region
          $region78: #{run.16} parent=76 // pred_check
            _
          $region79: #{run.16} parent=76 // pred_check_branch
            %397 = sbr.rel (0) target = $region81
          $region80: #{run.16} parent=76 // pred_region
            // Predicated region
            $region82: #{run.16} parent=80 // pred_check
              _
            $region83: #{run.16} parent=80 // pred_check_branch
              %399 = sbr.rel target = $region85
            $region84: #{run.16} parent=80 // pred_region
              // Predicated region
              $region97: #{run.16} parent=84 // pred_check
                _
              $region98: #{run.16} parent=84 // pred_check_branch
                %429 = sbr.rel (0) target = $region100
              $region99: #{run.16} parent=84 // pred_region
                loop: start=0, step=1, limit=1
                $region101: #{run.16} parent=99 // loop_pre_header
                  _
                $region102: #{run.16} parent=99 // loop_header
                  %s431 = sphi 0, %s435
                  %p432 = scmp.ge.s32.totalorder %s431, 1
                  %s436 = sphi %s395, %s395
                  %s437 = sphi %s391, %s391
                $region103: #{run.16} parent=99 // loop_header_branch
                  %434 = sbr.rel (%p432) target = $region107
                $region104: #{run.16} parent=99 // loop_body
                  _
                $region105: #{run.16} parent=99 // loop_footer
                  %s435 = sadd.s32 1, %s431
                $region106: #{run.16} parent=99 // loop_footer_branch
                  %430 = sbr.rel target = $region102
                $region107: #{run.16} parent=99 // loop_exit
                  _
                %s439 = ssub.s32 4, 1
                loop: start=0, step=1, limit=1
                $region108: #{run.16} parent=99 // loop_pre_header
                  _
                $region109: #{run.16} parent=99 // loop_header
                  %s441 = sphi 0, %s445
                  %p442 = scmp.ge.s32.totalorder %s441, 1
                  %s446 = sphi %s395, %s395
                  %s447 = sphi %s391, %s391
                $region110: #{run.16} parent=99 // loop_header_branch
                  %444 = sbr.rel (%p442) target = $region114
                $region111: #{run.16} parent=99 // loop_body
                  %v448 = vld [vmem:[%s446] sm:%s439]
                  %449 = vst [vmem:[%s447] sm:%s439] %v448
                  %v450 = vld [vmem:[%s446 + $0x4] sm:%s439]
                  %451 = vst [vmem:[%s447 + $0x2] sm:%s439] %v450
                  %v452 = vld [vmem:[%s446 + $0x8] sm:%s439]
                  %453 = vst [vmem:[%s447 + $0x4] sm:%s439] %v452
                  %v454 = vld [vmem:[%s446 + $0xc] sm:%s439]
                  %455 = vst [vmem:[%s447 + $0x6] sm:%s439] %v454
                  %v456 = vld [vmem:[%s446 + $0x10] sm:%s439]
                  %457 = vst [vmem:[%s447 + $0x8] sm:%s439] %v456
                  %v458 = vld [vmem:[%s446 + $0x14] sm:%s439]
                  %459 = vst [vmem:[%s447 + $0xa] sm:%s439] %v458
                  %v460 = vld [vmem:[%s446 + $0x18] sm:%s439]
                  %461 = vst [vmem:[%s447 + $0xc] sm:%s439] %v460
                  %v462 = vld [vmem:[%s446 + $0x1c] sm:%s439]
                  %463 = vst [vmem:[%s447 + $0xe] sm:%s439] %v462
                $region112: #{run.16} parent=99 // loop_footer
                  %s445 = sadd.s32 1, %s441
                $region113: #{run.16} parent=99 // loop_footer_branch
                  %440 = sbr.rel target = $region109
                $region114: #{run.16} parent=99 // loop_exit
                  _
              $region100: #{run.16} parent=84 // pred_fallthru
                _
            $region85: #{run.16} parent=80 // pred_fallthru
              _
            // Predicated region
            $region86: #{run.16} parent=80 // pred_check
              _
            $region87: #{run.16} parent=80 // pred_check_branch
              %401 = sbr.rel (0) target = $region89
            $region88: #{run.16} parent=80 // pred_region
              %s403 = ssub.s32 4, 1
              loop: start=0, step=1, limit=1
              $region90: #{run.16} parent=88 // loop_pre_header
                _
              $region91: #{run.16} parent=88 // loop_header
                %s405 = sphi 0, %s409
                %p406 = scmp.ge.s32.totalorder %s405, 1
                %s410 = sphi %s395, %s395
                %s411 = sphi %s391, %s391
              $region92: #{run.16} parent=88 // loop_header_branch
                %408 = sbr.rel (%p406) target = $region96
              $region93: #{run.16} parent=88 // loop_body
                %v412 = vld [vmem:[%s410] sm:%s403]
                %413 = vst [vmem:[%s411] sm:%s403] %v412
                %v414 = vld [vmem:[%s410 + $0x4] sm:%s403]
                %415 = vst [vmem:[%s411 + $0x2] sm:%s403] %v414
                %v416 = vld [vmem:[%s410 + $0x8] sm:%s403]
                %417 = vst [vmem:[%s411 + $0x4] sm:%s403] %v416
                %v418 = vld [vmem:[%s410 + $0xc] sm:%s403]
                %419 = vst [vmem:[%s411 + $0x6] sm:%s403] %v418
                %v420 = vld [vmem:[%s410 + $0x10] sm:%s403]
                %421 = vst [vmem:[%s411 + $0x8] sm:%s403] %v420
                %v422 = vld [vmem:[%s410 + $0x14] sm:%s403]
                %423 = vst [vmem:[%s411 + $0xa] sm:%s403] %v422
                %v424 = vld [vmem:[%s410 + $0x18] sm:%s403]
                %425 = vst [vmem:[%s411 + $0xc] sm:%s403] %v424
                %v426 = vld [vmem:[%s410 + $0x1c] sm:%s403]
                %427 = vst [vmem:[%s411 + $0xe] sm:%s403] %v426
              $region94: #{run.16} parent=88 // loop_footer
                %s409 = sadd.s32 1, %s405
              $region95: #{run.16} parent=88 // loop_footer_branch
                %404 = sbr.rel target = $region91
              $region96: #{run.16} parent=88 // loop_exit
                _
            $region89: #{run.16} parent=80 // pred_fallthru
              _
          $region81: #{run.16} parent=76 // pred_fallthru
            _
          %464 = vnop
        $region77: #{run.16} parent=15 // pred_fallthru
          _
      $region16: #{run.16} parent=5 // pred_fallthru
        _
      %p465 = scmp.le.s32.totalorder 1, %s17
      %p466 = scmp.lt.s32.totalorder %s17, 3
      %p467 = pnand %p465, %p466
      %p468 = pneg %p467
      // Predicated region
      $region115: #{run.16} parent=5 // pred_check
        _
      $region116: #{run.16} parent=5 // pred_check_branch
        %470 = sbr.rel (%p467) target = $region118
      $region117: #{run.16} parent=5 // pred_region
        %s471 = ssub.s32 %s17, 1
        %s472 = sand.u32 %s150, 1
        %s473 = sand.u32 %s150, 1
        %s474 = smul.addr %s473, 16
        %s475 = scalar_lea.vmem [#allocation2], %s474
        // Predicated region
        $region119: #{run.16} parent=117 // pred_check
          %p476 = pneg %p163
        $region120: #{run.16} parent=117 // pred_check_branch
          %478 = sbr.rel (%p476) target = $region122
        $region121: #{run.16} parent=117 // pred_region
          _
        $region122: #{run.16} parent=117 // pred_fallthru
          _
        %s479 = sand.u32 %s176, 1
        %s480 = sand.u32 %s176, 1
        %s481 = smul.addr %s480, 16
        %s482 = scalar_lea.vmem [#allocation3], %s481
        // Predicated region
        $region123: #{run.16} parent=117 // pred_check
          %p483 = pneg %p189
        $region124: #{run.16} parent=117 // pred_check_branch
          %485 = sbr.rel (%p483) target = $region126
        $region125: #{run.16} parent=117 // pred_region
          _
        $region126: #{run.16} parent=117 // pred_fallthru
          _
        %s486 = smul.u32 8, %s27
        %p487 = scmp.lt.s32.totalorder %s26, 1
        %s488 = scalar_select %p487, %s26, 1
        %p489 = scmp.lt.s32.totalorder %s486, 7
        %s490 = scalar_select %p489, %s486, 7
        %s491 = smul.addr %s488, 8
        %s492 = sadd.s32 %s490, %s491
        %s493 = smul.addr %s492, 2
        %s494 = scalar_lea.vmem %s0, %s493
        %p495 = pneg %p57
        %p496 = pneg %p54
        %s497 = smul.u32 8, %s27
        %p498 = scmp.lt.s32.totalorder %s26, 1
        %s499 = scalar_select %p498, %s26, 1
        %p500 = scmp.lt.s32.totalorder %s497, 7
        %s501 = scalar_select %p500, %s497, 7
        %s502 = smul.addr %s499, 8
        %s503 = sadd.s32 %s501, %s502
        %s504 = smul.addr %s503, 2
        %s505 = scalar_lea.vmem %s1, %s504
        %p506 = pneg %p85
        %p507 = pneg %p82
        %p508 = scmp.lt.s32.totalorder %s26, 1
        %s509 = scalar_select %p508, %s26, 1
        %s510 = smul.addr %s509, 8
        %s511 = smul.addr %s510, 2
        %s512 = scalar_lea.vmem %s2, %s511
        %p513 = pneg %p111
        %p514 = pneg %p108
        %p515 = scmp.lt.s32.totalorder %s26, 1
        %s516 = scalar_select %p515, %s26, 1
        %s517 = smul.addr %s516, 8
        %s518 = smul.addr %s517, 2
        %s519 = scalar_lea.vmem %s3, %s518
        %p520 = pneg %p137
        %p521 = pneg %p134
        %s522 = sand.u32 %s150, 1
        %s523 = sand.u32 %s150, 1
        %s524 = smul.addr %s523, 16
        %s525 = scalar_lea.vmem [#allocation2], %s524
        %p526 = pneg %p163
        %p527 = pneg %p160
        %s528 = sand.u32 %s176, 1
        %s529 = sand.u32 %s176, 1
        %s530 = smul.addr %s529, 16
        %s531 = scalar_lea.vmem [#allocation3], %s530
        %p532 = pneg %p189
        %p533 = pneg %p186
        %p534 = pneg %p217
        %p535 = pneg %p214
        %p536 = scmp.lt.s32.totalorder %s26, 1
        %s537 = scalar_select %p536, %s26, 1
        %p538 = scmp.lt.s32.totalorder %s27, 0
        %s539 = scalar_select %p538, %s27, 0
        %s540 = smul.addr %s537, 4
        %s541 = sadd.s32 %s539, %s540
        %s542 = smul.addr %s541, 8
        %s543 = scalar_lea.vmem %s6, %s542
        %p544 = pneg %p245
        %p545 = pneg %p242
        %s546 = sand.u32 %s232, 1
        %s547 = scalar_lea.sflag [#allocation5], %s546
        %s548 = sand.u32 %s232, 1
        %s549 = smul.addr %s548, 32
        %s550 = scalar_lea.vmem [#allocation4], %s549
        %s551 = smul.u32 8, %s27
        %p552 = scmp.lt.s32.totalorder %s26, 1
        %s553 = scalar_select %p552, %s26, 1
        %p554 = scmp.lt.s32.totalorder %s551, 7
        %s555 = scalar_select %p554, %s551, 7
        %s556 = smul.addr %s553, 8
        %s557 = sadd.s32 %s555, %s556
        %s558 = smul.addr %s557, 2
        %s559 = scalar_lea.vmem %s0, %s558
        %s560 = smul.u32 8, %s27
        %s561 = smul.u32 8, %s27
        %p562 = scmp.lt.s32.totalorder %s26, 1
        %s563 = scalar_select %p562, %s26, 1
        %p564 = scmp.lt.s32.totalorder %s561, 7
        %s565 = scalar_select %p564, %s561, 7
        %s566 = smul.addr %s563, 8
        %s567 = sadd.s32 %s565, %s566
        %s568 = smul.addr %s567, 2
        %s569 = scalar_lea.vmem %s1, %s568
        %s570 = smul.u32 8, %s27
        %p571 = scmp.lt.s32.totalorder %s26, 1
        %s572 = scalar_select %p571, %s26, 1
        %s573 = smul.addr %s572, 8
        %s574 = smul.addr %s573, 2
        %s575 = scalar_lea.vmem %s2, %s574
        %p576 = scmp.lt.s32.totalorder %s26, 1
        %s577 = scalar_select %p576, %s26, 1
        %s578 = smul.addr %s577, 8
        %s579 = smul.addr %s578, 2
        %s580 = scalar_lea.vmem %s3, %s579
        %p581 = scmp.lt.s32.totalorder %s26, 1
        %s582 = scalar_select %p581, %s26, 1
        %p583 = scmp.lt.s32.totalorder %s27, 0
        %s584 = scalar_select %p583, %s27, 0
        %s585 = smul.addr %s582, 4
        %s586 = sadd.s32 %s584, %s585
        %s587 = smul.addr %s586, 8
        %s588 = scalar_lea.vmem %s6, %s587
        %v589 = vld [vmem:[%s559] sm:$0x3]
        %v590 = vld [vmem:[%s559 + $0x2] sm:$0x3]
        %v591 = vld [vmem:[%s559 + $0x4] sm:$0x3]
        %v592 = vld [vmem:[%s559 + $0x6] sm:$0x3]
        %v593 = vld [vmem:[%s559 + $0x8] sm:$0x3]
        %v594 = vld [vmem:[%s559 + $0xa] sm:$0x3]
        %v595 = vld [vmem:[%s559 + $0xc] sm:$0x3]
        %v596 = vld [vmem:[%s559 + $0xe] sm:$0x3]
        %v597 = vld [vmem:[%s575] sm:$0x3]
        %v598 = vld [vmem:[%s575 + $0x2] sm:$0x3]
        %v599 = vld [vmem:[%s575 + $0x4] sm:$0x3]
        %v600 = vld [vmem:[%s575 + $0x6] sm:$0x3]
        %v601 = vld [vmem:[%s575 + $0x8] sm:$0x3]
        %v602 = vld [vmem:[%s575 + $0xa] sm:$0x3]
        %v603 = vld [vmem:[%s575 + $0xc] sm:$0x3]
        %v604 = vld [vmem:[%s575 + $0xe] sm:$0x3]
        %v605 = vld [vmem:[%s475] sm:$0x3]
        %v606 = vld [vmem:[%s475 + $0x2] sm:$0x3]
        %v607 = vld [vmem:[%s475 + $0x4] sm:$0x3]
        %v608 = vld [vmem:[%s475 + $0x6] sm:$0x3]
        %v609 = vld [vmem:[%s475 + $0x8] sm:$0x3]
        %v610 = vld [vmem:[%s475 + $0xa] sm:$0x3]
        %v611 = vld [vmem:[%s475 + $0xc] sm:$0x3]
        %v612 = vld [vmem:[%s475 + $0xe] sm:$0x3]
        %v613 = vrot.slane %v591, 4
        %vm614 = vcmask 1047556
        %v615 = vsel %vm614, %v613, %v589
        %v617 = vunpack.c.l.s4 1983009808
        %v618 = vunpack.c.0.s8 %v617
        %v619 = vperm.slane %v615, %v618
        %v620 = vrot.slane %v592, 4
        %v621 = vsel %vm614, %v620, %v590
        %v623 = vunpack.c.l.s4 1983009808
        %v624 = vunpack.c.0.s8 %v623
        %v625 = vperm.slane %v621, %v624
        %v626 = vrot.slane %v595, 4
        %v627 = vsel %vm614, %v626, %v593
        %v629 = vunpack.c.l.s4 1983009808
        %v630 = vunpack.c.0.s8 %v629
        %v631 = vperm.slane %v627, %v630
        %v632 = vrot.slane %v596, 4
        %v633 = vsel %vm614, %v632, %v594
        %v635 = vunpack.c.l.s4 1983009808
        %v636 = vunpack.c.0.s8 %v635
        %v637 = vperm.slane %v633, %v636
        %v638 = vrot.slane %v625, 4
        %v639 = vsel %vm614, %v638, %v619
        %v641 = vunpack.c.l.s4 1934713408
        %v642 = vunpack.c.0.s8 %v641
        %v643 = vperm.slane %v639, %v642
        %v644 = vrot.slane %v637, 4
        %v645 = vsel %vm614, %v644, %v631
        %v647 = vunpack.c.l.s4 1934713408
        %v648 = vunpack.c.0.s8 %v647
        %v649 = vperm.slane %v645, %v648
        %v650 = vrot.slane %v649, 4
        %v651 = vsel %vm614, %v650, %v643
        %v652 = vrot.slane %v643, 4
        %v653 = vsel %vm614, %v649, %v652
        %654 = vxpose.xlu0.b32.start [1/16] %v597, 128
        %655 = vxpose.xlu0.b32.cont [2/16] 0.0, 128
        %656 = vxpose.xlu0.b32.cont [3/16] 0.0, 128
        %657 = vxpose.xlu0.b32.cont [4/16] 0.0, 128
        %658 = vxpose.xlu0.b32.cont [5/16] 0.0, 128
        %659 = vxpose.xlu0.b32.cont [6/16] 0.0, 128
        %660 = vxpose.xlu0.b32.cont [7/16] 0.0, 128
        %661 = vxpose.xlu0.b32.cont [8/16] 0.0, 128
        %662 = vxpose.xlu0.b32.cont [9/16] 0.0, 128
        %663 = vxpose.xlu0.b32.cont [10/16] 0.0, 128
        %664 = vxpose.xlu0.b32.cont [11/16] 0.0, 128
        %665 = vxpose.xlu0.b32.cont [12/16] 0.0, 128
        %666 = vxpose.xlu0.b32.cont [13/16] 0.0, 128
        %667 = vxpose.xlu0.b32.cont [14/16] 0.0, 128
        %668 = vxpose.xlu0.b32.cont [15/16] 0.0, 128
        %669 = vxpose.xlu0.b32.end [16/16] 0.0, 128
        %v670 = vpop.trf.xlu0
        %v671 = vpop.trf.xlu0
        %v672 = vpop.trf.xlu0
        %v673 = vpop.trf.xlu0
        %v674 = vpop.trf.xlu0
        %v675 = vpop.trf.xlu0
        %v676 = vpop.trf.xlu0
        %v677 = vpop.trf.xlu0
        %v678 = vpop.trf.xlu0
        %v679 = vpop.trf.xlu0
        %v680 = vpop.trf.xlu0
        %v681 = vpop.trf.xlu0
        %v682 = vpop.trf.xlu0
        %v683 = vpop.trf.xlu0
        %v684 = vpop.trf.xlu0
        %v685 = vpop.trf.xlu0
        %686 = vxpose.xlu0.b32.start [1/16] %v598, 128
        %687 = vxpose.xlu0.b32.cont [2/16] 0.0, 128
        %688 = vxpose.xlu0.b32.cont [3/16] 0.0, 128
        %689 = vxpose.xlu0.b32.cont [4/16] 0.0, 128
        %690 = vxpose.xlu0.b32.cont [5/16] 0.0, 128
        %691 = vxpose.xlu0.b32.cont [6/16] 0.0, 128
        %692 = vxpose.xlu0.b32.cont [7/16] 0.0, 128
        %693 = vxpose.xlu0.b32.cont [8/16] 0.0, 128
        %694 = vxpose.xlu0.b32.cont [9/16] 0.0, 128
        %695 = vxpose.xlu0.b32.cont [10/16] 0.0, 128
        %696 = vxpose.xlu0.b32.cont [11/16] 0.0, 128
        %697 = vxpose.xlu0.b32.cont [12/16] 0.0, 128
        %698 = vxpose.xlu0.b32.cont [13/16] 0.0, 128
        %699 = vxpose.xlu0.b32.cont [14/16] 0.0, 128
        %700 = vxpose.xlu0.b32.cont [15/16] 0.0, 128
        %701 = vxpose.xlu0.b32.end [16/16] 0.0, 128
        %v702 = vpop.trf.xlu0
        %v703 = vpop.trf.xlu0
        %v704 = vpop.trf.xlu0
        %v705 = vpop.trf.xlu0
        %v706 = vpop.trf.xlu0
        %v707 = vpop.trf.xlu0
        %v708 = vpop.trf.xlu0
        %v709 = vpop.trf.xlu0
        %v710 = vpop.trf.xlu0
        %v711 = vpop.trf.xlu0
        %v712 = vpop.trf.xlu0
        %v713 = vpop.trf.xlu0
        %v714 = vpop.trf.xlu0
        %v715 = vpop.trf.xlu0
        %v716 = vpop.trf.xlu0
        %v717 = vpop.trf.xlu0
        %718 = vxpose.xlu0.b32.start [1/16] %v599, 128
        %719 = vxpose.xlu0.b32.cont [2/16] 0.0, 128
        %720 = vxpose.xlu0.b32.cont [3/16] 0.0, 128
        %721 = vxpose.xlu0.b32.cont [4/16] 0.0, 128
        %722 = vxpose.xlu0.b32.cont [5/16] 0.0, 128
        %723 = vxpose.xlu0.b32.cont [6/16] 0.0, 128
        %724 = vxpose.xlu0.b32.cont [7/16] 0.0, 128
        %725 = vxpose.xlu0.b32.cont [8/16] 0.0, 128
        %726 = vxpose.xlu0.b32.cont [9/16] 0.0, 128
        %727 = vxpose.xlu0.b32.cont [10/16] 0.0, 128
        %728 = vxpose.xlu0.b32.cont [11/16] 0.0, 128
        %729 = vxpose.xlu0.b32.cont [12/16] 0.0, 128
        %730 = vxpose.xlu0.b32.cont [13/16] 0.0, 128
        %731 = vxpose.xlu0.b32.cont [14/16] 0.0, 128
        %732 = vxpose.xlu0.b32.cont [15/16] 0.0, 128
        %733 = vxpose.xlu0.b32.end [16/16] 0.0, 128
        %v734 = vpop.trf.xlu0
        %v735 = vpop.trf.xlu0
        %v736 = vpop.trf.xlu0
        %v737 = vpop.trf.xlu0
        %v738 = vpop.trf.xlu0
        %v739 = vpop.trf.xlu0
        %v740 = vpop.trf.xlu0
        %v741 = vpop.trf.xlu0
        %v742 = vpop.trf.xlu0
        %v743 = vpop.trf.xlu0
        %v744 = vpop.trf.xlu0
        %v745 = vpop.trf.xlu0
        %v746 = vpop.trf.xlu0
        %v747 = vpop.trf.xlu0
        %v748 = vpop.trf.xlu0
        %v749 = vpop.trf.xlu0
        %750 = vxpose.xlu0.b32.start [1/16] %v600, 128
        %751 = vxpose.xlu0.b32.cont [2/16] 0.0, 128
        %752 = vxpose.xlu0.b32.cont [3/16] 0.0, 128
        %753 = vxpose.xlu0.b32.cont [4/16] 0.0, 128
        %754 = vxpose.xlu0.b32.cont [5/16] 0.0, 128
        %755 = vxpose.xlu0.b32.cont [6/16] 0.0, 128
        %756 = vxpose.xlu0.b32.cont [7/16] 0.0, 128
        %757 = vxpose.xlu0.b32.cont [8/16] 0.0, 128
        %758 = vxpose.xlu0.b32.cont [9/16] 0.0, 128
        %759 = vxpose.xlu0.b32.cont [10/16] 0.0, 128
        %760 = vxpose.xlu0.b32.cont [11/16] 0.0, 128
        %761 = vxpose.xlu0.b32.cont [12/16] 0.0, 128
        %762 = vxpose.xlu0.b32.cont [13/16] 0.0, 128
        %763 = vxpose.xlu0.b32.cont [14/16] 0.0, 128
        %764 = vxpose.xlu0.b32.cont [15/16] 0.0, 128
        %765 = vxpose.xlu0.b32.end [16/16] 0.0, 128
        %v766 = vpop.trf.xlu0
        %v767 = vpop.trf.xlu0
        %v768 = vpop.trf.xlu0
        %v769 = vpop.trf.xlu0
        %v770 = vpop.trf.xlu0
        %v771 = vpop.trf.xlu0
        %v772 = vpop.trf.xlu0
        %v773 = vpop.trf.xlu0
        %v774 = vpop.trf.xlu0
        %v775 = vpop.trf.xlu0
        %v776 = vpop.trf.xlu0
        %v777 = vpop.trf.xlu0
        %v778 = vpop.trf.xlu0
        %v779 = vpop.trf.xlu0
        %v780 = vpop.trf.xlu0
        %v781 = vpop.trf.xlu0
        %782 = vxpose.xlu0.b32.start [1/16] %v601, 128
        %783 = vxpose.xlu0.b32.cont [2/16] 0.0, 128
        %784 = vxpose.xlu0.b32.cont [3/16] 0.0, 128
        %785 = vxpose.xlu0.b32.cont [4/16] 0.0, 128
        %786 = vxpose.xlu0.b32.cont [5/16] 0.0, 128
        %787 = vxpose.xlu0.b32.cont [6/16] 0.0, 128
        %788 = vxpose.xlu0.b32.cont [7/16] 0.0, 128
        %789 = vxpose.xlu0.b32.cont [8/16] 0.0, 128
        %790 = vxpose.xlu0.b32.cont [9/16] 0.0, 128
        %791 = vxpose.xlu0.b32.cont [10/16] 0.0, 128
        %792 = vxpose.xlu0.b32.cont [11/16] 0.0, 128
        %793 = vxpose.xlu0.b32.cont [12/16] 0.0, 128
        %794 = vxpose.xlu0.b32.cont [13/16] 0.0, 128
        %795 = vxpose.xlu0.b32.cont [14/16] 0.0, 128
        %796 = vxpose.xlu0.b32.cont [15/16] 0.0, 128
        %797 = vxpose.xlu0.b32.end [16/16] 0.0, 128
        %v798 = vpop.trf.xlu0
        %v799 = vpop.trf.xlu0
        %v800 = vpop.trf.xlu0
        %v801 = vpop.trf.xlu0
        %v802 = vpop.trf.xlu0
        %v803 = vpop.trf.xlu0
        %v804 = vpop.trf.xlu0
        %v805 = vpop.trf.xlu0
        %v806 = vpop.trf.xlu0
        %v807 = vpop.trf.xlu0
        %v808 = vpop.trf.xlu0
        %v809 = vpop.trf.xlu0
        %v810 = vpop.trf.xlu0
        %v811 = vpop.trf.xlu0
        %v812 = vpop.trf.xlu0
        %v813 = vpop.trf.xlu0
        %814 = vxpose.xlu0.b32.start [1/16] %v602, 128
        %815 = vxpose.xlu0.b32.cont [2/16] 0.0, 128
        %816 = vxpose.xlu0.b32.cont [3/16] 0.0, 128
        %817 = vxpose.xlu0.b32.cont [4/16] 0.0, 128
        %818 = vxpose.xlu0.b32.cont [5/16] 0.0, 128
        %819 = vxpose.xlu0.b32.cont [6/16] 0.0, 128
        %820 = vxpose.xlu0.b32.cont [7/16] 0.0, 128
        %821 = vxpose.xlu0.b32.cont [8/16] 0.0, 128
        %822 = vxpose.xlu0.b32.cont [9/16] 0.0, 128
        %823 = vxpose.xlu0.b32.cont [10/16] 0.0, 128
        %824 = vxpose.xlu0.b32.cont [11/16] 0.0, 128
        %825 = vxpose.xlu0.b32.cont [12/16] 0.0, 128
        %826 = vxpose.xlu0.b32.cont [13/16] 0.0, 128
        %827 = vxpose.xlu0.b32.cont [14/16] 0.0, 128
        %828 = vxpose.xlu0.b32.cont [15/16] 0.0, 128
        %829 = vxpose.xlu0.b32.end [16/16] 0.0, 128
        %v830 = vpop.trf.xlu0
        %v831 = vpop.trf.xlu0
        %v832 = vpop.trf.xlu0
        %v833 = vpop.trf.xlu0
        %v834 = vpop.trf.xlu0
        %v835 = vpop.trf.xlu0
        %v836 = vpop.trf.xlu0
        %v837 = vpop.trf.xlu0
        %v838 = vpop.trf.xlu0
        %v839 = vpop.trf.xlu0
        %v840 = vpop.trf.xlu0
        %v841 = vpop.trf.xlu0
        %v842 = vpop.trf.xlu0
        %v843 = vpop.trf.xlu0
        %v844 = vpop.trf.xlu0
        %v845 = vpop.trf.xlu0
        %846 = vxpose.xlu0.b32.start [1/16] %v603, 128
        %847 = vxpose.xlu0.b32.cont [2/16] 0.0, 128
        %848 = vxpose.xlu0.b32.cont [3/16] 0.0, 128
        %849 = vxpose.xlu0.b32.cont [4/16] 0.0, 128
        %850 = vxpose.xlu0.b32.cont [5/16] 0.0, 128
        %851 = vxpose.xlu0.b32.cont [6/16] 0.0, 128
        %852 = vxpose.xlu0.b32.cont [7/16] 0.0, 128
        %853 = vxpose.xlu0.b32.cont [8/16] 0.0, 128
        %854 = vxpose.xlu0.b32.cont [9/16] 0.0, 128
        %855 = vxpose.xlu0.b32.cont [10/16] 0.0, 128
        %856 = vxpose.xlu0.b32.cont [11/16] 0.0, 128
        %857 = vxpose.xlu0.b32.cont [12/16] 0.0, 128
        %858 = vxpose.xlu0.b32.cont [13/16] 0.0, 128
        %859 = vxpose.xlu0.b32.cont [14/16] 0.0, 128
        %860 = vxpose.xlu0.b32.cont [15/16] 0.0, 128
        %861 = vxpose.xlu0.b32.end [16/16] 0.0, 128
        %v862 = vpop.trf.xlu0
        %v863 = vpop.trf.xlu0
        %v864 = vpop.trf.xlu0
        %v865 = vpop.trf.xlu0
        %v866 = vpop.trf.xlu0
        %v867 = vpop.trf.xlu0
        %v868 = vpop.trf.xlu0
        %v869 = vpop.trf.xlu0
        %v870 = vpop.trf.xlu0
        %v871 = vpop.trf.xlu0
        %v872 = vpop.trf.xlu0
        %v873 = vpop.trf.xlu0
        %v874 = vpop.trf.xlu0
        %v875 = vpop.trf.xlu0
        %v876 = vpop.trf.xlu0
        %v877 = vpop.trf.xlu0
        %878 = vxpose.xlu0.b32.start [1/16] %v604, 128
        %879 = vxpose.xlu0.b32.cont [2/16] 0.0, 128
        %880 = vxpose.xlu0.b32.cont [3/16] 0.0, 128
        %881 = vxpose.xlu0.b32.cont [4/16] 0.0, 128
        %882 = vxpose.xlu0.b32.cont [5/16] 0.0, 128
        %883 = vxpose.xlu0.b32.cont [6/16] 0.0, 128
        %884 = vxpose.xlu0.b32.cont [7/16] 0.0, 128
        %885 = vxpose.xlu0.b32.cont [8/16] 0.0, 128
        %886 = vxpose.xlu0.b32.cont [9/16] 0.0, 128
        %887 = vxpose.xlu0.b32.cont [10/16] 0.0, 128
        %888 = vxpose.xlu0.b32.cont [11/16] 0.0, 128
        %889 = vxpose.xlu0.b32.cont [12/16] 0.0, 128
        %890 = vxpose.xlu0.b32.cont [13/16] 0.0, 128
        %891 = vxpose.xlu0.b32.cont [14/16] 0.0, 128
        %892 = vxpose.xlu0.b32.cont [15/16] 0.0, 128
        %893 = vxpose.xlu0.b32.end [16/16] 0.0, 128
        %v894 = vpop.trf.xlu0
        %v895 = vpop.trf.xlu0
        %v896 = vpop.trf.xlu0
        %v897 = vpop.trf.xlu0
        %v898 = vpop.trf.xlu0
        %v899 = vpop.trf.xlu0
        %v900 = vpop.trf.xlu0
        %v901 = vpop.trf.xlu0
        %v902 = vpop.trf.xlu0
        %v903 = vpop.trf.xlu0
        %v904 = vpop.trf.xlu0
        %v905 = vpop.trf.xlu0
        %v906 = vpop.trf.xlu0
        %v907 = vpop.trf.xlu0
        %v908 = vpop.trf.xlu0
        %v909 = vpop.trf.xlu0
        %v910 = vrot.slane %v734, 4
        %v911 = vsel %vm614, %v910, %v670
        %v912 = vrot.slane %v670, 4
        %v913 = vsel %vm614, %v734, %v912
        %v915 = vunpack.c.l.s4 1983009808
        %v916 = vunpack.c.0.s8 %v915
        %v917 = vperm.slane %v911, %v916
        %v919 = vunpack.c.l.s4 1983009808
        %v920 = vunpack.c.0.s8 %v919
        %v921 = vperm.slane %v913, %v920
        %v922 = vrot.slane %v766, 4
        %v923 = vsel %vm614, %v922, %v702
        %v924 = vrot.slane %v702, 4
        %v925 = vsel %vm614, %v766, %v924
        %v927 = vunpack.c.l.s4 1983009808
        %v928 = vunpack.c.0.s8 %v927
        %v929 = vperm.slane %v923, %v928
        %v931 = vunpack.c.l.s4 1983009808
        %v932 = vunpack.c.0.s8 %v931
        %v933 = vperm.slane %v925, %v932
        %v934 = vrot.slane %v862, 4
        %v935 = vsel %vm614, %v934, %v798
        %v936 = vrot.slane %v798, 4
        %v937 = vsel %vm614, %v862, %v936
        %v939 = vunpack.c.l.s4 1983009808
        %v940 = vunpack.c.0.s8 %v939
        %v941 = vperm.slane %v935, %v940
        %v943 = vunpack.c.l.s4 1983009808
        %v944 = vunpack.c.0.s8 %v943
        %v945 = vperm.slane %v937, %v944
        %v946 = vrot.slane %v894, 4
        %v947 = vsel %vm614, %v946, %v830
        %v948 = vrot.slane %v830, 4
        %v949 = vsel %vm614, %v894, %v948
        %v951 = vunpack.c.l.s4 1983009808
        %v952 = vunpack.c.0.s8 %v951
        %v953 = vperm.slane %v947, %v952
        %v955 = vunpack.c.l.s4 1983009808
        %v956 = vunpack.c.0.s8 %v955
        %v957 = vperm.slane %v949, %v956
        %v958 = vrot.slane %v929, 4
        %v959 = vsel %vm614, %v958, %v917
        %v960 = vrot.slane %v917, 4
        %v961 = vsel %vm614, %v929, %v960
        %v963 = vunpack.c.l.s4 1934713408
        %v964 = vunpack.c.0.s8 %v963
        %v965 = vperm.slane %v959, %v964
        %v967 = vunpack.c.l.s4 1934713408
        %v968 = vunpack.c.0.s8 %v967
        %v969 = vperm.slane %v961, %v968
        %v970 = vrot.slane %v933, 4
        %v971 = vsel %vm614, %v970, %v921
        %v972 = vrot.slane %v921, 4
        %v973 = vsel %vm614, %v933, %v972
        %v975 = vunpack.c.l.s4 1934713408
        %v976 = vunpack.c.0.s8 %v975
        %v977 = vperm.slane %v971, %v976
        %v979 = vunpack.c.l.s4 1934713408
        %v980 = vunpack.c.0.s8 %v979
        %v981 = vperm.slane %v973, %v980
        %v982 = vrot.slane %v953, 4
        %v983 = vsel %vm614, %v982, %v941
        %v984 = vrot.slane %v941, 4
        %v985 = vsel %vm614, %v953, %v984
        %v987 = vunpack.c.l.s4 1934713408
        %v988 = vunpack.c.0.s8 %v987
        %v989 = vperm.slane %v983, %v988
        %v991 = vunpack.c.l.s4 1934713408
        %v992 = vunpack.c.0.s8 %v991
        %v993 = vperm.slane %v985, %v992
        %v994 = vrot.slane %v957, 4
        %v995 = vsel %vm614, %v994, %v945
        %v996 = vrot.slane %v945, 4
        %v997 = vsel %vm614, %v957, %v996
        %v999 = vunpack.c.l.s4 1934713408
        %v1000 = vunpack.c.0.s8 %v999
        %v1001 = vperm.slane %v995, %v1000
        %v1003 = vunpack.c.l.s4 1934713408
        %v1004 = vunpack.c.0.s8 %v1003
        %v1005 = vperm.slane %v997, %v1004
        %v1006 = vrot.slane %v989, 4
        %v1007 = vsel %vm614, %v1006, %v965
        %v1008 = vrot.slane %v965, 4
        %v1009 = vsel %vm614, %v989, %v1008
        %v1010 = vrot.slane %v993, 4
        %v1011 = vsel %vm614, %v1010, %v969
        %v1012 = vrot.slane %v969, 4
        %v1013 = vsel %vm614, %v993, %v1012
        %v1014 = vrot.slane %v1001, 4
        %v1015 = vsel %vm614, %v1014, %v977
        %v1016 = vrot.slane %v977, 4
        %v1017 = vsel %vm614, %v1001, %v1016
        %v1018 = vrot.slane %v1005, 4
        %v1019 = vsel %vm614, %v1018, %v981
        %v1020 = vrot.slane %v981, 4
        %v1021 = vsel %vm614, %v1005, %v1020
        %v1022 = vrot.slane %v735, 4
        %v1023 = vsel %vm614, %v1022, %v671
        %v1024 = vrot.slane %v671, 4
        %v1025 = vsel %vm614, %v735, %v1024
        %v1027 = vunpack.c.l.s4 1983009808
        %v1028 = vunpack.c.0.s8 %v1027
        %v1029 = vperm.slane %v1023, %v1028
        %v1031 = vunpack.c.l.s4 1983009808
        %v1032 = vunpack.c.0.s8 %v1031
        %v1033 = vperm.slane %v1025, %v1032
        %v1034 = vrot.slane %v767, 4
        %v1035 = vsel %vm614, %v1034, %v703
        %v1036 = vrot.slane %v703, 4
        %v1037 = vsel %vm614, %v767, %v1036
        %v1039 = vunpack.c.l.s4 1983009808
        %v1040 = vunpack.c.0.s8 %v1039
        %v1041 = vperm.slane %v1035, %v1040
        %v1043 = vunpack.c.l.s4 1983009808
        %v1044 = vunpack.c.0.s8 %v1043
        %v1045 = vperm.slane %v1037, %v1044
        %v1046 = vrot.slane %v863, 4
        %v1047 = vsel %vm614, %v1046, %v799
        %v1048 = vrot.slane %v799, 4
        %v1049 = vsel %vm614, %v863, %v1048
        %v1051 = vunpack.c.l.s4 1983009808
        %v1052 = vunpack.c.0.s8 %v1051
        %v1053 = vperm.slane %v1047, %v1052
        %v1055 = vunpack.c.l.s4 1983009808
        %v1056 = vunpack.c.0.s8 %v1055
        %v1057 = vperm.slane %v1049, %v1056
        %v1058 = vrot.slane %v895, 4
        %v1059 = vsel %vm614, %v1058, %v831
        %v1060 = vrot.slane %v831, 4
        %v1061 = vsel %vm614, %v895, %v1060
        %v1063 = vunpack.c.l.s4 1983009808
        %v1064 = vunpack.c.0.s8 %v1063
        %v1065 = vperm.slane %v1059, %v1064
        %v1067 = vunpack.c.l.s4 1983009808
        %v1068 = vunpack.c.0.s8 %v1067
        %v1069 = vperm.slane %v1061, %v1068
        %v1070 = vrot.slane %v1041, 4
        %v1071 = vsel %vm614, %v1070, %v1029
        %v1072 = vrot.slane %v1029, 4
        %v1073 = vsel %vm614, %v1041, %v1072
        %v1075 = vunpack.c.l.s4 1934713408
        %v1076 = vunpack.c.0.s8 %v1075
        %v1077 = vperm.slane %v1071, %v1076
        %v1079 = vunpack.c.l.s4 1934713408
        %v1080 = vunpack.c.0.s8 %v1079
        %v1081 = vperm.slane %v1073, %v1080
        %v1082 = vrot.slane %v1045, 4
        %v1083 = vsel %vm614, %v1082, %v1033
        %v1084 = vrot.slane %v1033, 4
        %v1085 = vsel %vm614, %v1045, %v1084
        %v1087 = vunpack.c.l.s4 1934713408
        %v1088 = vunpack.c.0.s8 %v1087
        %v1089 = vperm.slane %v1083, %v1088
        %v1091 = vunpack.c.l.s4 1934713408
        %v1092 = vunpack.c.0.s8 %v1091
        %v1093 = vperm.slane %v1085, %v1092
        %v1094 = vrot.slane %v1065, 4
        %v1095 = vsel %vm614, %v1094, %v1053
        %v1096 = vrot.slane %v1053, 4
        %v1097 = vsel %vm614, %v1065, %v1096
        %v1099 = vunpack.c.l.s4 1934713408
        %v1100 = vunpack.c.0.s8 %v1099
        %v1101 = vperm.slane %v1095, %v1100
        %v1103 = vunpack.c.l.s4 1934713408
        %v1104 = vunpack.c.0.s8 %v1103
        %v1105 = vperm.slane %v1097, %v1104
        %v1106 = vrot.slane %v1069, 4
        %v1107 = vsel %vm614, %v1106, %v1057
        %v1108 = vrot.slane %v1057, 4
        %v1109 = vsel %vm614, %v1069, %v1108
        %v1111 = vunpack.c.l.s4 1934713408
        %v1112 = vunpack.c.0.s8 %v1111
        %v1113 = vperm.slane %v1107, %v1112
        %v1115 = vunpack.c.l.s4 1934713408
        %v1116 = vunpack.c.0.s8 %v1115
        %v1117 = vperm.slane %v1109, %v1116
        %v1118 = vrot.slane %v1101, 4
        %v1119 = vsel %vm614, %v1118, %v1077
        %v1120 = vrot.slane %v1077, 4
        %v1121 = vsel %vm614, %v1101, %v1120
        %v1122 = vrot.slane %v1105, 4
        %v1123 = vsel %vm614, %v1122, %v1081
        %v1124 = vrot.slane %v1081, 4
        %v1125 = vsel %vm614, %v1105, %v1124
        %v1126 = vrot.slane %v1113, 4
        %v1127 = vsel %vm614, %v1126, %v1089
        %v1128 = vrot.slane %v1089, 4
        %v1129 = vsel %vm614, %v1113, %v1128
        %v1130 = vrot.slane %v1117, 4
        %v1131 = vsel %vm614, %v1130, %v1093
        %v1132 = vrot.slane %v1093, 4
        %v1133 = vsel %vm614, %v1117, %v1132
        %1134 = vxpose.xlu0.b32.start [1/16] %v1007, 128
        %1135 = vxpose.xlu0.b32.cont [2/16] 0.0, 128
        %1136 = vxpose.xlu0.b32.cont [3/16] 0.0, 128
        %1137 = vxpose.xlu0.b32.cont [4/16] 0.0, 128
        %1138 = vxpose.xlu0.b32.cont [5/16] 0.0, 128
        %1139 = vxpose.xlu0.b32.cont [6/16] 0.0, 128
        %1140 = vxpose.xlu0.b32.cont [7/16] 0.0, 128
        %1141 = vxpose.xlu0.b32.cont [8/16] 0.0, 128
        %1142 = vxpose.xlu0.b32.cont [9/16] 0.0, 128
        %1143 = vxpose.xlu0.b32.cont [10/16] 0.0, 128
        %1144 = vxpose.xlu0.b32.cont [11/16] 0.0, 128
        %1145 = vxpose.xlu0.b32.cont [12/16] 0.0, 128
        %1146 = vxpose.xlu0.b32.cont [13/16] 0.0, 128
        %1147 = vxpose.xlu0.b32.cont [14/16] 0.0, 128
        %1148 = vxpose.xlu0.b32.cont [15/16] 0.0, 128
        %1149 = vxpose.xlu0.b32.end [16/16] 0.0, 128
        %v1150 = vpop.trf.xlu0
        %v1151 = vpop.trf.xlu0
        %v1152 = vpop.trf.xlu0
        %v1153 = vpop.trf.xlu0
        %v1154 = vpop.trf.xlu0
        %v1155 = vpop.trf.xlu0
        %v1156 = vpop.trf.xlu0
        %v1157 = vpop.trf.xlu0
        %v1158 = vpop.trf.xlu0
        %v1159 = vpop.trf.xlu0
        %v1160 = vpop.trf.xlu0
        %v1161 = vpop.trf.xlu0
        %v1162 = vpop.trf.xlu0
        %v1163 = vpop.trf.xlu0
        %v1164 = vpop.trf.xlu0
        %v1165 = vpop.trf.xlu0
        %1166 = vxpose.xlu0.b32.start [1/16] %v1009, 128
        %1167 = vxpose.xlu0.b32.cont [2/16] 0.0, 128
        %1168 = vxpose.xlu0.b32.cont [3/16] 0.0, 128
        %1169 = vxpose.xlu0.b32.cont [4/16] 0.0, 128
        %1170 = vxpose.xlu0.b32.cont [5/16] 0.0, 128
        %1171 = vxpose.xlu0.b32.cont [6/16] 0.0, 128
        %1172 = vxpose.xlu0.b32.cont [7/16] 0.0, 128
        %1173 = vxpose.xlu0.b32.cont [8/16] 0.0, 128
        %1174 = vxpose.xlu0.b32.cont [9/16] 0.0, 128
        %1175 = vxpose.xlu0.b32.cont [10/16] 0.0, 128
        %1176 = vxpose.xlu0.b32.cont [11/16] 0.0, 128
        %1177 = vxpose.xlu0.b32.cont [12/16] 0.0, 128
        %1178 = vxpose.xlu0.b32.cont [13/16] 0.0, 128
        %1179 = vxpose.xlu0.b32.cont [14/16] 0.0, 128
        %1180 = vxpose.xlu0.b32.cont [15/16] 0.0, 128
        %1181 = vxpose.xlu0.b32.end [16/16] 0.0, 128
        %v1182 = vpop.trf.xlu0
        %v1183 = vpop.trf.xlu0
        %v1184 = vpop.trf.xlu0
        %v1185 = vpop.trf.xlu0
        %v1186 = vpop.trf.xlu0
        %v1187 = vpop.trf.xlu0
        %v1188 = vpop.trf.xlu0
        %v1189 = vpop.trf.xlu0
        %v1190 = vpop.trf.xlu0
        %v1191 = vpop.trf.xlu0
        %v1192 = vpop.trf.xlu0
        %v1193 = vpop.trf.xlu0
        %v1194 = vpop.trf.xlu0
        %v1195 = vpop.trf.xlu0
        %v1196 = vpop.trf.xlu0
        %v1197 = vpop.trf.xlu0
        %1198 = vxpose.xlu0.b32.start [1/16] %v1011, 128
        %1199 = vxpose.xlu0.b32.cont [2/16] 0.0, 128
        %1200 = vxpose.xlu0.b32.cont [3/16] 0.0, 128
        %1201 = vxpose.xlu0.b32.cont [4/16] 0.0, 128
        %1202 = vxpose.xlu0.b32.cont [5/16] 0.0, 128
        %1203 = vxpose.xlu0.b32.cont [6/16] 0.0, 128
        %1204 = vxpose.xlu0.b32.cont [7/16] 0.0, 128
        %1205 = vxpose.xlu0.b32.cont [8/16] 0.0, 128
        %1206 = vxpose.xlu0.b32.cont [9/16] 0.0, 128
        %1207 = vxpose.xlu0.b32.cont [10/16] 0.0, 128
        %1208 = vxpose.xlu0.b32.cont [11/16] 0.0, 128
        %1209 = vxpose.xlu0.b32.cont [12/16] 0.0, 128
        %1210 = vxpose.xlu0.b32.cont [13/16] 0.0, 128
        %1211 = vxpose.xlu0.b32.cont [14/16] 0.0, 128
        %1212 = vxpose.xlu0.b32.cont [15/16] 0.0, 128
        %1213 = vxpose.xlu0.b32.end [16/16] 0.0, 128
        %v1214 = vpop.trf.xlu0
        %v1215 = vpop.trf.xlu0
        %v1216 = vpop.trf.xlu0
        %v1217 = vpop.trf.xlu0
        %v1218 = vpop.trf.xlu0
        %v1219 = vpop.trf.xlu0
        %v1220 = vpop.trf.xlu0
        %v1221 = vpop.trf.xlu0
        %v1222 = vpop.trf.xlu0
        %v1223 = vpop.trf.xlu0
        %v1224 = vpop.trf.xlu0
        %v1225 = vpop.trf.xlu0
        %v1226 = vpop.trf.xlu0
        %v1227 = vpop.trf.xlu0
        %v1228 = vpop.trf.xlu0
        %v1229 = vpop.trf.xlu0
        %1230 = vxpose.xlu0.b32.start [1/16] %v1013, 128
        %1231 = vxpose.xlu0.b32.cont [2/16] 0.0, 128
        %1232 = vxpose.xlu0.b32.cont [3/16] 0.0, 128
        %1233 = vxpose.xlu0.b32.cont [4/16] 0.0, 128
        %1234 = vxpose.xlu0.b32.cont [5/16] 0.0, 128
        %1235 = vxpose.xlu0.b32.cont [6/16] 0.0, 128
        %1236 = vxpose.xlu0.b32.cont [7/16] 0.0, 128
        %1237 = vxpose.xlu0.b32.cont [8/16] 0.0, 128
        %1238 = vxpose.xlu0.b32.cont [9/16] 0.0, 128
        %1239 = vxpose.xlu0.b32.cont [10/16] 0.0, 128
        %1240 = vxpose.xlu0.b32.cont [11/16] 0.0, 128
        %1241 = vxpose.xlu0.b32.cont [12/16] 0.0, 128
        %1242 = vxpose.xlu0.b32.cont [13/16] 0.0, 128
        %1243 = vxpose.xlu0.b32.cont [14/16] 0.0, 128
        %1244 = vxpose.xlu0.b32.cont [15/16] 0.0, 128
        %1245 = vxpose.xlu0.b32.end [16/16] 0.0, 128
        %v1246 = vpop.trf.xlu0
        %v1247 = vpop.trf.xlu0
        %v1248 = vpop.trf.xlu0
        %v1249 = vpop.trf.xlu0
        %v1250 = vpop.trf.xlu0
        %v1251 = vpop.trf.xlu0
        %v1252 = vpop.trf.xlu0
        %v1253 = vpop.trf.xlu0
        %v1254 = vpop.trf.xlu0
        %v1255 = vpop.trf.xlu0
        %v1256 = vpop.trf.xlu0
        %v1257 = vpop.trf.xlu0
        %v1258 = vpop.trf.xlu0
        %v1259 = vpop.trf.xlu0
        %v1260 = vpop.trf.xlu0
        %v1261 = vpop.trf.xlu0
        %1262 = vxpose.xlu0.b32.start [1/16] %v1015, 128
        %1263 = vxpose.xlu0.b32.cont [2/16] 0.0, 128
        %1264 = vxpose.xlu0.b32.cont [3/16] 0.0, 128
        %1265 = vxpose.xlu0.b32.cont [4/16] 0.0, 128
        %1266 = vxpose.xlu0.b32.cont [5/16] 0.0, 128
        %1267 = vxpose.xlu0.b32.cont [6/16] 0.0, 128
        %1268 = vxpose.xlu0.b32.cont [7/16] 0.0, 128
        %1269 = vxpose.xlu0.b32.cont [8/16] 0.0, 128
        %1270 = vxpose.xlu0.b32.cont [9/16] 0.0, 128
        %1271 = vxpose.xlu0.b32.cont [10/16] 0.0, 128
        %1272 = vxpose.xlu0.b32.cont [11/16] 0.0, 128
        %1273 = vxpose.xlu0.b32.cont [12/16] 0.0, 128
        %1274 = vxpose.xlu0.b32.cont [13/16] 0.0, 128
        %1275 = vxpose.xlu0.b32.cont [14/16] 0.0, 128
        %1276 = vxpose.xlu0.b32.cont [15/16] 0.0, 128
        %1277 = vxpose.xlu0.b32.end [16/16] 0.0, 128
        %v1278 = vpop.trf.xlu0
        %v1279 = vpop.trf.xlu0
        %v1280 = vpop.trf.xlu0
        %v1281 = vpop.trf.xlu0
        %v1282 = vpop.trf.xlu0
        %v1283 = vpop.trf.xlu0
        %v1284 = vpop.trf.xlu0
        %v1285 = vpop.trf.xlu0
        %v1286 = vpop.trf.xlu0
        %v1287 = vpop.trf.xlu0
        %v1288 = vpop.trf.xlu0
        %v1289 = vpop.trf.xlu0
        %v1290 = vpop.trf.xlu0
        %v1291 = vpop.trf.xlu0
        %v1292 = vpop.trf.xlu0
        %v1293 = vpop.trf.xlu0
        %1294 = vxpose.xlu0.b32.start [1/16] %v1017, 128
        %1295 = vxpose.xlu0.b32.cont [2/16] 0.0, 128
        %1296 = vxpose.xlu0.b32.cont [3/16] 0.0, 128
        %1297 = vxpose.xlu0.b32.cont [4/16] 0.0, 128
        %1298 = vxpose.xlu0.b32.cont [5/16] 0.0, 128
        %1299 = vxpose.xlu0.b32.cont [6/16] 0.0, 128
        %1300 = vxpose.xlu0.b32.cont [7/16] 0.0, 128
        %1301 = vxpose.xlu0.b32.cont [8/16] 0.0, 128
        %1302 = vxpose.xlu0.b32.cont [9/16] 0.0, 128
        %1303 = vxpose.xlu0.b32.cont [10/16] 0.0, 128
        %1304 = vxpose.xlu0.b32.cont [11/16] 0.0, 128
        %1305 = vxpose.xlu0.b32.cont [12/16] 0.0, 128
        %1306 = vxpose.xlu0.b32.cont [13/16] 0.0, 128
        %1307 = vxpose.xlu0.b32.cont [14/16] 0.0, 128
        %1308 = vxpose.xlu0.b32.cont [15/16] 0.0, 128
        %1309 = vxpose.xlu0.b32.end [16/16] 0.0, 128
        %v1310 = vpop.trf.xlu0
        %v1311 = vpop.trf.xlu0
        %v1312 = vpop.trf.xlu0
        %v1313 = vpop.trf.xlu0
        %v1314 = vpop.trf.xlu0
        %v1315 = vpop.trf.xlu0
        %v1316 = vpop.trf.xlu0
        %v1317 = vpop.trf.xlu0
        %v1318 = vpop.trf.xlu0
        %v1319 = vpop.trf.xlu0
        %v1320 = vpop.trf.xlu0
        %v1321 = vpop.trf.xlu0
        %v1322 = vpop.trf.xlu0
        %v1323 = vpop.trf.xlu0
        %v1324 = vpop.trf.xlu0
        %v1325 = vpop.trf.xlu0
        %1326 = vxpose.xlu0.b32.start [1/16] %v1019, 128
        %1327 = vxpose.xlu0.b32.cont [2/16] 0.0, 128
        %1328 = vxpose.xlu0.b32.cont [3/16] 0.0, 128
        %1329 = vxpose.xlu0.b32.cont [4/16] 0.0, 128
        %1330 = vxpose.xlu0.b32.cont [5/16] 0.0, 128
        %1331 = vxpose.xlu0.b32.cont [6/16] 0.0, 128
        %1332 = vxpose.xlu0.b32.cont [7/16] 0.0, 128
        %1333 = vxpose.xlu0.b32.cont [8/16] 0.0, 128
        %1334 = vxpose.xlu0.b32.cont [9/16] 0.0, 128
        %1335 = vxpose.xlu0.b32.cont [10/16] 0.0, 128
        %1336 = vxpose.xlu0.b32.cont [11/16] 0.0, 128
        %1337 = vxpose.xlu0.b32.cont [12/16] 0.0, 128
        %1338 = vxpose.xlu0.b32.cont [13/16] 0.0, 128
        %1339 = vxpose.xlu0.b32.cont [14/16] 0.0, 128
        %1340 = vxpose.xlu0.b32.cont [15/16] 0.0, 128
        %1341 = vxpose.xlu0.b32.end [16/16] 0.0, 128
        %v1342 = vpop.trf.xlu0
        %v1343 = vpop.trf.xlu0
        %v1344 = vpop.trf.xlu0
        %v1345 = vpop.trf.xlu0
        %v1346 = vpop.trf.xlu0
        %v1347 = vpop.trf.xlu0
        %v1348 = vpop.trf.xlu0
        %v1349 = vpop.trf.xlu0
        %v1350 = vpop.trf.xlu0
        %v1351 = vpop.trf.xlu0
        %v1352 = vpop.trf.xlu0
        %v1353 = vpop.trf.xlu0
        %v1354 = vpop.trf.xlu0
        %v1355 = vpop.trf.xlu0
        %v1356 = vpop.trf.xlu0
        %v1357 = vpop.trf.xlu0
        %1358 = vxpose.xlu0.b32.start [1/16] %v1021, 128
        %1359 = vxpose.xlu0.b32.cont [2/16] 0.0, 128
        %1360 = vxpose.xlu0.b32.cont [3/16] 0.0, 128
        %1361 = vxpose.xlu0.b32.cont [4/16] 0.0, 128
        %1362 = vxpose.xlu0.b32.cont [5/16] 0.0, 128
        %1363 = vxpose.xlu0.b32.cont [6/16] 0.0, 128
        %1364 = vxpose.xlu0.b32.cont [7/16] 0.0, 128
        %1365 = vxpose.xlu0.b32.cont [8/16] 0.0, 128
        %1366 = vxpose.xlu0.b32.cont [9/16] 0.0, 128
        %1367 = vxpose.xlu0.b32.cont [10/16] 0.0, 128
        %1368 = vxpose.xlu0.b32.cont [11/16] 0.0, 128
        %1369 = vxpose.xlu0.b32.cont [12/16] 0.0, 128
        %1370 = vxpose.xlu0.b32.cont [13/16] 0.0, 128
        %1371 = vxpose.xlu0.b32.cont [14/16] 0.0, 128
        %1372 = vxpose.xlu0.b32.cont [15/16] 0.0, 128
        %1373 = vxpose.xlu0.b32.end [16/16] 0.0, 128
        %v1374 = vpop.trf.xlu0
        %v1375 = vpop.trf.xlu0
        %v1376 = vpop.trf.xlu0
        %v1377 = vpop.trf.xlu0
        %v1378 = vpop.trf.xlu0
        %v1379 = vpop.trf.xlu0
        %v1380 = vpop.trf.xlu0
        %v1381 = vpop.trf.xlu0
        %v1382 = vpop.trf.xlu0
        %v1383 = vpop.trf.xlu0
        %v1384 = vpop.trf.xlu0
        %v1385 = vpop.trf.xlu0
        %v1386 = vpop.trf.xlu0
        %v1387 = vpop.trf.xlu0
        %v1388 = vpop.trf.xlu0
        %v1389 = vpop.trf.xlu0
        %1390 = vxpose.xlu0.b32.start [1/16] %v1119, 128
        %1391 = vxpose.xlu0.b32.cont [2/16] 0.0, 128
        %1392 = vxpose.xlu0.b32.cont [3/16] 0.0, 128
        %1393 = vxpose.xlu0.b32.cont [4/16] 0.0, 128
        %1394 = vxpose.xlu0.b32.cont [5/16] 0.0, 128
        %1395 = vxpose.xlu0.b32.cont [6/16] 0.0, 128
        %1396 = vxpose.xlu0.b32.cont [7/16] 0.0, 128
        %1397 = vxpose.xlu0.b32.cont [8/16] 0.0, 128
        %1398 = vxpose.xlu0.b32.cont [9/16] 0.0, 128
        %1399 = vxpose.xlu0.b32.cont [10/16] 0.0, 128
        %1400 = vxpose.xlu0.b32.cont [11/16] 0.0, 128
        %1401 = vxpose.xlu0.b32.cont [12/16] 0.0, 128
        %1402 = vxpose.xlu0.b32.cont [13/16] 0.0, 128
        %1403 = vxpose.xlu0.b32.cont [14/16] 0.0, 128
        %1404 = vxpose.xlu0.b32.cont [15/16] 0.0, 128
        %1405 = vxpose.xlu0.b32.end [16/16] 0.0, 128
        %v1406 = vpop.trf.xlu0
        %v1407 = vpop.trf.xlu0
        %v1408 = vpop.trf.xlu0
        %v1409 = vpop.trf.xlu0
        %v1410 = vpop.trf.xlu0
        %v1411 = vpop.trf.xlu0
        %v1412 = vpop.trf.xlu0
        %v1413 = vpop.trf.xlu0
        %v1414 = vpop.trf.xlu0
        %v1415 = vpop.trf.xlu0
        %v1416 = vpop.trf.xlu0
        %v1417 = vpop.trf.xlu0
        %v1418 = vpop.trf.xlu0
        %v1419 = vpop.trf.xlu0
        %v1420 = vpop.trf.xlu0
        %v1421 = vpop.trf.xlu0
        %1422 = vxpose.xlu0.b32.start [1/16] %v1121, 128
        %1423 = vxpose.xlu0.b32.cont [2/16] 0.0, 128
        %1424 = vxpose.xlu0.b32.cont [3/16] 0.0, 128
        %1425 = vxpose.xlu0.b32.cont [4/16] 0.0, 128
        %1426 = vxpose.xlu0.b32.cont [5/16] 0.0, 128
        %1427 = vxpose.xlu0.b32.cont [6/16] 0.0, 128
        %1428 = vxpose.xlu0.b32.cont [7/16] 0.0, 128
        %1429 = vxpose.xlu0.b32.cont [8/16] 0.0, 128
        %1430 = vxpose.xlu0.b32.cont [9/16] 0.0, 128
        %1431 = vxpose.xlu0.b32.cont [10/16] 0.0, 128
        %1432 = vxpose.xlu0.b32.cont [11/16] 0.0, 128
        %1433 = vxpose.xlu0.b32.cont [12/16] 0.0, 128
        %1434 = vxpose.xlu0.b32.cont [13/16] 0.0, 128
        %1435 = vxpose.xlu0.b32.cont [14/16] 0.0, 128
        %1436 = vxpose.xlu0.b32.cont [15/16] 0.0, 128
        %1437 = vxpose.xlu0.b32.end [16/16] 0.0, 128
        %v1438 = vpop.trf.xlu0
        %v1439 = vpop.trf.xlu0
        %v1440 = vpop.trf.xlu0
        %v1441 = vpop.trf.xlu0
        %v1442 = vpop.trf.xlu0
        %v1443 = vpop.trf.xlu0
        %v1444 = vpop.trf.xlu0
        %v1445 = vpop.trf.xlu0
        %v1446 = vpop.trf.xlu0
        %v1447 = vpop.trf.xlu0
        %v1448 = vpop.trf.xlu0
        %v1449 = vpop.trf.xlu0
        %v1450 = vpop.trf.xlu0
        %v1451 = vpop.trf.xlu0
        %v1452 = vpop.trf.xlu0
        %v1453 = vpop.trf.xlu0
        %1454 = vxpose.xlu0.b32.start [1/16] %v1123, 128
        %1455 = vxpose.xlu0.b32.cont [2/16] 0.0, 128
        %1456 = vxpose.xlu0.b32.cont [3/16] 0.0, 128
        %1457 = vxpose.xlu0.b32.cont [4/16] 0.0, 128
        %1458 = vxpose.xlu0.b32.cont [5/16] 0.0, 128
        %1459 = vxpose.xlu0.b32.cont [6/16] 0.0, 128
        %1460 = vxpose.xlu0.b32.cont [7/16] 0.0, 128
        %1461 = vxpose.xlu0.b32.cont [8/16] 0.0, 128
        %1462 = vxpose.xlu0.b32.cont [9/16] 0.0, 128
        %1463 = vxpose.xlu0.b32.cont [10/16] 0.0, 128
        %1464 = vxpose.xlu0.b32.cont [11/16] 0.0, 128
        %1465 = vxpose.xlu0.b32.cont [12/16] 0.0, 128
        %1466 = vxpose.xlu0.b32.cont [13/16] 0.0, 128
        %1467 = vxpose.xlu0.b32.cont [14/16] 0.0, 128
        %1468 = vxpose.xlu0.b32.cont [15/16] 0.0, 128
        %1469 = vxpose.xlu0.b32.end [16/16] 0.0, 128
        %v1470 = vpop.trf.xlu0
        %v1471 = vpop.trf.xlu0
        %v1472 = vpop.trf.xlu0
        %v1473 = vpop.trf.xlu0
        %v1474 = vpop.trf.xlu0
        %v1475 = vpop.trf.xlu0
        %v1476 = vpop.trf.xlu0
        %v1477 = vpop.trf.xlu0
        %v1478 = vpop.trf.xlu0
        %v1479 = vpop.trf.xlu0
        %v1480 = vpop.trf.xlu0
        %v1481 = vpop.trf.xlu0
        %v1482 = vpop.trf.xlu0
        %v1483 = vpop.trf.xlu0
        %v1484 = vpop.trf.xlu0
        %v1485 = vpop.trf.xlu0
        %1486 = vxpose.xlu0.b32.start [1/16] %v1125, 128
        %1487 = vxpose.xlu0.b32.cont [2/16] 0.0, 128
        %1488 = vxpose.xlu0.b32.cont [3/16] 0.0, 128
        %1489 = vxpose.xlu0.b32.cont [4/16] 0.0, 128
        %1490 = vxpose.xlu0.b32.cont [5/16] 0.0, 128
        %1491 = vxpose.xlu0.b32.cont [6/16] 0.0, 128
        %1492 = vxpose.xlu0.b32.cont [7/16] 0.0, 128
        %1493 = vxpose.xlu0.b32.cont [8/16] 0.0, 128
        %1494 = vxpose.xlu0.b32.cont [9/16] 0.0, 128
        %1495 = vxpose.xlu0.b32.cont [10/16] 0.0, 128
        %1496 = vxpose.xlu0.b32.cont [11/16] 0.0, 128
        %1497 = vxpose.xlu0.b32.cont [12/16] 0.0, 128
        %1498 = vxpose.xlu0.b32.cont [13/16] 0.0, 128
        %1499 = vxpose.xlu0.b32.cont [14/16] 0.0, 128
        %1500 = vxpose.xlu0.b32.cont [15/16] 0.0, 128
        %1501 = vxpose.xlu0.b32.end [16/16] 0.0, 128
        %v1502 = vpop.trf.xlu0
        %v1503 = vpop.trf.xlu0
        %v1504 = vpop.trf.xlu0
        %v1505 = vpop.trf.xlu0
        %v1506 = vpop.trf.xlu0
        %v1507 = vpop.trf.xlu0
        %v1508 = vpop.trf.xlu0
        %v1509 = vpop.trf.xlu0
        %v1510 = vpop.trf.xlu0
        %v1511 = vpop.trf.xlu0
        %v1512 = vpop.trf.xlu0
        %v1513 = vpop.trf.xlu0
        %v1514 = vpop.trf.xlu0
        %v1515 = vpop.trf.xlu0
        %v1516 = vpop.trf.xlu0
        %v1517 = vpop.trf.xlu0
        %1518 = vxpose.xlu0.b32.start [1/16] %v1127, 128
        %1519 = vxpose.xlu0.b32.cont [2/16] 0.0, 128
        %1520 = vxpose.xlu0.b32.cont [3/16] 0.0, 128
        %1521 = vxpose.xlu0.b32.cont [4/16] 0.0, 128
        %1522 = vxpose.xlu0.b32.cont [5/16] 0.0, 128
        %1523 = vxpose.xlu0.b32.cont [6/16] 0.0, 128
        %1524 = vxpose.xlu0.b32.cont [7/16] 0.0, 128
        %1525 = vxpose.xlu0.b32.cont [8/16] 0.0, 128
        %1526 = vxpose.xlu0.b32.cont [9/16] 0.0, 128
        %1527 = vxpose.xlu0.b32.cont [10/16] 0.0, 128
        %1528 = vxpose.xlu0.b32.cont [11/16] 0.0, 128
        %1529 = vxpose.xlu0.b32.cont [12/16] 0.0, 128
        %1530 = vxpose.xlu0.b32.cont [13/16] 0.0, 128
        %1531 = vxpose.xlu0.b32.cont [14/16] 0.0, 128
        %1532 = vxpose.xlu0.b32.cont [15/16] 0.0, 128
        %1533 = vxpose.xlu0.b32.end [16/16] 0.0, 128
        %v1534 = vpop.trf.xlu0
        %v1535 = vpop.trf.xlu0
        %v1536 = vpop.trf.xlu0
        %v1537 = vpop.trf.xlu0
        %v1538 = vpop.trf.xlu0
        %v1539 = vpop.trf.xlu0
        %v1540 = vpop.trf.xlu0
        %v1541 = vpop.trf.xlu0
        %v1542 = vpop.trf.xlu0
        %v1543 = vpop.trf.xlu0
        %v1544 = vpop.trf.xlu0
        %v1545 = vpop.trf.xlu0
        %v1546 = vpop.trf.xlu0
        %v1547 = vpop.trf.xlu0
        %v1548 = vpop.trf.xlu0
        %v1549 = vpop.trf.xlu0
        %1550 = vxpose.xlu0.b32.start [1/16] %v1129, 128
        %1551 = vxpose.xlu0.b32.cont [2/16] 0.0, 128
        %1552 = vxpose.xlu0.b32.cont [3/16] 0.0, 128
        %1553 = vxpose.xlu0.b32.cont [4/16] 0.0, 128
        %1554 = vxpose.xlu0.b32.cont [5/16] 0.0, 128
        %1555 = vxpose.xlu0.b32.cont [6/16] 0.0, 128
        %1556 = vxpose.xlu0.b32.cont [7/16] 0.0, 128
        %1557 = vxpose.xlu0.b32.cont [8/16] 0.0, 128
        %1558 = vxpose.xlu0.b32.cont [9/16] 0.0, 128
        %1559 = vxpose.xlu0.b32.cont [10/16] 0.0, 128
        %1560 = vxpose.xlu0.b32.cont [11/16] 0.0, 128
        %1561 = vxpose.xlu0.b32.cont [12/16] 0.0, 128
        %1562 = vxpose.xlu0.b32.cont [13/16] 0.0, 128
        %1563 = vxpose.xlu0.b32.cont [14/16] 0.0, 128
        %1564 = vxpose.xlu0.b32.cont [15/16] 0.0, 128
        %1565 = vxpose.xlu0.b32.end [16/16] 0.0, 128
        %v1566 = vpop.trf.xlu0
        %v1567 = vpop.trf.xlu0
        %v1568 = vpop.trf.xlu0
        %v1569 = vpop.trf.xlu0
        %v1570 = vpop.trf.xlu0
        %v1571 = vpop.trf.xlu0
        %v1572 = vpop.trf.xlu0
        %v1573 = vpop.trf.xlu0
        %v1574 = vpop.trf.xlu0
        %v1575 = vpop.trf.xlu0
        %v1576 = vpop.trf.xlu0
        %v1577 = vpop.trf.xlu0
        %v1578 = vpop.trf.xlu0
        %v1579 = vpop.trf.xlu0
        %v1580 = vpop.trf.xlu0
        %v1581 = vpop.trf.xlu0
        %1582 = vxpose.xlu0.b32.start [1/16] %v1131, 128
        %1583 = vxpose.xlu0.b32.cont [2/16] 0.0, 128
        %1584 = vxpose.xlu0.b32.cont [3/16] 0.0, 128
        %1585 = vxpose.xlu0.b32.cont [4/16] 0.0, 128
        %1586 = vxpose.xlu0.b32.cont [5/16] 0.0, 128
        %1587 = vxpose.xlu0.b32.cont [6/16] 0.0, 128
        %1588 = vxpose.xlu0.b32.cont [7/16] 0.0, 128
        %1589 = vxpose.xlu0.b32.cont [8/16] 0.0, 128
        %1590 = vxpose.xlu0.b32.cont [9/16] 0.0, 128
        %1591 = vxpose.xlu0.b32.cont [10/16] 0.0, 128
        %1592 = vxpose.xlu0.b32.cont [11/16] 0.0, 128
        %1593 = vxpose.xlu0.b32.cont [12/16] 0.0, 128
        %1594 = vxpose.xlu0.b32.cont [13/16] 0.0, 128
        %1595 = vxpose.xlu0.b32.cont [14/16] 0.0, 128
        %1596 = vxpose.xlu0.b32.cont [15/16] 0.0, 128
        %1597 = vxpose.xlu0.b32.end [16/16] 0.0, 128
        %v1598 = vpop.trf.xlu0
        %v1599 = vpop.trf.xlu0
        %v1600 = vpop.trf.xlu0
        %v1601 = vpop.trf.xlu0
        %v1602 = vpop.trf.xlu0
        %v1603 = vpop.trf.xlu0
        %v1604 = vpop.trf.xlu0
        %v1605 = vpop.trf.xlu0
        %v1606 = vpop.trf.xlu0
        %v1607 = vpop.trf.xlu0
        %v1608 = vpop.trf.xlu0
        %v1609 = vpop.trf.xlu0
        %v1610 = vpop.trf.xlu0
        %v1611 = vpop.trf.xlu0
        %v1612 = vpop.trf.xlu0
        %v1613 = vpop.trf.xlu0
        %1614 = vxpose.xlu0.b32.start [1/16] %v1133, 128
        %1615 = vxpose.xlu0.b32.cont [2/16] 0.0, 128
        %1616 = vxpose.xlu0.b32.cont [3/16] 0.0, 128
        %1617 = vxpose.xlu0.b32.cont [4/16] 0.0, 128
        %1618 = vxpose.xlu0.b32.cont [5/16] 0.0, 128
        %1619 = vxpose.xlu0.b32.cont [6/16] 0.0, 128
        %1620 = vxpose.xlu0.b32.cont [7/16] 0.0, 128
        %1621 = vxpose.xlu0.b32.cont [8/16] 0.0, 128
        %1622 = vxpose.xlu0.b32.cont [9/16] 0.0, 128
        %1623 = vxpose.xlu0.b32.cont [10/16] 0.0, 128
        %1624 = vxpose.xlu0.b32.cont [11/16] 0.0, 128
        %1625 = vxpose.xlu0.b32.cont [12/16] 0.0, 128
        %1626 = vxpose.xlu0.b32.cont [13/16] 0.0, 128
        %1627 = vxpose.xlu0.b32.cont [14/16] 0.0, 128
        %1628 = vxpose.xlu0.b32.cont [15/16] 0.0, 128
        %1629 = vxpose.xlu0.b32.end [16/16] 0.0, 128
        %v1630 = vpop.trf.xlu0
        %v1631 = vpop.trf.xlu0
        %v1632 = vpop.trf.xlu0
        %v1633 = vpop.trf.xlu0
        %v1634 = vpop.trf.xlu0
        %v1635 = vpop.trf.xlu0
        %v1636 = vpop.trf.xlu0
        %v1637 = vpop.trf.xlu0
        %v1638 = vpop.trf.xlu0
        %v1639 = vpop.trf.xlu0
        %v1640 = vpop.trf.xlu0
        %v1641 = vpop.trf.xlu0
        %v1642 = vpop.trf.xlu0
        %v1643 = vpop.trf.xlu0
        %v1644 = vpop.trf.xlu0
        %v1645 = vpop.trf.xlu0
        %v1646 = vrot.slane %v1214, 4
        %v1647 = vsel %vm614, %v1646, %v1150
        %v1649 = vunpack.c.l.s4 1983009808
        %v1650 = vunpack.c.0.s8 %v1649
        %v1651 = vperm.slane %v1647, %v1650
        %v1652 = vrot.slane %v1246, 4
        %v1653 = vsel %vm614, %v1652, %v1182
        %v1655 = vunpack.c.l.s4 1983009808
        %v1656 = vunpack.c.0.s8 %v1655
        %v1657 = vperm.slane %v1653, %v1656
        %v1658 = vrot.slane %v1342, 4
        %v1659 = vsel %vm614, %v1658, %v1278
        %v1661 = vunpack.c.l.s4 1983009808
        %v1662 = vunpack.c.0.s8 %v1661
        %v1663 = vperm.slane %v1659, %v1662
        %v1664 = vrot.slane %v1374, 4
        %v1665 = vsel %vm614, %v1664, %v1310
        %v1667 = vunpack.c.l.s4 1983009808
        %v1668 = vunpack.c.0.s8 %v1667
        %v1669 = vperm.slane %v1665, %v1668
        %v1670 = vrot.slane %v1657, 4
        %v1671 = vsel %vm614, %v1670, %v1651
        %v1673 = vunpack.c.l.s4 1934713408
        %v1674 = vunpack.c.0.s8 %v1673
        %v1675 = vperm.slane %v1671, %v1674
        %v1676 = vrot.slane %v1669, 4
        %v1677 = vsel %vm614, %v1676, %v1663
        %v1679 = vunpack.c.l.s4 1934713408
        %v1680 = vunpack.c.0.s8 %v1679
        %v1681 = vperm.slane %v1677, %v1680
        %v1682 = vrot.slane %v1681, 4
        %v1683 = vsel %vm614, %v1682, %v1675
        %v1684 = vrot.slane %v1675, 4
        %v1685 = vsel %vm614, %v1681, %v1684
        %v1686 = vrot.slane %v1470, 4
        %v1687 = vsel %vm614, %v1686, %v1406
        %v1689 = vunpack.c.l.s4 1983009808
        %v1690 = vunpack.c.0.s8 %v1689
        %v1691 = vperm.slane %v1687, %v1690
        %v1692 = vrot.slane %v1502, 4
        %v1693 = vsel %vm614, %v1692, %v1438
        %v1695 = vunpack.c.l.s4 1983009808
        %v1696 = vunpack.c.0.s8 %v1695
        %v1697 = vperm.slane %v1693, %v1696
        %v1698 = vrot.slane %v1598, 4
        %v1699 = vsel %vm614, %v1698, %v1534
        %v1701 = vunpack.c.l.s4 1983009808
        %v1702 = vunpack.c.0.s8 %v1701
        %v1703 = vperm.slane %v1699, %v1702
        %v1704 = vrot.slane %v1630, 4
        %v1705 = vsel %vm614, %v1704, %v1566
        %v1707 = vunpack.c.l.s4 1983009808
        %v1708 = vunpack.c.0.s8 %v1707
        %v1709 = vperm.slane %v1705, %v1708
        %v1710 = vrot.slane %v1697, 4
        %v1711 = vsel %vm614, %v1710, %v1691
        %v1713 = vunpack.c.l.s4 1934713408
        %v1714 = vunpack.c.0.s8 %v1713
        %v1715 = vperm.slane %v1711, %v1714
        %v1716 = vrot.slane %v1709, 4
        %v1717 = vsel %vm614, %v1716, %v1703
        %v1719 = vunpack.c.l.s4 1934713408
        %v1720 = vunpack.c.0.s8 %v1719
        %v1721 = vperm.slane %v1717, %v1720
        %v1722 = vrot.slane %v1721, 4
        %v1723 = vsel %vm614, %v1722, %v1715
        %v1724 = vrot.slane %v1715, 4
        %v1725 = vsel %vm614, %v1721, %v1724
        %vm1726 = vcmask 130048
        %v1728 = vsel %vm1726, %v651, 0
        %1730 = vmatpush.msra.mxu0 0.0
        %1731 = vmatpush.msra.mxu0 0.0
        %1732 = vmatpush.msra.mxu0 0.0
        %1733 = vmatpush.msra.mxu0 0.0
        %1734 = vmatpush.msra.mxu0 0.0
        %1735 = vmatpush.msra.mxu0 0.0
        %1736 = vmatpush.msra.mxu0 0.0
        %1737 = vmatpush.msra.mxu0 0.0
        %1738 = vmatpush.msra.mxu0 0.0
        %1739 = vmatpush.msra.mxu0 0.0
        %1740 = vmatpush.msra.mxu0 0.0
        %1741 = vmatpush.msra.mxu0 0.0
        %1742 = vmatpush.msra.mxu0 0.0
        %1743 = vmatpush.msra.mxu0 0.0
        %1744 = vmatpush.msra.mxu0 %v1723
        %1745 = vmatpush.msra.mxu0 %v1683
        %1746 = vmatmul.f32.gmra.mxu0 %v1728
        %v1747 = vpop.f32.mrf.mxu0
        %v1748 = vadd.f32 0.0, %v1747
        %1749 = vdwg.mxu0
        %v1751 = vsel %vm1726, %v653, 0
        %1753 = vmatpush.msra.mxu0 0.0
        %1754 = vmatpush.msra.mxu0 0.0
        %1755 = vmatpush.msra.mxu0 0.0
        %1756 = vmatpush.msra.mxu0 0.0
        %1757 = vmatpush.msra.mxu0 0.0
        %1758 = vmatpush.msra.mxu0 0.0
        %1759 = vmatpush.msra.mxu0 0.0
        %1760 = vmatpush.msra.mxu0 0.0
        %1761 = vmatpush.msra.mxu0 0.0
        %1762 = vmatpush.msra.mxu0 0.0
        %1763 = vmatpush.msra.mxu0 0.0
        %1764 = vmatpush.msra.mxu0 0.0
        %1765 = vmatpush.msra.mxu0 0.0
        %1766 = vmatpush.msra.mxu0 0.0
        %1767 = vmatpush.msra.mxu0 %v1725
        %1768 = vmatpush.msra.mxu0 %v1685
        %1769 = vmatmul.f32.gmra.mxu0 %v1751
        %v1770 = vpop.f32.mrf.mxu0
        %v1771 = vadd.f32 0.0, %v1770
        %1772 = vdwg.mxu0
        %v1773 = vmul.f32 %v1748, 0.35355338
        %v1774 = vmul.f32 %v1771, 0.35355338
        %vm1775 = vcmask 64512
        %v1776 = vsel %vm1775, %v1773, -inf
        %1777 = vmax.xlane.f32.xlu0 %v1776
        %v1778 = vpop.xlane.xlu0 %1777
        %v1779 = vsel %vm1775, %v1774, -inf
        %1780 = vmax.xlane.f32.xlu0 %v1779
        %v1781 = vpop.xlane.xlu0 %1780
        %v1782 = vsub.f32 %v1773, %v1778
        %v1783 = vsub.f32 %v1774, %v1781
        %v1784 = vmul.f32 %v1782, 1.442695
        %v1785 = vpow.pop %v1784
        %v1786 = vmul.f32 %v1783, 1.442695
        %v1787 = vpow.pop %v1786
        %v1788 = vsel %vm1775, %v1785, 0.0
        %1789 = vadd.xlane.f32.xlu0 %v1788
        %v1790 = vpop.xlane.xlu0 %1789
        %v1791 = vsel %vm1775, %v1787, 0.0
        %1792 = vadd.xlane.f32.xlu0 %v1791
        %v1793 = vpop.xlane.xlu0 %1792
        %v1794 = vrcp.pop %v1790
        %v1795 = vrcp.pop %v1793
        %v1796 = vmul.f32 %v1785, %v1794
        %v1797 = vmul.f32 %v1787, %v1795
        %v1798 = vrot.slane %v607, 4
        %v1799 = vsel %vm614, %v1798, %v605
        %v1801 = vunpack.c.l.s4 1983009808
        %v1802 = vunpack.c.0.s8 %v1801
        %v1803 = vperm.slane %v1799, %v1802
        %v1804 = vrot.slane %v608, 4
        %v1805 = vsel %vm614, %v1804, %v606
        %v1807 = vunpack.c.l.s4 1983009808
        %v1808 = vunpack.c.0.s8 %v1807
        %v1809 = vperm.slane %v1805, %v1808
        %v1810 = vrot.slane %v611, 4
        %v1811 = vsel %vm614, %v1810, %v609
        %v1813 = vunpack.c.l.s4 1983009808
        %v1814 = vunpack.c.0.s8 %v1813
        %v1815 = vperm.slane %v1811, %v1814
        %v1816 = vrot.slane %v612, 4
        %v1817 = vsel %vm614, %v1816, %v610
        %v1819 = vunpack.c.l.s4 1983009808
        %v1820 = vunpack.c.0.s8 %v1819
        %v1821 = vperm.slane %v1817, %v1820
        %v1822 = vrot.slane %v1809, 4
        %v1823 = vsel %vm614, %v1822, %v1803
        %v1825 = vunpack.c.l.s4 1934713408
        %v1826 = vunpack.c.0.s8 %v1825
        %v1827 = vperm.slane %v1823, %v1826
        %v1828 = vrot.slane %v1821, 4
        %v1829 = vsel %vm614, %v1828, %v1815
        %v1831 = vunpack.c.l.s4 1934713408
        %v1832 = vunpack.c.0.s8 %v1831
        %v1833 = vperm.slane %v1829, %v1832
        %v1834 = vrot.slane %v1833, 4
        %v1835 = vsel %vm614, %v1834, %v1827
        %v1836 = vrot.slane %v1827, 4
        %v1837 = vsel %vm614, %v1833, %v1836
        %v1839 = vsel %vm1775, %v1796, 0
        %1841 = vmatpush.msra.mxu0 0.0
        %1842 = vmatpush.msra.mxu0 0.0
        %1843 = vmatpush.msra.mxu0 0.0
        %1844 = vmatpush.msra.mxu0 0.0
        %1845 = vmatpush.msra.mxu0 0.0
        %1846 = vmatpush.msra.mxu0 0.0
        %1847 = vmatpush.msra.mxu0 0.0
        %1848 = vmatpush.msra.mxu0 0.0
        %1849 = vmatpush.msra.mxu0 0.0
        %1850 = vmatpush.msra.mxu0 0.0
        %1851 = vmatpush.msra.mxu0 0.0
        %1852 = vmatpush.msra.mxu0 0.0
        %1853 = vmatpush.msra.mxu0 0.0
        %1854 = vmatpush.msra.mxu0 0.0
        %1855 = vmatpush.msra.mxu0 0.0
        %1856 = vmatpush.msra.mxu0 %v1835
        %1857 = vmatmul.f32.gmra.mxu0 %v1839
        %v1858 = vpop.f32.mrf.mxu0
        %v1859 = vadd.f32 0.0, %v1858
        %1860 = vdwg.mxu0
        %v1862 = vsel %vm1775, %v1797, 0
        %1864 = vmatpush.msra.mxu0 0.0
        %1865 = vmatpush.msra.mxu0 0.0
        %1866 = vmatpush.msra.mxu0 0.0
        %1867 = vmatpush.msra.mxu0 0.0
        %1868 = vmatpush.msra.mxu0 0.0
        %1869 = vmatpush.msra.mxu0 0.0
        %1870 = vmatpush.msra.mxu0 0.0
        %1871 = vmatpush.msra.mxu0 0.0
        %1872 = vmatpush.msra.mxu0 0.0
        %1873 = vmatpush.msra.mxu0 0.0
        %1874 = vmatpush.msra.mxu0 0.0
        %1875 = vmatpush.msra.mxu0 0.0
        %1876 = vmatpush.msra.mxu0 0.0
        %1877 = vmatpush.msra.mxu0 0.0
        %1878 = vmatpush.msra.mxu0 0.0
        %1879 = vmatpush.msra.mxu0 %v1837
        %1880 = vmatmul.f32.gmra.mxu0 %v1862
        %v1881 = vpop.f32.mrf.mxu0
        %v1882 = vadd.f32 0.0, %v1881
        %1883 = vdwg.mxu0
        %v1884 = vld [vmem:[%s569] sm:$0x3]
        %v1885 = vld [vmem:[%s569 + $0x2] sm:$0x3]
        %v1886 = vld [vmem:[%s569 + $0x4] sm:$0x3]
        %v1887 = vld [vmem:[%s569 + $0x6] sm:$0x3]
        %v1888 = vld [vmem:[%s569 + $0x8] sm:$0x3]
        %v1889 = vld [vmem:[%s569 + $0xa] sm:$0x3]
        %v1890 = vld [vmem:[%s569 + $0xc] sm:$0x3]
        %v1891 = vld [vmem:[%s569 + $0xe] sm:$0x3]
        %v1892 = vld [vmem:[%s580] sm:$0x3]
        %v1893 = vld [vmem:[%s580 + $0x2] sm:$0x3]
        %v1894 = vld [vmem:[%s580 + $0x4] sm:$0x3]
        %v1895 = vld [vmem:[%s580 + $0x6] sm:$0x3]
        %v1896 = vld [vmem:[%s580 + $0x8] sm:$0x3]
        %v1897 = vld [vmem:[%s580 + $0xa] sm:$0x3]
        %v1898 = vld [vmem:[%s580 + $0xc] sm:$0x3]
        %v1899 = vld [vmem:[%s580 + $0xe] sm:$0x3]
        %v1900 = vld [vmem:[%s482] sm:$0x3]
        %v1901 = vld [vmem:[%s482 + $0x2] sm:$0x3]
        %v1902 = vld [vmem:[%s482 + $0x4] sm:$0x3]
        %v1903 = vld [vmem:[%s482 + $0x6] sm:$0x3]
        %v1904 = vld [vmem:[%s482 + $0x8] sm:$0x3]
        %v1905 = vld [vmem:[%s482 + $0xa] sm:$0x3]
        %v1906 = vld [vmem:[%s482 + $0xc] sm:$0x3]
        %v1907 = vld [vmem:[%s482 + $0xe] sm:$0x3]
        %v1908 = vrot.slane %v1886, 4
        %v1909 = vsel %vm614, %v1908, %v1884
        %v1911 = vunpack.c.l.s4 1983009808
        %v1912 = vunpack.c.0.s8 %v1911
        %v1913 = vperm.slane %v1909, %v1912
        %v1914 = vrot.slane %v1887, 4
        %v1915 = vsel %vm614, %v1914, %v1885
        %v1917 = vunpack.c.l.s4 1983009808
        %v1918 = vunpack.c.0.s8 %v1917
        %v1919 = vperm.slane %v1915, %v1918
        %v1920 = vrot.slane %v1890, 4
        %v1921 = vsel %vm614, %v1920, %v1888
        %v1923 = vunpack.c.l.s4 1983009808
        %v1924 = vunpack.c.0.s8 %v1923
        %v1925 = vperm.slane %v1921, %v1924
        %v1926 = vrot.slane %v1891, 4
        %v1927 = vsel %vm614, %v1926, %v1889
        %v1929 = vunpack.c.l.s4 1983009808
        %v1930 = vunpack.c.0.s8 %v1929
        %v1931 = vperm.slane %v1927, %v1930
        %v1932 = vrot.slane %v1919, 4
        %v1933 = vsel %vm614, %v1932, %v1913
        %v1935 = vunpack.c.l.s4 1934713408
        %v1936 = vunpack.c.0.s8 %v1935
        %v1937 = vperm.slane %v1933, %v1936
        %v1938 = vrot.slane %v1931, 4
        %v1939 = vsel %vm614, %v1938, %v1925
        %v1941 = vunpack.c.l.s4 1934713408
        %v1942 = vunpack.c.0.s8 %v1941
        %v1943 = vperm.slane %v1939, %v1942
        %v1944 = vrot.slane %v1943, 4
        %v1945 = vsel %vm614, %v1944, %v1937
        %v1946 = vrot.slane %v1937, 4
        %v1947 = vsel %vm614, %v1943, %v1946
        %1948 = vxpose.xlu0.b32.start [1/16] %v1892, 128
        %1949 = vxpose.xlu0.b32.cont [2/16] 0.0, 128
        %1950 = vxpose.xlu0.b32.cont [3/16] 0.0, 128
        %1951 = vxpose.xlu0.b32.cont [4/16] 0.0, 128
        %1952 = vxpose.xlu0.b32.cont [5/16] 0.0, 128
        %1953 = vxpose.xlu0.b32.cont [6/16] 0.0, 128
        %1954 = vxpose.xlu0.b32.cont [7/16] 0.0, 128
        %1955 = vxpose.xlu0.b32.cont [8/16] 0.0, 128
        %1956 = vxpose.xlu0.b32.cont [9/16] 0.0, 128
        %1957 = vxpose.xlu0.b32.cont [10/16] 0.0, 128
        %1958 = vxpose.xlu0.b32.cont [11/16] 0.0, 128
        %1959 = vxpose.xlu0.b32.cont [12/16] 0.0, 128
        %1960 = vxpose.xlu0.b32.cont [13/16] 0.0, 128
        %1961 = vxpose.xlu0.b32.cont [14/16] 0.0, 128
        %1962 = vxpose.xlu0.b32.cont [15/16] 0.0, 128
        %1963 = vxpose.xlu0.b32.end [16/16] 0.0, 128
        %v1964 = vpop.trf.xlu0
        %v1965 = vpop.trf.xlu0
        %v1966 = vpop.trf.xlu0
        %v1967 = vpop.trf.xlu0
        %v1968 = vpop.trf.xlu0
        %v1969 = vpop.trf.xlu0
        %v1970 = vpop.trf.xlu0
        %v1971 = vpop.trf.xlu0
        %v1972 = vpop.trf.xlu0
        %v1973 = vpop.trf.xlu0
        %v1974 = vpop.trf.xlu0
        %v1975 = vpop.trf.xlu0
        %v1976 = vpop.trf.xlu0
        %v1977 = vpop.trf.xlu0
        %v1978 = vpop.trf.xlu0
        %v1979 = vpop.trf.xlu0
        %1980 = vxpose.xlu0.b32.start [1/16] %v1893, 128
        %1981 = vxpose.xlu0.b32.cont [2/16] 0.0, 128
        %1982 = vxpose.xlu0.b32.cont [3/16] 0.0, 128
        %1983 = vxpose.xlu0.b32.cont [4/16] 0.0, 128
        %1984 = vxpose.xlu0.b32.cont [5/16] 0.0, 128
        %1985 = vxpose.xlu0.b32.cont [6/16] 0.0, 128
        %1986 = vxpose.xlu0.b32.cont [7/16] 0.0, 128
        %1987 = vxpose.xlu0.b32.cont [8/16] 0.0, 128
        %1988 = vxpose.xlu0.b32.cont [9/16] 0.0, 128
        %1989 = vxpose.xlu0.b32.cont [10/16] 0.0, 128
        %1990 = vxpose.xlu0.b32.cont [11/16] 0.0, 128
        %1991 = vxpose.xlu0.b32.cont [12/16] 0.0, 128
        %1992 = vxpose.xlu0.b32.cont [13/16] 0.0, 128
        %1993 = vxpose.xlu0.b32.cont [14/16] 0.0, 128
        %1994 = vxpose.xlu0.b32.cont [15/16] 0.0, 128
        %1995 = vxpose.xlu0.b32.end [16/16] 0.0, 128
        %v1996 = vpop.trf.xlu0
        %v1997 = vpop.trf.xlu0
        %v1998 = vpop.trf.xlu0
        %v1999 = vpop.trf.xlu0
        %v2000 = vpop.trf.xlu0
        %v2001 = vpop.trf.xlu0
        %v2002 = vpop.trf.xlu0
        %v2003 = vpop.trf.xlu0
        %v2004 = vpop.trf.xlu0
        %v2005 = vpop.trf.xlu0
        %v2006 = vpop.trf.xlu0
        %v2007 = vpop.trf.xlu0
        %v2008 = vpop.trf.xlu0
        %v2009 = vpop.trf.xlu0
        %v2010 = vpop.trf.xlu0
        %v2011 = vpop.trf.xlu0
        %2012 = vxpose.xlu0.b32.start [1/16] %v1894, 128
        %2013 = vxpose.xlu0.b32.cont [2/16] 0.0, 128
        %2014 = vxpose.xlu0.b32.cont [3/16] 0.0, 128
        %2015 = vxpose.xlu0.b32.cont [4/16] 0.0, 128
        %2016 = vxpose.xlu0.b32.cont [5/16] 0.0, 128
        %2017 = vxpose.xlu0.b32.cont [6/16] 0.0, 128
        %2018 = vxpose.xlu0.b32.cont [7/16] 0.0, 128
        %2019 = vxpose.xlu0.b32.cont [8/16] 0.0, 128
        %2020 = vxpose.xlu0.b32.cont [9/16] 0.0, 128
        %2021 = vxpose.xlu0.b32.cont [10/16] 0.0, 128
        %2022 = vxpose.xlu0.b32.cont [11/16] 0.0, 128
        %2023 = vxpose.xlu0.b32.cont [12/16] 0.0, 128
        %2024 = vxpose.xlu0.b32.cont [13/16] 0.0, 128
        %2025 = vxpose.xlu0.b32.cont [14/16] 0.0, 128
        %2026 = vxpose.xlu0.b32.cont [15/16] 0.0, 128
        %2027 = vxpose.xlu0.b32.end [16/16] 0.0, 128
        %v2028 = vpop.trf.xlu0
        %v2029 = vpop.trf.xlu0
        %v2030 = vpop.trf.xlu0
        %v2031 = vpop.trf.xlu0
        %v2032 = vpop.trf.xlu0
        %v2033 = vpop.trf.xlu0
        %v2034 = vpop.trf.xlu0
        %v2035 = vpop.trf.xlu0
        %v2036 = vpop.trf.xlu0
        %v2037 = vpop.trf.xlu0
        %v2038 = vpop.trf.xlu0
        %v2039 = vpop.trf.xlu0
        %v2040 = vpop.trf.xlu0
        %v2041 = vpop.trf.xlu0
        %v2042 = vpop.trf.xlu0
        %v2043 = vpop.trf.xlu0
        %2044 = vxpose.xlu0.b32.start [1/16] %v1895, 128
        %2045 = vxpose.xlu0.b32.cont [2/16] 0.0, 128
        %2046 = vxpose.xlu0.b32.cont [3/16] 0.0, 128
        %2047 = vxpose.xlu0.b32.cont [4/16] 0.0, 128
        %2048 = vxpose.xlu0.b32.cont [5/16] 0.0, 128
        %2049 = vxpose.xlu0.b32.cont [6/16] 0.0, 128
        %2050 = vxpose.xlu0.b32.cont [7/16] 0.0, 128
        %2051 = vxpose.xlu0.b32.cont [8/16] 0.0, 128
        %2052 = vxpose.xlu0.b32.cont [9/16] 0.0, 128
        %2053 = vxpose.xlu0.b32.cont [10/16] 0.0, 128
        %2054 = vxpose.xlu0.b32.cont [11/16] 0.0, 128
        %2055 = vxpose.xlu0.b32.cont [12/16] 0.0, 128
        %2056 = vxpose.xlu0.b32.cont [13/16] 0.0, 128
        %2057 = vxpose.xlu0.b32.cont [14/16] 0.0, 128
        %2058 = vxpose.xlu0.b32.cont [15/16] 0.0, 128
        %2059 = vxpose.xlu0.b32.end [16/16] 0.0, 128
        %v2060 = vpop.trf.xlu0
        %v2061 = vpop.trf.xlu0
        %v2062 = vpop.trf.xlu0
        %v2063 = vpop.trf.xlu0
        %v2064 = vpop.trf.xlu0
        %v2065 = vpop.trf.xlu0
        %v2066 = vpop.trf.xlu0
        %v2067 = vpop.trf.xlu0
        %v2068 = vpop.trf.xlu0
        %v2069 = vpop.trf.xlu0
        %v2070 = vpop.trf.xlu0
        %v2071 = vpop.trf.xlu0
        %v2072 = vpop.trf.xlu0
        %v2073 = vpop.trf.xlu0
        %v2074 = vpop.trf.xlu0
        %v2075 = vpop.trf.xlu0
        %2076 = vxpose.xlu0.b32.start [1/16] %v1896, 128
        %2077 = vxpose.xlu0.b32.cont [2/16] 0.0, 128
        %2078 = vxpose.xlu0.b32.cont [3/16] 0.0, 128
        %2079 = vxpose.xlu0.b32.cont [4/16] 0.0, 128
        %2080 = vxpose.xlu0.b32.cont [5/16] 0.0, 128
        %2081 = vxpose.xlu0.b32.cont [6/16] 0.0, 128
        %2082 = vxpose.xlu0.b32.cont [7/16] 0.0, 128
        %2083 = vxpose.xlu0.b32.cont [8/16] 0.0, 128
        %2084 = vxpose.xlu0.b32.cont [9/16] 0.0, 128
        %2085 = vxpose.xlu0.b32.cont [10/16] 0.0, 128
        %2086 = vxpose.xlu0.b32.cont [11/16] 0.0, 128
        %2087 = vxpose.xlu0.b32.cont [12/16] 0.0, 128
        %2088 = vxpose.xlu0.b32.cont [13/16] 0.0, 128
        %2089 = vxpose.xlu0.b32.cont [14/16] 0.0, 128
        %2090 = vxpose.xlu0.b32.cont [15/16] 0.0, 128
        %2091 = vxpose.xlu0.b32.end [16/16] 0.0, 128
        %v2092 = vpop.trf.xlu0
        %v2093 = vpop.trf.xlu0
        %v2094 = vpop.trf.xlu0
        %v2095 = vpop.trf.xlu0
        %v2096 = vpop.trf.xlu0
        %v2097 = vpop.trf.xlu0
        %v2098 = vpop.trf.xlu0
        %v2099 = vpop.trf.xlu0
        %v2100 = vpop.trf.xlu0
        %v2101 = vpop.trf.xlu0
        %v2102 = vpop.trf.xlu0
        %v2103 = vpop.trf.xlu0
        %v2104 = vpop.trf.xlu0
        %v2105 = vpop.trf.xlu0
        %v2106 = vpop.trf.xlu0
        %v2107 = vpop.trf.xlu0
        %2108 = vxpose.xlu0.b32.start [1/16] %v1897, 128
        %2109 = vxpose.xlu0.b32.cont [2/16] 0.0, 128
        %2110 = vxpose.xlu0.b32.cont [3/16] 0.0, 128
        %2111 = vxpose.xlu0.b32.cont [4/16] 0.0, 128
        %2112 = vxpose.xlu0.b32.cont [5/16] 0.0, 128
        %2113 = vxpose.xlu0.b32.cont [6/16] 0.0, 128
        %2114 = vxpose.xlu0.b32.cont [7/16] 0.0, 128
        %2115 = vxpose.xlu0.b32.cont [8/16] 0.0, 128
        %2116 = vxpose.xlu0.b32.cont [9/16] 0.0, 128
        %2117 = vxpose.xlu0.b32.cont [10/16] 0.0, 128
        %2118 = vxpose.xlu0.b32.cont [11/16] 0.0, 128
        %2119 = vxpose.xlu0.b32.cont [12/16] 0.0, 128
        %2120 = vxpose.xlu0.b32.cont [13/16] 0.0, 128
        %2121 = vxpose.xlu0.b32.cont [14/16] 0.0, 128
        %2122 = vxpose.xlu0.b32.cont [15/16] 0.0, 128
        %2123 = vxpose.xlu0.b32.end [16/16] 0.0, 128
        %v2124 = vpop.trf.xlu0
        %v2125 = vpop.trf.xlu0
        %v2126 = vpop.trf.xlu0
        %v2127 = vpop.trf.xlu0
        %v2128 = vpop.trf.xlu0
        %v2129 = vpop.trf.xlu0
        %v2130 = vpop.trf.xlu0
        %v2131 = vpop.trf.xlu0
        %v2132 = vpop.trf.xlu0
        %v2133 = vpop.trf.xlu0
        %v2134 = vpop.trf.xlu0
        %v2135 = vpop.trf.xlu0
        %v2136 = vpop.trf.xlu0
        %v2137 = vpop.trf.xlu0
        %v2138 = vpop.trf.xlu0
        %v2139 = vpop.trf.xlu0
        %2140 = vxpose.xlu0.b32.start [1/16] %v1898, 128
        %2141 = vxpose.xlu0.b32.cont [2/16] 0.0, 128
        %2142 = vxpose.xlu0.b32.cont [3/16] 0.0, 128
        %2143 = vxpose.xlu0.b32.cont [4/16] 0.0, 128
        %2144 = vxpose.xlu0.b32.cont [5/16] 0.0, 128
        %2145 = vxpose.xlu0.b32.cont [6/16] 0.0, 128
        %2146 = vxpose.xlu0.b32.cont [7/16] 0.0, 128
        %2147 = vxpose.xlu0.b32.cont [8/16] 0.0, 128
        %2148 = vxpose.xlu0.b32.cont [9/16] 0.0, 128
        %2149 = vxpose.xlu0.b32.cont [10/16] 0.0, 128
        %2150 = vxpose.xlu0.b32.cont [11/16] 0.0, 128
        %2151 = vxpose.xlu0.b32.cont [12/16] 0.0, 128
        %2152 = vxpose.xlu0.b32.cont [13/16] 0.0, 128
        %2153 = vxpose.xlu0.b32.cont [14/16] 0.0, 128
        %2154 = vxpose.xlu0.b32.cont [15/16] 0.0, 128
        %2155 = vxpose.xlu0.b32.end [16/16] 0.0, 128
        %v2156 = vpop.trf.xlu0
        %v2157 = vpop.trf.xlu0
        %v2158 = vpop.trf.xlu0
        %v2159 = vpop.trf.xlu0
        %v2160 = vpop.trf.xlu0
        %v2161 = vpop.trf.xlu0
        %v2162 = vpop.trf.xlu0
        %v2163 = vpop.trf.xlu0
        %v2164 = vpop.trf.xlu0
        %v2165 = vpop.trf.xlu0
        %v2166 = vpop.trf.xlu0
        %v2167 = vpop.trf.xlu0
        %v2168 = vpop.trf.xlu0
        %v2169 = vpop.trf.xlu0
        %v2170 = vpop.trf.xlu0
        %v2171 = vpop.trf.xlu0
        %2172 = vxpose.xlu0.b32.start [1/16] %v1899, 128
        %2173 = vxpose.xlu0.b32.cont [2/16] 0.0, 128
        %2174 = vxpose.xlu0.b32.cont [3/16] 0.0, 128
        %2175 = vxpose.xlu0.b32.cont [4/16] 0.0, 128
        %2176 = vxpose.xlu0.b32.cont [5/16] 0.0, 128
        %2177 = vxpose.xlu0.b32.cont [6/16] 0.0, 128
        %2178 = vxpose.xlu0.b32.cont [7/16] 0.0, 128
        %2179 = vxpose.xlu0.b32.cont [8/16] 0.0, 128
        %2180 = vxpose.xlu0.b32.cont [9/16] 0.0, 128
        %2181 = vxpose.xlu0.b32.cont [10/16] 0.0, 128
        %2182 = vxpose.xlu0.b32.cont [11/16] 0.0, 128
        %2183 = vxpose.xlu0.b32.cont [12/16] 0.0, 128
        %2184 = vxpose.xlu0.b32.cont [13/16] 0.0, 128
        %2185 = vxpose.xlu0.b32.cont [14/16] 0.0, 128
        %2186 = vxpose.xlu0.b32.cont [15/16] 0.0, 128
        %2187 = vxpose.xlu0.b32.end [16/16] 0.0, 128
        %v2188 = vpop.trf.xlu0
        %v2189 = vpop.trf.xlu0
        %v2190 = vpop.trf.xlu0
        %v2191 = vpop.trf.xlu0
        %v2192 = vpop.trf.xlu0
        %v2193 = vpop.trf.xlu0
        %v2194 = vpop.trf.xlu0
        %v2195 = vpop.trf.xlu0
        %v2196 = vpop.trf.xlu0
        %v2197 = vpop.trf.xlu0
        %v2198 = vpop.trf.xlu0
        %v2199 = vpop.trf.xlu0
        %v2200 = vpop.trf.xlu0
        %v2201 = vpop.trf.xlu0
        %v2202 = vpop.trf.xlu0
        %v2203 = vpop.trf.xlu0
        %v2204 = vrot.slane %v2028, 4
        %v2205 = vsel %vm614, %v2204, %v1964
        %v2206 = vrot.slane %v1964, 4
        %v2207 = vsel %vm614, %v2028, %v2206
        %v2209 = vunpack.c.l.s4 1983009808
        %v2210 = vunpack.c.0.s8 %v2209
        %v2211 = vperm.slane %v2205, %v2210
        %v2213 = vunpack.c.l.s4 1983009808
        %v2214 = vunpack.c.0.s8 %v2213
        %v2215 = vperm.slane %v2207, %v2214
        %v2216 = vrot.slane %v2060, 4
        %v2217 = vsel %vm614, %v2216, %v1996
        %v2218 = vrot.slane %v1996, 4
        %v2219 = vsel %vm614, %v2060, %v2218
        %v2221 = vunpack.c.l.s4 1983009808
        %v2222 = vunpack.c.0.s8 %v2221
        %v2223 = vperm.slane %v2217, %v2222
        %v2225 = vunpack.c.l.s4 1983009808
        %v2226 = vunpack.c.0.s8 %v2225
        %v2227 = vperm.slane %v2219, %v2226
        %v2228 = vrot.slane %v2156, 4
        %v2229 = vsel %vm614, %v2228, %v2092
        %v2230 = vrot.slane %v2092, 4
        %v2231 = vsel %vm614, %v2156, %v2230
        %v2233 = vunpack.c.l.s4 1983009808
        %v2234 = vunpack.c.0.s8 %v2233
        %v2235 = vperm.slane %v2229, %v2234
        %v2237 = vunpack.c.l.s4 1983009808
        %v2238 = vunpack.c.0.s8 %v2237
        %v2239 = vperm.slane %v2231, %v2238
        %v2240 = vrot.slane %v2188, 4
        %v2241 = vsel %vm614, %v2240, %v2124
        %v2242 = vrot.slane %v2124, 4
        %v2243 = vsel %vm614, %v2188, %v2242
        %v2245 = vunpack.c.l.s4 1983009808
        %v2246 = vunpack.c.0.s8 %v2245
        %v2247 = vperm.slane %v2241, %v2246
        %v2249 = vunpack.c.l.s4 1983009808
        %v2250 = vunpack.c.0.s8 %v2249
        %v2251 = vperm.slane %v2243, %v2250
        %v2252 = vrot.slane %v2223, 4
        %v2253 = vsel %vm614, %v2252, %v2211
        %v2254 = vrot.slane %v2211, 4
        %v2255 = vsel %vm614, %v2223, %v2254
        %v2257 = vunpack.c.l.s4 1934713408
        %v2258 = vunpack.c.0.s8 %v2257
        %v2259 = vperm.slane %v2253, %v2258
        %v2261 = vunpack.c.l.s4 1934713408
        %v2262 = vunpack.c.0.s8 %v2261
        %v2263 = vperm.slane %v2255, %v2262
        %v2264 = vrot.slane %v2227, 4
        %v2265 = vsel %vm614, %v2264, %v2215
        %v2266 = vrot.slane %v2215, 4
        %v2267 = vsel %vm614, %v2227, %v2266
        %v2269 = vunpack.c.l.s4 1934713408
        %v2270 = vunpack.c.0.s8 %v2269
        %v2271 = vperm.slane %v2265, %v2270
        %v2273 = vunpack.c.l.s4 1934713408
        %v2274 = vunpack.c.0.s8 %v2273
        %v2275 = vperm.slane %v2267, %v2274
        %v2276 = vrot.slane %v2247, 4
        %v2277 = vsel %vm614, %v2276, %v2235
        %v2278 = vrot.slane %v2235, 4
        %v2279 = vsel %vm614, %v2247, %v2278
        %v2281 = vunpack.c.l.s4 1934713408
        %v2282 = vunpack.c.0.s8 %v2281
        %v2283 = vperm.slane %v2277, %v2282
        %v2285 = vunpack.c.l.s4 1934713408
        %v2286 = vunpack.c.0.s8 %v2285
        %v2287 = vperm.slane %v2279, %v2286
        %v2288 = vrot.slane %v2251, 4
        %v2289 = vsel %vm614, %v2288, %v2239
        %v2290 = vrot.slane %v2239, 4
        %v2291 = vsel %vm614, %v2251, %v2290
        %v2293 = vunpack.c.l.s4 1934713408
        %v2294 = vunpack.c.0.s8 %v2293
        %v2295 = vperm.slane %v2289, %v2294
        %v2297 = vunpack.c.l.s4 1934713408
        %v2298 = vunpack.c.0.s8 %v2297
        %v2299 = vperm.slane %v2291, %v2298
        %v2300 = vrot.slane %v2283, 4
        %v2301 = vsel %vm614, %v2300, %v2259
        %v2302 = vrot.slane %v2259, 4
        %v2303 = vsel %vm614, %v2283, %v2302
        %v2304 = vrot.slane %v2287, 4
        %v2305 = vsel %vm614, %v2304, %v2263
        %v2306 = vrot.slane %v2263, 4
        %v2307 = vsel %vm614, %v2287, %v2306
        %v2308 = vrot.slane %v2295, 4
        %v2309 = vsel %vm614, %v2308, %v2271
        %v2310 = vrot.slane %v2271, 4
        %v2311 = vsel %vm614, %v2295, %v2310
        %v2312 = vrot.slane %v2299, 4
        %v2313 = vsel %vm614, %v2312, %v2275
        %v2314 = vrot.slane %v2275, 4
        %v2315 = vsel %vm614, %v2299, %v2314
        %v2316 = vrot.slane %v2029, 4
        %v2317 = vsel %vm614, %v2316, %v1965
        %v2318 = vrot.slane %v1965, 4
        %v2319 = vsel %vm614, %v2029, %v2318
        %v2321 = vunpack.c.l.s4 1983009808
        %v2322 = vunpack.c.0.s8 %v2321
        %v2323 = vperm.slane %v2317, %v2322
        %v2325 = vunpack.c.l.s4 1983009808
        %v2326 = vunpack.c.0.s8 %v2325
        %v2327 = vperm.slane %v2319, %v2326
        %v2328 = vrot.slane %v2061, 4
        %v2329 = vsel %vm614, %v2328, %v1997
        %v2330 = vrot.slane %v1997, 4
        %v2331 = vsel %vm614, %v2061, %v2330
        %v2333 = vunpack.c.l.s4 1983009808
        %v2334 = vunpack.c.0.s8 %v2333
        %v2335 = vperm.slane %v2329, %v2334
        %v2337 = vunpack.c.l.s4 1983009808
        %v2338 = vunpack.c.0.s8 %v2337
        %v2339 = vperm.slane %v2331, %v2338
        %v2340 = vrot.slane %v2157, 4
        %v2341 = vsel %vm614, %v2340, %v2093
        %v2342 = vrot.slane %v2093, 4
        %v2343 = vsel %vm614, %v2157, %v2342
        %v2345 = vunpack.c.l.s4 1983009808
        %v2346 = vunpack.c.0.s8 %v2345
        %v2347 = vperm.slane %v2341, %v2346
        %v2349 = vunpack.c.l.s4 1983009808
        %v2350 = vunpack.c.0.s8 %v2349
        %v2351 = vperm.slane %v2343, %v2350
        %v2352 = vrot.slane %v2189, 4
        %v2353 = vsel %vm614, %v2352, %v2125
        %v2354 = vrot.slane %v2125, 4
        %v2355 = vsel %vm614, %v2189, %v2354
        %v2357 = vunpack.c.l.s4 1983009808
        %v2358 = vunpack.c.0.s8 %v2357
        %v2359 = vperm.slane %v2353, %v2358
        %v2361 = vunpack.c.l.s4 1983009808
        %v2362 = vunpack.c.0.s8 %v2361
        %v2363 = vperm.slane %v2355, %v2362
        %v2364 = vrot.slane %v2335, 4
        %v2365 = vsel %vm614, %v2364, %v2323
        %v2366 = vrot.slane %v2323, 4
        %v2367 = vsel %vm614, %v2335, %v2366
        %v2369 = vunpack.c.l.s4 1934713408
        %v2370 = vunpack.c.0.s8 %v2369
        %v2371 = vperm.slane %v2365, %v2370
        %v2373 = vunpack.c.l.s4 1934713408
        %v2374 = vunpack.c.0.s8 %v2373
        %v2375 = vperm.slane %v2367, %v2374
        %v2376 = vrot.slane %v2339, 4
        %v2377 = vsel %vm614, %v2376, %v2327
        %v2378 = vrot.slane %v2327, 4
        %v2379 = vsel %vm614, %v2339, %v2378
        %v2381 = vunpack.c.l.s4 1934713408
        %v2382 = vunpack.c.0.s8 %v2381
        %v2383 = vperm.slane %v2377, %v2382
        %v2385 = vunpack.c.l.s4 1934713408
        %v2386 = vunpack.c.0.s8 %v2385
        %v2387 = vperm.slane %v2379, %v2386
        %v2388 = vrot.slane %v2359, 4
        %v2389 = vsel %vm614, %v2388, %v2347
        %v2390 = vrot.slane %v2347, 4
        %v2391 = vsel %vm614, %v2359, %v2390
        %v2393 = vunpack.c.l.s4 1934713408
        %v2394 = vunpack.c.0.s8 %v2393
        %v2395 = vperm.slane %v2389, %v2394
        %v2397 = vunpack.c.l.s4 1934713408
        %v2398 = vunpack.c.0.s8 %v2397
        %v2399 = vperm.slane %v2391, %v2398
        %v2400 = vrot.slane %v2363, 4
        %v2401 = vsel %vm614, %v2400, %v2351
        %v2402 = vrot.slane %v2351, 4
        %v2403 = vsel %vm614, %v2363, %v2402
        %v2405 = vunpack.c.l.s4 1934713408
        %v2406 = vunpack.c.0.s8 %v2405
        %v2407 = vperm.slane %v2401, %v2406
        %v2409 = vunpack.c.l.s4 1934713408
        %v2410 = vunpack.c.0.s8 %v2409
        %v2411 = vperm.slane %v2403, %v2410
        %v2412 = vrot.slane %v2395, 4
        %v2413 = vsel %vm614, %v2412, %v2371
        %v2414 = vrot.slane %v2371, 4
        %v2415 = vsel %vm614, %v2395, %v2414
        %v2416 = vrot.slane %v2399, 4
        %v2417 = vsel %vm614, %v2416, %v2375
        %v2418 = vrot.slane %v2375, 4
        %v2419 = vsel %vm614, %v2399, %v2418
        %v2420 = vrot.slane %v2407, 4
        %v2421 = vsel %vm614, %v2420, %v2383
        %v2422 = vrot.slane %v2383, 4
        %v2423 = vsel %vm614, %v2407, %v2422
        %v2424 = vrot.slane %v2411, 4
        %v2425 = vsel %vm614, %v2424, %v2387
        %v2426 = vrot.slane %v2387, 4
        %v2427 = vsel %vm614, %v2411, %v2426
        %2428 = vxpose.xlu0.b32.start [1/16] %v2301, 128
        %2429 = vxpose.xlu0.b32.cont [2/16] 0.0, 128
        %2430 = vxpose.xlu0.b32.cont [3/16] 0.0, 128
        %2431 = vxpose.xlu0.b32.cont [4/16] 0.0, 128
        %2432 = vxpose.xlu0.b32.cont [5/16] 0.0, 128
        %2433 = vxpose.xlu0.b32.cont [6/16] 0.0, 128
        %2434 = vxpose.xlu0.b32.cont [7/16] 0.0, 128
        %2435 = vxpose.xlu0.b32.cont [8/16] 0.0, 128
        %2436 = vxpose.xlu0.b32.cont [9/16] 0.0, 128
        %2437 = vxpose.xlu0.b32.cont [10/16] 0.0, 128
        %2438 = vxpose.xlu0.b32.cont [11/16] 0.0, 128
        %2439 = vxpose.xlu0.b32.cont [12/16] 0.0, 128
        %2440 = vxpose.xlu0.b32.cont [13/16] 0.0, 128
        %2441 = vxpose.xlu0.b32.cont [14/16] 0.0, 128
        %2442 = vxpose.xlu0.b32.cont [15/16] 0.0, 128
        %2443 = vxpose.xlu0.b32.end [16/16] 0.0, 128
        %v2444 = vpop.trf.xlu0
        %v2445 = vpop.trf.xlu0
        %v2446 = vpop.trf.xlu0
        %v2447 = vpop.trf.xlu0
        %v2448 = vpop.trf.xlu0
        %v2449 = vpop.trf.xlu0
        %v2450 = vpop.trf.xlu0
        %v2451 = vpop.trf.xlu0
        %v2452 = vpop.trf.xlu0
        %v2453 = vpop.trf.xlu0
        %v2454 = vpop.trf.xlu0
        %v2455 = vpop.trf.xlu0
        %v2456 = vpop.trf.xlu0
        %v2457 = vpop.trf.xlu0
        %v2458 = vpop.trf.xlu0
        %v2459 = vpop.trf.xlu0
        %2460 = vxpose.xlu0.b32.start [1/16] %v2303, 128
        %2461 = vxpose.xlu0.b32.cont [2/16] 0.0, 128
        %2462 = vxpose.xlu0.b32.cont [3/16] 0.0, 128
        %2463 = vxpose.xlu0.b32.cont [4/16] 0.0, 128
        %2464 = vxpose.xlu0.b32.cont [5/16] 0.0, 128
        %2465 = vxpose.xlu0.b32.cont [6/16] 0.0, 128
        %2466 = vxpose.xlu0.b32.cont [7/16] 0.0, 128
        %2467 = vxpose.xlu0.b32.cont [8/16] 0.0, 128
        %2468 = vxpose.xlu0.b32.cont [9/16] 0.0, 128
        %2469 = vxpose.xlu0.b32.cont [10/16] 0.0, 128
        %2470 = vxpose.xlu0.b32.cont [11/16] 0.0, 128
        %2471 = vxpose.xlu0.b32.cont [12/16] 0.0, 128
        %2472 = vxpose.xlu0.b32.cont [13/16] 0.0, 128
        %2473 = vxpose.xlu0.b32.cont [14/16] 0.0, 128
        %2474 = vxpose.xlu0.b32.cont [15/16] 0.0, 128
        %2475 = vxpose.xlu0.b32.end [16/16] 0.0, 128
        %v2476 = vpop.trf.xlu0
        %v2477 = vpop.trf.xlu0
        %v2478 = vpop.trf.xlu0
        %v2479 = vpop.trf.xlu0
        %v2480 = vpop.trf.xlu0
        %v2481 = vpop.trf.xlu0
        %v2482 = vpop.trf.xlu0
        %v2483 = vpop.trf.xlu0
        %v2484 = vpop.trf.xlu0
        %v2485 = vpop.trf.xlu0
        %v2486 = vpop.trf.xlu0
        %v2487 = vpop.trf.xlu0
        %v2488 = vpop.trf.xlu0
        %v2489 = vpop.trf.xlu0
        %v2490 = vpop.trf.xlu0
        %v2491 = vpop.trf.xlu0
        %2492 = vxpose.xlu0.b32.start [1/16] %v2305, 128
        %2493 = vxpose.xlu0.b32.cont [2/16] 0.0, 128
        %2494 = vxpose.xlu0.b32.cont [3/16] 0.0, 128
        %2495 = vxpose.xlu0.b32.cont [4/16] 0.0, 128
        %2496 = vxpose.xlu0.b32.cont [5/16] 0.0, 128
        %2497 = vxpose.xlu0.b32.cont [6/16] 0.0, 128
        %2498 = vxpose.xlu0.b32.cont [7/16] 0.0, 128
        %2499 = vxpose.xlu0.b32.cont [8/16] 0.0, 128
        %2500 = vxpose.xlu0.b32.cont [9/16] 0.0, 128
        %2501 = vxpose.xlu0.b32.cont [10/16] 0.0, 128
        %2502 = vxpose.xlu0.b32.cont [11/16] 0.0, 128
        %2503 = vxpose.xlu0.b32.cont [12/16] 0.0, 128
        %2504 = vxpose.xlu0.b32.cont [13/16] 0.0, 128
        %2505 = vxpose.xlu0.b32.cont [14/16] 0.0, 128
        %2506 = vxpose.xlu0.b32.cont [15/16] 0.0, 128
        %2507 = vxpose.xlu0.b32.end [16/16] 0.0, 128
        %v2508 = vpop.trf.xlu0
        %v2509 = vpop.trf.xlu0
        %v2510 = vpop.trf.xlu0
        %v2511 = vpop.trf.xlu0
        %v2512 = vpop.trf.xlu0
        %v2513 = vpop.trf.xlu0
        %v2514 = vpop.trf.xlu0
        %v2515 = vpop.trf.xlu0
        %v2516 = vpop.trf.xlu0
        %v2517 = vpop.trf.xlu0
        %v2518 = vpop.trf.xlu0
        %v2519 = vpop.trf.xlu0
        %v2520 = vpop.trf.xlu0
        %v2521 = vpop.trf.xlu0
        %v2522 = vpop.trf.xlu0
        %v2523 = vpop.trf.xlu0
        %2524 = vxpose.xlu0.b32.start [1/16] %v2307, 128
        %2525 = vxpose.xlu0.b32.cont [2/16] 0.0, 128
        %2526 = vxpose.xlu0.b32.cont [3/16] 0.0, 128
        %2527 = vxpose.xlu0.b32.cont [4/16] 0.0, 128
        %2528 = vxpose.xlu0.b32.cont [5/16] 0.0, 128
        %2529 = vxpose.xlu0.b32.cont [6/16] 0.0, 128
        %2530 = vxpose.xlu0.b32.cont [7/16] 0.0, 128
        %2531 = vxpose.xlu0.b32.cont [8/16] 0.0, 128
        %2532 = vxpose.xlu0.b32.cont [9/16] 0.0, 128
        %2533 = vxpose.xlu0.b32.cont [10/16] 0.0, 128
        %2534 = vxpose.xlu0.b32.cont [11/16] 0.0, 128
        %2535 = vxpose.xlu0.b32.cont [12/16] 0.0, 128
        %2536 = vxpose.xlu0.b32.cont [13/16] 0.0, 128
        %2537 = vxpose.xlu0.b32.cont [14/16] 0.0, 128
        %2538 = vxpose.xlu0.b32.cont [15/16] 0.0, 128
        %2539 = vxpose.xlu0.b32.end [16/16] 0.0, 128
        %v2540 = vpop.trf.xlu0
        %v2541 = vpop.trf.xlu0
        %v2542 = vpop.trf.xlu0
        %v2543 = vpop.trf.xlu0
        %v2544 = vpop.trf.xlu0
        %v2545 = vpop.trf.xlu0
        %v2546 = vpop.trf.xlu0
        %v2547 = vpop.trf.xlu0
        %v2548 = vpop.trf.xlu0
        %v2549 = vpop.trf.xlu0
        %v2550 = vpop.trf.xlu0
        %v2551 = vpop.trf.xlu0
        %v2552 = vpop.trf.xlu0
        %v2553 = vpop.trf.xlu0
        %v2554 = vpop.trf.xlu0
        %v2555 = vpop.trf.xlu0
        %2556 = vxpose.xlu0.b32.start [1/16] %v2309, 128
        %2557 = vxpose.xlu0.b32.cont [2/16] 0.0, 128
        %2558 = vxpose.xlu0.b32.cont [3/16] 0.0, 128
        %2559 = vxpose.xlu0.b32.cont [4/16] 0.0, 128
        %2560 = vxpose.xlu0.b32.cont [5/16] 0.0, 128
        %2561 = vxpose.xlu0.b32.cont [6/16] 0.0, 128
        %2562 = vxpose.xlu0.b32.cont [7/16] 0.0, 128
        %2563 = vxpose.xlu0.b32.cont [8/16] 0.0, 128
        %2564 = vxpose.xlu0.b32.cont [9/16] 0.0, 128
        %2565 = vxpose.xlu0.b32.cont [10/16] 0.0, 128
        %2566 = vxpose.xlu0.b32.cont [11/16] 0.0, 128
        %2567 = vxpose.xlu0.b32.cont [12/16] 0.0, 128
        %2568 = vxpose.xlu0.b32.cont [13/16] 0.0, 128
        %2569 = vxpose.xlu0.b32.cont [14/16] 0.0, 128
        %2570 = vxpose.xlu0.b32.cont [15/16] 0.0, 128
        %2571 = vxpose.xlu0.b32.end [16/16] 0.0, 128
        %v2572 = vpop.trf.xlu0
        %v2573 = vpop.trf.xlu0
        %v2574 = vpop.trf.xlu0
        %v2575 = vpop.trf.xlu0
        %v2576 = vpop.trf.xlu0
        %v2577 = vpop.trf.xlu0
        %v2578 = vpop.trf.xlu0
        %v2579 = vpop.trf.xlu0
        %v2580 = vpop.trf.xlu0
        %v2581 = vpop.trf.xlu0
        %v2582 = vpop.trf.xlu0
        %v2583 = vpop.trf.xlu0
        %v2584 = vpop.trf.xlu0
        %v2585 = vpop.trf.xlu0
        %v2586 = vpop.trf.xlu0
        %v2587 = vpop.trf.xlu0
        %2588 = vxpose.xlu0.b32.start [1/16] %v2311, 128
        %2589 = vxpose.xlu0.b32.cont [2/16] 0.0, 128
        %2590 = vxpose.xlu0.b32.cont [3/16] 0.0, 128
        %2591 = vxpose.xlu0.b32.cont [4/16] 0.0, 128
        %2592 = vxpose.xlu0.b32.cont [5/16] 0.0, 128
        %2593 = vxpose.xlu0.b32.cont [6/16] 0.0, 128
        %2594 = vxpose.xlu0.b32.cont [7/16] 0.0, 128
        %2595 = vxpose.xlu0.b32.cont [8/16] 0.0, 128
        %2596 = vxpose.xlu0.b32.cont [9/16] 0.0, 128
        %2597 = vxpose.xlu0.b32.cont [10/16] 0.0, 128
        %2598 = vxpose.xlu0.b32.cont [11/16] 0.0, 128
        %2599 = vxpose.xlu0.b32.cont [12/16] 0.0, 128
        %2600 = vxpose.xlu0.b32.cont [13/16] 0.0, 128
        %2601 = vxpose.xlu0.b32.cont [14/16] 0.0, 128
        %2602 = vxpose.xlu0.b32.cont [15/16] 0.0, 128
        %2603 = vxpose.xlu0.b32.end [16/16] 0.0, 128
        %v2604 = vpop.trf.xlu0
        %v2605 = vpop.trf.xlu0
        %v2606 = vpop.trf.xlu0
        %v2607 = vpop.trf.xlu0
        %v2608 = vpop.trf.xlu0
        %v2609 = vpop.trf.xlu0
        %v2610 = vpop.trf.xlu0
        %v2611 = vpop.trf.xlu0
        %v2612 = vpop.trf.xlu0
        %v2613 = vpop.trf.xlu0
        %v2614 = vpop.trf.xlu0
        %v2615 = vpop.trf.xlu0
        %v2616 = vpop.trf.xlu0
        %v2617 = vpop.trf.xlu0
        %v2618 = vpop.trf.xlu0
        %v2619 = vpop.trf.xlu0
        %2620 = vxpose.xlu0.b32.start [1/16] %v2313, 128
        %2621 = vxpose.xlu0.b32.cont [2/16] 0.0, 128
        %2622 = vxpose.xlu0.b32.cont [3/16] 0.0, 128
        %2623 = vxpose.xlu0.b32.cont [4/16] 0.0, 128
        %2624 = vxpose.xlu0.b32.cont [5/16] 0.0, 128
        %2625 = vxpose.xlu0.b32.cont [6/16] 0.0, 128
        %2626 = vxpose.xlu0.b32.cont [7/16] 0.0, 128
        %2627 = vxpose.xlu0.b32.cont [8/16] 0.0, 128
        %2628 = vxpose.xlu0.b32.cont [9/16] 0.0, 128
        %2629 = vxpose.xlu0.b32.cont [10/16] 0.0, 128
        %2630 = vxpose.xlu0.b32.cont [11/16] 0.0, 128
        %2631 = vxpose.xlu0.b32.cont [12/16] 0.0, 128
        %2632 = vxpose.xlu0.b32.cont [13/16] 0.0, 128
        %2633 = vxpose.xlu0.b32.cont [14/16] 0.0, 128
        %2634 = vxpose.xlu0.b32.cont [15/16] 0.0, 128
        %2635 = vxpose.xlu0.b32.end [16/16] 0.0, 128
        %v2636 = vpop.trf.xlu0
        %v2637 = vpop.trf.xlu0
        %v2638 = vpop.trf.xlu0
        %v2639 = vpop.trf.xlu0
        %v2640 = vpop.trf.xlu0
        %v2641 = vpop.trf.xlu0
        %v2642 = vpop.trf.xlu0
        %v2643 = vpop.trf.xlu0
        %v2644 = vpop.trf.xlu0
        %v2645 = vpop.trf.xlu0
        %v2646 = vpop.trf.xlu0
        %v2647 = vpop.trf.xlu0
        %v2648 = vpop.trf.xlu0
        %v2649 = vpop.trf.xlu0
        %v2650 = vpop.trf.xlu0
        %v2651 = vpop.trf.xlu0
        %2652 = vxpose.xlu0.b32.start [1/16] %v2315, 128
        %2653 = vxpose.xlu0.b32.cont [2/16] 0.0, 128
        %2654 = vxpose.xlu0.b32.cont [3/16] 0.0, 128
        %2655 = vxpose.xlu0.b32.cont [4/16] 0.0, 128
        %2656 = vxpose.xlu0.b32.cont [5/16] 0.0, 128
        %2657 = vxpose.xlu0.b32.cont [6/16] 0.0, 128
        %2658 = vxpose.xlu0.b32.cont [7/16] 0.0, 128
        %2659 = vxpose.xlu0.b32.cont [8/16] 0.0, 128
        %2660 = vxpose.xlu0.b32.cont [9/16] 0.0, 128
        %2661 = vxpose.xlu0.b32.cont [10/16] 0.0, 128
        %2662 = vxpose.xlu0.b32.cont [11/16] 0.0, 128
        %2663 = vxpose.xlu0.b32.cont [12/16] 0.0, 128
        %2664 = vxpose.xlu0.b32.cont [13/16] 0.0, 128
        %2665 = vxpose.xlu0.b32.cont [14/16] 0.0, 128
        %2666 = vxpose.xlu0.b32.cont [15/16] 0.0, 128
        %2667 = vxpose.xlu0.b32.end [16/16] 0.0, 128
        %v2668 = vpop.trf.xlu0
        %v2669 = vpop.trf.xlu0
        %v2670 = vpop.trf.xlu0
        %v2671 = vpop.trf.xlu0
        %v2672 = vpop.trf.xlu0
        %v2673 = vpop.trf.xlu0
        %v2674 = vpop.trf.xlu0
        %v2675 = vpop.trf.xlu0
        %v2676 = vpop.trf.xlu0
        %v2677 = vpop.trf.xlu0
        %v2678 = vpop.trf.xlu0
        %v2679 = vpop.trf.xlu0
        %v2680 = vpop.trf.xlu0
        %v2681 = vpop.trf.xlu0
        %v2682 = vpop.trf.xlu0
        %v2683 = vpop.trf.xlu0
        %2684 = vxpose.xlu0.b32.start [1/16] %v2413, 128
        %2685 = vxpose.xlu0.b32.cont [2/16] 0.0, 128
        %2686 = vxpose.xlu0.b32.cont [3/16] 0.0, 128
        %2687 = vxpose.xlu0.b32.cont [4/16] 0.0, 128
        %2688 = vxpose.xlu0.b32.cont [5/16] 0.0, 128
        %2689 = vxpose.xlu0.b32.cont [6/16] 0.0, 128
        %2690 = vxpose.xlu0.b32.cont [7/16] 0.0, 128
        %2691 = vxpose.xlu0.b32.cont [8/16] 0.0, 128
        %2692 = vxpose.xlu0.b32.cont [9/16] 0.0, 128
        %2693 = vxpose.xlu0.b32.cont [10/16] 0.0, 128
        %2694 = vxpose.xlu0.b32.cont [11/16] 0.0, 128
        %2695 = vxpose.xlu0.b32.cont [12/16] 0.0, 128
        %2696 = vxpose.xlu0.b32.cont [13/16] 0.0, 128
        %2697 = vxpose.xlu0.b32.cont [14/16] 0.0, 128
        %2698 = vxpose.xlu0.b32.cont [15/16] 0.0, 128
        %2699 = vxpose.xlu0.b32.end [16/16] 0.0, 128
        %v2700 = vpop.trf.xlu0
        %v2701 = vpop.trf.xlu0
        %v2702 = vpop.trf.xlu0
        %v2703 = vpop.trf.xlu0
        %v2704 = vpop.trf.xlu0
        %v2705 = vpop.trf.xlu0
        %v2706 = vpop.trf.xlu0
        %v2707 = vpop.trf.xlu0
        %v2708 = vpop.trf.xlu0
        %v2709 = vpop.trf.xlu0
        %v2710 = vpop.trf.xlu0
        %v2711 = vpop.trf.xlu0
        %v2712 = vpop.trf.xlu0
        %v2713 = vpop.trf.xlu0
        %v2714 = vpop.trf.xlu0
        %v2715 = vpop.trf.xlu0
        %2716 = vxpose.xlu0.b32.start [1/16] %v2415, 128
        %2717 = vxpose.xlu0.b32.cont [2/16] 0.0, 128
        %2718 = vxpose.xlu0.b32.cont [3/16] 0.0, 128
        %2719 = vxpose.xlu0.b32.cont [4/16] 0.0, 128
        %2720 = vxpose.xlu0.b32.cont [5/16] 0.0, 128
        %2721 = vxpose.xlu0.b32.cont [6/16] 0.0, 128
        %2722 = vxpose.xlu0.b32.cont [7/16] 0.0, 128
        %2723 = vxpose.xlu0.b32.cont [8/16] 0.0, 128
        %2724 = vxpose.xlu0.b32.cont [9/16] 0.0, 128
        %2725 = vxpose.xlu0.b32.cont [10/16] 0.0, 128
        %2726 = vxpose.xlu0.b32.cont [11/16] 0.0, 128
        %2727 = vxpose.xlu0.b32.cont [12/16] 0.0, 128
        %2728 = vxpose.xlu0.b32.cont [13/16] 0.0, 128
        %2729 = vxpose.xlu0.b32.cont [14/16] 0.0, 128
        %2730 = vxpose.xlu0.b32.cont [15/16] 0.0, 128
        %2731 = vxpose.xlu0.b32.end [16/16] 0.0, 128
        %v2732 = vpop.trf.xlu0
        %v2733 = vpop.trf.xlu0
        %v2734 = vpop.trf.xlu0
        %v2735 = vpop.trf.xlu0
        %v2736 = vpop.trf.xlu0
        %v2737 = vpop.trf.xlu0
        %v2738 = vpop.trf.xlu0
        %v2739 = vpop.trf.xlu0
        %v2740 = vpop.trf.xlu0
        %v2741 = vpop.trf.xlu0
        %v2742 = vpop.trf.xlu0
        %v2743 = vpop.trf.xlu0
        %v2744 = vpop.trf.xlu0
        %v2745 = vpop.trf.xlu0
        %v2746 = vpop.trf.xlu0
        %v2747 = vpop.trf.xlu0
        %2748 = vxpose.xlu0.b32.start [1/16] %v2417, 128
        %2749 = vxpose.xlu0.b32.cont [2/16] 0.0, 128
        %2750 = vxpose.xlu0.b32.cont [3/16] 0.0, 128
        %2751 = vxpose.xlu0.b32.cont [4/16] 0.0, 128
        %2752 = vxpose.xlu0.b32.cont [5/16] 0.0, 128
        %2753 = vxpose.xlu0.b32.cont [6/16] 0.0, 128
        %2754 = vxpose.xlu0.b32.cont [7/16] 0.0, 128
        %2755 = vxpose.xlu0.b32.cont [8/16] 0.0, 128
        %2756 = vxpose.xlu0.b32.cont [9/16] 0.0, 128
        %2757 = vxpose.xlu0.b32.cont [10/16] 0.0, 128
        %2758 = vxpose.xlu0.b32.cont [11/16] 0.0, 128
        %2759 = vxpose.xlu0.b32.cont [12/16] 0.0, 128
        %2760 = vxpose.xlu0.b32.cont [13/16] 0.0, 128
        %2761 = vxpose.xlu0.b32.cont [14/16] 0.0, 128
        %2762 = vxpose.xlu0.b32.cont [15/16] 0.0, 128
        %2763 = vxpose.xlu0.b32.end [16/16] 0.0, 128
        %v2764 = vpop.trf.xlu0
        %v2765 = vpop.trf.xlu0
        %v2766 = vpop.trf.xlu0
        %v2767 = vpop.trf.xlu0
        %v2768 = vpop.trf.xlu0
        %v2769 = vpop.trf.xlu0
        %v2770 = vpop.trf.xlu0
        %v2771 = vpop.trf.xlu0
        %v2772 = vpop.trf.xlu0
        %v2773 = vpop.trf.xlu0
        %v2774 = vpop.trf.xlu0
        %v2775 = vpop.trf.xlu0
        %v2776 = vpop.trf.xlu0
        %v2777 = vpop.trf.xlu0
        %v2778 = vpop.trf.xlu0
        %v2779 = vpop.trf.xlu0
        %2780 = vxpose.xlu0.b32.start [1/16] %v2419, 128
        %2781 = vxpose.xlu0.b32.cont [2/16] 0.0, 128
        %2782 = vxpose.xlu0.b32.cont [3/16] 0.0, 128
        %2783 = vxpose.xlu0.b32.cont [4/16] 0.0, 128
        %2784 = vxpose.xlu0.b32.cont [5/16] 0.0, 128
        %2785 = vxpose.xlu0.b32.cont [6/16] 0.0, 128
        %2786 = vxpose.xlu0.b32.cont [7/16] 0.0, 128
        %2787 = vxpose.xlu0.b32.cont [8/16] 0.0, 128
        %2788 = vxpose.xlu0.b32.cont [9/16] 0.0, 128
        %2789 = vxpose.xlu0.b32.cont [10/16] 0.0, 128
        %2790 = vxpose.xlu0.b32.cont [11/16] 0.0, 128
        %2791 = vxpose.xlu0.b32.cont [12/16] 0.0, 128
        %2792 = vxpose.xlu0.b32.cont [13/16] 0.0, 128
        %2793 = vxpose.xlu0.b32.cont [14/16] 0.0, 128
        %2794 = vxpose.xlu0.b32.cont [15/16] 0.0, 128
        %2795 = vxpose.xlu0.b32.end [16/16] 0.0, 128
        %v2796 = vpop.trf.xlu0
        %v2797 = vpop.trf.xlu0
        %v2798 = vpop.trf.xlu0
        %v2799 = vpop.trf.xlu0
        %v2800 = vpop.trf.xlu0
        %v2801 = vpop.trf.xlu0
        %v2802 = vpop.trf.xlu0
        %v2803 = vpop.trf.xlu0
        %v2804 = vpop.trf.xlu0
        %v2805 = vpop.trf.xlu0
        %v2806 = vpop.trf.xlu0
        %v2807 = vpop.trf.xlu0
        %v2808 = vpop.trf.xlu0
        %v2809 = vpop.trf.xlu0
        %v2810 = vpop.trf.xlu0
        %v2811 = vpop.trf.xlu0
        %2812 = vxpose.xlu0.b32.start [1/16] %v2421, 128
        %2813 = vxpose.xlu0.b32.cont [2/16] 0.0, 128
        %2814 = vxpose.xlu0.b32.cont [3/16] 0.0, 128
        %2815 = vxpose.xlu0.b32.cont [4/16] 0.0, 128
        %2816 = vxpose.xlu0.b32.cont [5/16] 0.0, 128
        %2817 = vxpose.xlu0.b32.cont [6/16] 0.0, 128
        %2818 = vxpose.xlu0.b32.cont [7/16] 0.0, 128
        %2819 = vxpose.xlu0.b32.cont [8/16] 0.0, 128
        %2820 = vxpose.xlu0.b32.cont [9/16] 0.0, 128
        %2821 = vxpose.xlu0.b32.cont [10/16] 0.0, 128
        %2822 = vxpose.xlu0.b32.cont [11/16] 0.0, 128
        %2823 = vxpose.xlu0.b32.cont [12/16] 0.0, 128
        %2824 = vxpose.xlu0.b32.cont [13/16] 0.0, 128
        %2825 = vxpose.xlu0.b32.cont [14/16] 0.0, 128
        %2826 = vxpose.xlu0.b32.cont [15/16] 0.0, 128
        %2827 = vxpose.xlu0.b32.end [16/16] 0.0, 128
        %v2828 = vpop.trf.xlu0
        %v2829 = vpop.trf.xlu0
        %v2830 = vpop.trf.xlu0
        %v2831 = vpop.trf.xlu0
        %v2832 = vpop.trf.xlu0
        %v2833 = vpop.trf.xlu0
        %v2834 = vpop.trf.xlu0
        %v2835 = vpop.trf.xlu0
        %v2836 = vpop.trf.xlu0
        %v2837 = vpop.trf.xlu0
        %v2838 = vpop.trf.xlu0
        %v2839 = vpop.trf.xlu0
        %v2840 = vpop.trf.xlu0
        %v2841 = vpop.trf.xlu0
        %v2842 = vpop.trf.xlu0
        %v2843 = vpop.trf.xlu0
        %2844 = vxpose.xlu0.b32.start [1/16] %v2423, 128
        %2845 = vxpose.xlu0.b32.cont [2/16] 0.0, 128
        %2846 = vxpose.xlu0.b32.cont [3/16] 0.0, 128
        %2847 = vxpose.xlu0.b32.cont [4/16] 0.0, 128
        %2848 = vxpose.xlu0.b32.cont [5/16] 0.0, 128
        %2849 = vxpose.xlu0.b32.cont [6/16] 0.0, 128
        %2850 = vxpose.xlu0.b32.cont [7/16] 0.0, 128
        %2851 = vxpose.xlu0.b32.cont [8/16] 0.0, 128
        %2852 = vxpose.xlu0.b32.cont [9/16] 0.0, 128
        %2853 = vxpose.xlu0.b32.cont [10/16] 0.0, 128
        %2854 = vxpose.xlu0.b32.cont [11/16] 0.0, 128
        %2855 = vxpose.xlu0.b32.cont [12/16] 0.0, 128
        %2856 = vxpose.xlu0.b32.cont [13/16] 0.0, 128
        %2857 = vxpose.xlu0.b32.cont [14/16] 0.0, 128
        %2858 = vxpose.xlu0.b32.cont [15/16] 0.0, 128
        %2859 = vxpose.xlu0.b32.end [16/16] 0.0, 128
        %v2860 = vpop.trf.xlu0
        %v2861 = vpop.trf.xlu0
        %v2862 = vpop.trf.xlu0
        %v2863 = vpop.trf.xlu0
        %v2864 = vpop.trf.xlu0
        %v2865 = vpop.trf.xlu0
        %v2866 = vpop.trf.xlu0
        %v2867 = vpop.trf.xlu0
        %v2868 = vpop.trf.xlu0
        %v2869 = vpop.trf.xlu0
        %v2870 = vpop.trf.xlu0
        %v2871 = vpop.trf.xlu0
        %v2872 = vpop.trf.xlu0
        %v2873 = vpop.trf.xlu0
        %v2874 = vpop.trf.xlu0
        %v2875 = vpop.trf.xlu0
        %2876 = vxpose.xlu0.b32.start [1/16] %v2425, 128
        %2877 = vxpose.xlu0.b32.cont [2/16] 0.0, 128
        %2878 = vxpose.xlu0.b32.cont [3/16] 0.0, 128
        %2879 = vxpose.xlu0.b32.cont [4/16] 0.0, 128
        %2880 = vxpose.xlu0.b32.cont [5/16] 0.0, 128
        %2881 = vxpose.xlu0.b32.cont [6/16] 0.0, 128
        %2882 = vxpose.xlu0.b32.cont [7/16] 0.0, 128
        %2883 = vxpose.xlu0.b32.cont [8/16] 0.0, 128
        %2884 = vxpose.xlu0.b32.cont [9/16] 0.0, 128
        %2885 = vxpose.xlu0.b32.cont [10/16] 0.0, 128
        %2886 = vxpose.xlu0.b32.cont [11/16] 0.0, 128
        %2887 = vxpose.xlu0.b32.cont [12/16] 0.0, 128
        %2888 = vxpose.xlu0.b32.cont [13/16] 0.0, 128
        %2889 = vxpose.xlu0.b32.cont [14/16] 0.0, 128
        %2890 = vxpose.xlu0.b32.cont [15/16] 0.0, 128
        %2891 = vxpose.xlu0.b32.end [16/16] 0.0, 128
        %v2892 = vpop.trf.xlu0
        %v2893 = vpop.trf.xlu0
        %v2894 = vpop.trf.xlu0
        %v2895 = vpop.trf.xlu0
        %v2896 = vpop.trf.xlu0
        %v2897 = vpop.trf.xlu0
        %v2898 = vpop.trf.xlu0
        %v2899 = vpop.trf.xlu0
        %v2900 = vpop.trf.xlu0
        %v2901 = vpop.trf.xlu0
        %v2902 = vpop.trf.xlu0
        %v2903 = vpop.trf.xlu0
        %v2904 = vpop.trf.xlu0
        %v2905 = vpop.trf.xlu0
        %v2906 = vpop.trf.xlu0
        %v2907 = vpop.trf.xlu0
        %2908 = vxpose.xlu0.b32.start [1/16] %v2427, 128
        %2909 = vxpose.xlu0.b32.cont [2/16] 0.0, 128
        %2910 = vxpose.xlu0.b32.cont [3/16] 0.0, 128
        %2911 = vxpose.xlu0.b32.cont [4/16] 0.0, 128
        %2912 = vxpose.xlu0.b32.cont [5/16] 0.0, 128
        %2913 = vxpose.xlu0.b32.cont [6/16] 0.0, 128
        %2914 = vxpose.xlu0.b32.cont [7/16] 0.0, 128
        %2915 = vxpose.xlu0.b32.cont [8/16] 0.0, 128
        %2916 = vxpose.xlu0.b32.cont [9/16] 0.0, 128
        %2917 = vxpose.xlu0.b32.cont [10/16] 0.0, 128
        %2918 = vxpose.xlu0.b32.cont [11/16] 0.0, 128
        %2919 = vxpose.xlu0.b32.cont [12/16] 0.0, 128
        %2920 = vxpose.xlu0.b32.cont [13/16] 0.0, 128
        %2921 = vxpose.xlu0.b32.cont [14/16] 0.0, 128
        %2922 = vxpose.xlu0.b32.cont [15/16] 0.0, 128
        %2923 = vxpose.xlu0.b32.end [16/16] 0.0, 128
        %v2924 = vpop.trf.xlu0
        %v2925 = vpop.trf.xlu0
        %v2926 = vpop.trf.xlu0
        %v2927 = vpop.trf.xlu0
        %v2928 = vpop.trf.xlu0
        %v2929 = vpop.trf.xlu0
        %v2930 = vpop.trf.xlu0
        %v2931 = vpop.trf.xlu0
        %v2932 = vpop.trf.xlu0
        %v2933 = vpop.trf.xlu0
        %v2934 = vpop.trf.xlu0
        %v2935 = vpop.trf.xlu0
        %v2936 = vpop.trf.xlu0
        %v2937 = vpop.trf.xlu0
        %v2938 = vpop.trf.xlu0
        %v2939 = vpop.trf.xlu0
        %v2940 = vrot.slane %v2508, 4
        %v2941 = vsel %vm614, %v2940, %v2444
        %v2943 = vunpack.c.l.s4 1983009808
        %v2944 = vunpack.c.0.s8 %v2943
        %v2945 = vperm.slane %v2941, %v2944
        %v2946 = vrot.slane %v2540, 4
        %v2947 = vsel %vm614, %v2946, %v2476
        %v2949 = vunpack.c.l.s4 1983009808
        %v2950 = vunpack.c.0.s8 %v2949
        %v2951 = vperm.slane %v2947, %v2950
        %v2952 = vrot.slane %v2636, 4
        %v2953 = vsel %vm614, %v2952, %v2572
        %v2955 = vunpack.c.l.s4 1983009808
        %v2956 = vunpack.c.0.s8 %v2955
        %v2957 = vperm.slane %v2953, %v2956
        %v2958 = vrot.slane %v2668, 4
        %v2959 = vsel %vm614, %v2958, %v2604
        %v2961 = vunpack.c.l.s4 1983009808
        %v2962 = vunpack.c.0.s8 %v2961
        %v2963 = vperm.slane %v2959, %v2962
        %v2964 = vrot.slane %v2951, 4
        %v2965 = vsel %vm614, %v2964, %v2945
        %v2967 = vunpack.c.l.s4 1934713408
        %v2968 = vunpack.c.0.s8 %v2967
        %v2969 = vperm.slane %v2965, %v2968
        %v2970 = vrot.slane %v2963, 4
        %v2971 = vsel %vm614, %v2970, %v2957
        %v2973 = vunpack.c.l.s4 1934713408
        %v2974 = vunpack.c.0.s8 %v2973
        %v2975 = vperm.slane %v2971, %v2974
        %v2976 = vrot.slane %v2975, 4
        %v2977 = vsel %vm614, %v2976, %v2969
        %v2978 = vrot.slane %v2969, 4
        %v2979 = vsel %vm614, %v2975, %v2978
        %v2980 = vrot.slane %v2764, 4
        %v2981 = vsel %vm614, %v2980, %v2700
        %v2983 = vunpack.c.l.s4 1983009808
        %v2984 = vunpack.c.0.s8 %v2983
        %v2985 = vperm.slane %v2981, %v2984
        %v2986 = vrot.slane %v2796, 4
        %v2987 = vsel %vm614, %v2986, %v2732
        %v2989 = vunpack.c.l.s4 1983009808
        %v2990 = vunpack.c.0.s8 %v2989
        %v2991 = vperm.slane %v2987, %v2990
        %v2992 = vrot.slane %v2892, 4
        %v2993 = vsel %vm614, %v2992, %v2828
        %v2995 = vunpack.c.l.s4 1983009808
        %v2996 = vunpack.c.0.s8 %v2995
        %v2997 = vperm.slane %v2993, %v2996
        %v2998 = vrot.slane %v2924, 4
        %v2999 = vsel %vm614, %v2998, %v2860
        %v3001 = vunpack.c.l.s4 1983009808
        %v3002 = vunpack.c.0.s8 %v3001
        %v3003 = vperm.slane %v2999, %v3002
        %v3004 = vrot.slane %v2991, 4
        %v3005 = vsel %vm614, %v3004, %v2985
        %v3007 = vunpack.c.l.s4 1934713408
        %v3008 = vunpack.c.0.s8 %v3007
        %v3009 = vperm.slane %v3005, %v3008
        %v3010 = vrot.slane %v3003, 4
        %v3011 = vsel %vm614, %v3010, %v2997
        %v3013 = vunpack.c.l.s4 1934713408
        %v3014 = vunpack.c.0.s8 %v3013
        %v3015 = vperm.slane %v3011, %v3014
        %v3016 = vrot.slane %v3015, 4
        %v3017 = vsel %vm614, %v3016, %v3009
        %v3018 = vrot.slane %v3009, 4
        %v3019 = vsel %vm614, %v3015, %v3018
        %v3021 = vsel %vm1726, %v1945, 0
        %3023 = vmatpush.msra.mxu0 0.0
        %3024 = vmatpush.msra.mxu0 0.0
        %3025 = vmatpush.msra.mxu0 0.0
        %3026 = vmatpush.msra.mxu0 0.0
        %3027 = vmatpush.msra.mxu0 0.0
        %3028 = vmatpush.msra.mxu0 0.0
        %3029 = vmatpush.msra.mxu0 0.0
        %3030 = vmatpush.msra.mxu0 0.0
        %3031 = vmatpush.msra.mxu0 0.0
        %3032 = vmatpush.msra.mxu0 0.0
        %3033 = vmatpush.msra.mxu0 0.0
        %3034 = vmatpush.msra.mxu0 0.0
        %3035 = vmatpush.msra.mxu0 0.0
        %3036 = vmatpush.msra.mxu0 0.0
        %3037 = vmatpush.msra.mxu0 %v3017
        %3038 = vmatpush.msra.mxu0 %v2977
        %3039 = vmatmul.f32.gmra.mxu0 %v3021
        %v3040 = vpop.f32.mrf.mxu0
        %v3041 = vadd.f32 0.0, %v3040
        %3042 = vdwg.mxu0
        %v3044 = vsel %vm1726, %v1947, 0
        %3046 = vmatpush.msra.mxu0 0.0
        %3047 = vmatpush.msra.mxu0 0.0
        %3048 = vmatpush.msra.mxu0 0.0
        %3049 = vmatpush.msra.mxu0 0.0
        %3050 = vmatpush.msra.mxu0 0.0
        %3051 = vmatpush.msra.mxu0 0.0
        %3052 = vmatpush.msra.mxu0 0.0
        %3053 = vmatpush.msra.mxu0 0.0
        %3054 = vmatpush.msra.mxu0 0.0
        %3055 = vmatpush.msra.mxu0 0.0
        %3056 = vmatpush.msra.mxu0 0.0
        %3057 = vmatpush.msra.mxu0 0.0
        %3058 = vmatpush.msra.mxu0 0.0
        %3059 = vmatpush.msra.mxu0 0.0
        %3060 = vmatpush.msra.mxu0 %v3019
        %3061 = vmatpush.msra.mxu0 %v2979
        %3062 = vmatmul.f32.gmra.mxu0 %v3044
        %v3063 = vpop.f32.mrf.mxu0
        %v3064 = vadd.f32 0.0, %v3063
        %3065 = vdwg.mxu0
        %v3066 = vmul.f32 %v3041, 0.35355338
        %v3067 = vmul.f32 %v3064, 0.35355338
        %v3068 = vsel %vm1775, %v3066, -inf
        %3069 = vmax.xlane.f32.xlu0 %v3068
        %v3070 = vpop.xlane.xlu0 %3069
        %v3071 = vsel %vm1775, %v3067, -inf
        %3072 = vmax.xlane.f32.xlu0 %v3071
        %v3073 = vpop.xlane.xlu0 %3072
        %v3074 = vsub.f32 %v3066, %v3070
        %v3075 = vsub.f32 %v3067, %v3073
        %v3076 = vmul.f32 %v3074, 1.442695
        %v3077 = vpow.pop %v3076
        %v3078 = vmul.f32 %v3075, 1.442695
        %v3079 = vpow.pop %v3078
        %v3080 = vsel %vm1775, %v3077, 0.0
        %3081 = vadd.xlane.f32.xlu0 %v3080
        %v3082 = vpop.xlane.xlu0 %3081
        %v3083 = vsel %vm1775, %v3079, 0.0
        %3084 = vadd.xlane.f32.xlu0 %v3083
        %v3085 = vpop.xlane.xlu0 %3084
        %v3086 = vrcp.pop %v3082
        %v3087 = vrcp.pop %v3085
        %v3088 = vmul.f32 %v3077, %v3086
        %v3089 = vmul.f32 %v3079, %v3087
        %v3090 = vrot.slane %v1902, 4
        %v3091 = vsel %vm614, %v3090, %v1900
        %v3093 = vunpack.c.l.s4 1983009808
        %v3094 = vunpack.c.0.s8 %v3093
        %v3095 = vperm.slane %v3091, %v3094
        %v3096 = vrot.slane %v1903, 4
        %v3097 = vsel %vm614, %v3096, %v1901
        %v3099 = vunpack.c.l.s4 1983009808
        %v3100 = vunpack.c.0.s8 %v3099
        %v3101 = vperm.slane %v3097, %v3100
        %v3102 = vrot.slane %v1906, 4
        %v3103 = vsel %vm614, %v3102, %v1904
        %v3105 = vunpack.c.l.s4 1983009808
        %v3106 = vunpack.c.0.s8 %v3105
        %v3107 = vperm.slane %v3103, %v3106
        %v3108 = vrot.slane %v1907, 4
        %v3109 = vsel %vm614, %v3108, %v1905
        %v3111 = vunpack.c.l.s4 1983009808
        %v3112 = vunpack.c.0.s8 %v3111
        %v3113 = vperm.slane %v3109, %v3112
        %v3114 = vrot.slane %v3101, 4
        %v3115 = vsel %vm614, %v3114, %v3095
        %v3117 = vunpack.c.l.s4 1934713408
        %v3118 = vunpack.c.0.s8 %v3117
        %v3119 = vperm.slane %v3115, %v3118
        %v3120 = vrot.slane %v3113, 4
        %v3121 = vsel %vm614, %v3120, %v3107
        %v3123 = vunpack.c.l.s4 1934713408
        %v3124 = vunpack.c.0.s8 %v3123
        %v3125 = vperm.slane %v3121, %v3124
        %v3126 = vrot.slane %v3125, 4
        %v3127 = vsel %vm614, %v3126, %v3119
        %v3128 = vrot.slane %v3119, 4
        %v3129 = vsel %vm614, %v3125, %v3128
        %v3131 = vsel %vm1775, %v3088, 0
        %3133 = vmatpush.msra.mxu0 0.0
        %3134 = vmatpush.msra.mxu0 0.0
        %3135 = vmatpush.msra.mxu0 0.0
        %3136 = vmatpush.msra.mxu0 0.0
        %3137 = vmatpush.msra.mxu0 0.0
        %3138 = vmatpush.msra.mxu0 0.0
        %3139 = vmatpush.msra.mxu0 0.0
        %3140 = vmatpush.msra.mxu0 0.0
        %3141 = vmatpush.msra.mxu0 0.0
        %3142 = vmatpush.msra.mxu0 0.0
        %3143 = vmatpush.msra.mxu0 0.0
        %3144 = vmatpush.msra.mxu0 0.0
        %3145 = vmatpush.msra.mxu0 0.0
        %3146 = vmatpush.msra.mxu0 0.0
        %3147 = vmatpush.msra.mxu0 0.0
        %3148 = vmatpush.msra.mxu0 %v3127
        %3149 = vmatmul.f32.gmra.mxu0 %v3131
        %v3150 = vpop.f32.mrf.mxu0
        %v3151 = vadd.f32 0.0, %v3150
        %3152 = vdwg.mxu0
        %v3154 = vsel %vm1775, %v3089, 0
        %3156 = vmatpush.msra.mxu0 0.0
        %3157 = vmatpush.msra.mxu0 0.0
        %3158 = vmatpush.msra.mxu0 0.0
        %3159 = vmatpush.msra.mxu0 0.0
        %3160 = vmatpush.msra.mxu0 0.0
        %3161 = vmatpush.msra.mxu0 0.0
        %3162 = vmatpush.msra.mxu0 0.0
        %3163 = vmatpush.msra.mxu0 0.0
        %3164 = vmatpush.msra.mxu0 0.0
        %3165 = vmatpush.msra.mxu0 0.0
        %3166 = vmatpush.msra.mxu0 0.0
        %3167 = vmatpush.msra.mxu0 0.0
        %3168 = vmatpush.msra.mxu0 0.0
        %3169 = vmatpush.msra.mxu0 0.0
        %3170 = vmatpush.msra.mxu0 0.0
        %3171 = vmatpush.msra.mxu0 %v3129
        %3172 = vmatmul.f32.gmra.mxu0 %v3154
        %v3173 = vpop.f32.mrf.mxu0
        %v3174 = vadd.f32 0.0, %v3173
        %3175 = vdwg.mxu0
        %3176 = vst.msk [vmem:[%s550] sm:$0xff] %vm1775, %v1796
        %3177 = vst.msk [vmem:[%s550 + $0x8] sm:$0xff] %vm1775, %v1797
        %s3178 = scalar_lea.vmem %s550, 16 [#allocation4]
        %3179 = vst.msk [vmem:[%s3178] sm:$0xff] %vm1775, %v3088
        %3180 = vst.msk [vmem:[%s3178 + $0x8] sm:$0xff] %vm1775, %v3089
        %3181 = vst.msk [vmem:[%s588] sm:$0xff] %vm1775, %v1859
        %3182 = vst.msk [vmem:[%s588 + $0x8] sm:$0xff] %vm1775, %v1882
        %s3183 = scalar_lea.vmem %s588, 16
        %3184 = vst.msk [vmem:[%s3183] sm:$0xff] %vm1775, %v3151
        %3185 = vst.msk [vmem:[%s3183 + $0x8] sm:$0xff] %vm1775, %v3174
        %p3186 = scmp.lt.s32.totalorder %s26, 1
        %s3187 = scalar_select %p3186, %s26, 1
        %p3188 = scmp.lt.s32.totalorder %s27, 0
        %s3189 = scalar_select %p3188, %s27, 0
        %s3190 = smul.addr %s3187, 4
        %s3191 = sadd.s32 %s3189, %s3190
        %s3192 = smul.addr %s3191, 8
        %s3193 = scalar_lea.vmem %s6, %s3192
        %s3194 = sand.u32 %s232, 1
        %s3195 = scalar_lea.sflag [#allocation5], %s3194
        %s3196 = sand.u32 %s232, 1
        %s3197 = smul.addr %s3196, 32
        %s3198 = scalar_lea.vmem [#allocation4], %s3197
        // Predicated region
        $region127: #{run.16} parent=117 // pred_check
          %p3199 = pneg %p214
        $region128: #{run.16} parent=117 // pred_check_branch
          %3201 = sbr.rel (%p3199) target = $region130
        $region129: #{run.16} parent=117 // pred_region
          _
        $region130: #{run.16} parent=117 // pred_fallthru
          _
        // Predicated region
        $region131: #{run.16} parent=117 // pred_check
          %p3202 = pneg %p242
        $region132: #{run.16} parent=117 // pred_check_branch
          %3204 = sbr.rel (%p3202) target = $region134
        $region133: #{run.16} parent=117 // pred_region
          %3206 = vsyncadd %s3195, 0
          %s3207 = smul.addr %s26, 4
          %s3208 = sadd.s32 %s27, %s3207
          %s3209 = smul.addr %s3208, 8
          %s3210 = scalar_lea.hbm %s7, %s3209
          %s3211 = sshll.u32 %s3198, 4
          %s3212 = int_to_ptr.vmem [resolvable:$true] %s3211
          %s3213 = sshll.u32 %s3210, 4
          %s3214 = int_to_ptr.hbm [resolvable:$true] %s3213
          %3219 = dma.vmem_to_hbm [thread:$0]  %s3212, 512, %s3214, %s3195, 128, 128, 8
        $region134: #{run.16} parent=117 // pred_fallthru
          _
      $region118: #{run.16} parent=5 // pred_fallthru
        _
      %p3220 = scmp.le.s32.totalorder 2, %s17
      // Predicated region
      $region135: #{run.16} parent=5 // pred_check
        %p3221 = pneg %p3220
      $region136: #{run.16} parent=5 // pred_check_branch
        %3223 = sbr.rel (%p3221) target = $region138
      $region137: #{run.16} parent=5 // pred_region
        %s3224 = ssub.s32 %s17, 2
        // Predicated region
        $region139: #{run.16} parent=137 // pred_check
          %p3225 = pneg %p220
        $region140: #{run.16} parent=137 // pred_check_branch
          %3227 = sbr.rel (%p3225) target = $region142
        $region141: #{run.16} parent=137 // pred_region
          %p3228 = scmp.lt.s32.totalorder %s28, 1
          %s3229 = scalar_select %p3228, %s28, 1
          %p3230 = scmp.lt.s32.totalorder %s29, 0
          %s3231 = scalar_select %p3230, %s29, 0
          %s3232 = smul.addr %s3229, 4
          %s3233 = sadd.s32 %s3231, %s3232
          %s3234 = smul.addr %s3233, 8
          %s3235 = scalar_lea.vmem %s6, %s3234
        $region142: #{run.16} parent=137 // pred_fallthru
          _
        // Predicated region
        $region143: #{run.16} parent=137 // pred_check
          %p3236 = pneg %p248
        $region144: #{run.16} parent=137 // pred_check_branch
          %3238 = sbr.rel (%p3236) target = $region146
        $region145: #{run.16} parent=137 // pred_region
          %s3239 = sand.u32 %s233, 1
          %s3240 = scalar_lea.sflag [#allocation5], %s3239
          %s3241 = sand.u32 %s233, 1
          %s3242 = smul.addr %s3241, 32
          %s3243 = scalar_lea.vmem [#allocation4], %s3242
          %3245 = dma.done %s3240, 512
        $region146: #{run.16} parent=137 // pred_fallthru
          _
      $region138: #{run.16} parent=5 // pred_fallthru
        _
    $region6: #{run.16} parent=1 // loop_footer
      %s21 = sadd.s32 1, %s17
    $region7: #{run.16} parent=1 // loop_footer_branch
      %16 = sbr.rel target = $region3
    $region8: #{run.16} parent=1 // loop_exit
      _
    %3246 = vsyncpa [#allocation5], 1
    %s3247 = scalar_lea.sflag [#allocation5], 1
    %3248 = vsyncpa %s3247, 1

</llo_original>
